<compile_context>
chip_gen: v5e
topology: v5e:2x2
jax: 0.10.0
libtpu: 0.0.40
codegen_flags: <defaults>
</compile_context>

<pallas_src>
import functools
import math

import jax
import jax.numpy as jnp
from jax.experimental import pallas as pl


# ---------------------------------------------------------------------------
# Fused forward kernel (single pallas_call for the whole model)
# ---------------------------------------------------------------------------

def _fused_forward_kernel(*refs, heads, head_dim, n_gt, n_gin, n_nodes):
    N = n_nodes
    C = head_dim
    HC = heads * head_dim
    scale = 1.0 / math.sqrt(C)

    # ---- unpack refs (inputs ..., output) ----------------------------------
    it = iter(refs)
    x_ref = next(it)        # (N, F_in)
    a_ref = next(it)        # (N, N)           adjacency  A[tgt, src]
    ef_ref = next(it)       # (N*N, edge_dim)  dense edge features, row = tgt*N + src
    pmean_ref = next(it)    # (G, N)           mean-pool matrix
    padd_ref = next(it)     # (G, N)           add-pool matrix
    gt_w = []
    for _ in range(n_gt):
        wqkvs = next(it); bqkvs = next(it); we = next(it); wbeta = next(it)
        gt_w.append((wqkvs, bqkvs, we, wbeta))
    gin_w = []
    for _ in range(n_gin):
        w1 = next(it); b1 = next(it); w2 = next(it); b2 = next(it)
        gin_w.append((w1, b1, w2, b2))
    wr1 = next(it); br1 = next(it); wr2 = next(it); br2 = next(it)
    o_ref = next(it)

    A = a_ref[...]
    edge_mask = A > 0.0
    E_flat = ef_ref[...]                                             # (N*N, edge_dim)

    # ---- GT stack: TransformerConv(concat=True, beta=True, root_weight=True) ----
    h = x_ref[...]
    for (wqkvs, bqkvs, we, wbeta) in gt_w:
        # One lane-dense projection for Q|K|V|skip (out lane width 4*HC).
        qkvs = jnp.dot(h, wqkvs[...], preferred_element_type=jnp.float32) + bqkvs[...]
        q = qkvs[:, 0 * HC:1 * HC]
        k = qkvs[:, 1 * HC:2 * HC]
        v = qkvs[:, 2 * HC:3 * HC]
        xr = qkvs[:, 3 * HC:4 * HC]                                  # root / skip term

        # Fused lin_edge (bias=False): project dense edge features in-kernel.
        e3 = jnp.dot(E_flat, we[...],
                     preferred_element_type=jnp.float32).reshape(N, N, HC)

        head_outs = []
        for hh in range(heads):                                      # static unroll (H small)
            sl = slice(hh * C, (hh + 1) * C)
            qh, kh, vh, eh = q[:, sl], k[:, sl], v[:, sl], e3[:, :, sl]

            qk = jnp.dot(qh, kh.T, preferred_element_type=jnp.float32)   # (N, N)
            qe = jnp.sum(qh[:, None, :] * eh, axis=-1)                   # q_i . E_ij
            scores = jnp.where(edge_mask, (qk + qe) * scale, -1e30)
            smax = jnp.max(scores, axis=-1, keepdims=True)
            p = jnp.exp(scores - smax) * A                               # zero off-edge
            denom = jnp.sum(p, axis=-1, keepdims=True)

            agg = jnp.dot(p, vh, preferred_element_type=jnp.float32)     # sum_j p_ij v_j
            agg = agg + jnp.sum(p[:, :, None] * eh, axis=1)              # + sum_j p_ij E_ij
            safe = jnp.where(denom > 0.0, denom, 1.0)
            head_outs.append(jnp.where(denom > 0.0, agg / safe, 0.0))    # isolated nodes -> 0

        out = jnp.concatenate(head_outs, axis=1)                         # (N, HC) concat heads

        # beta gate: sigmoid([out, x_r, out - x_r] @ Wbeta), fused (no extra launch).
        wb = wbeta[...]
        logit = (jnp.dot(out, wb[0:HC, :], preferred_element_type=jnp.float32)
                 + jnp.dot(xr, wb[HC:2 * HC, :], preferred_element_type=jnp.float32)
                 + jnp.dot(out - xr, wb[2 * HC:3 * HC, :],
                           preferred_element_type=jnp.float32))
        beta = jax.nn.sigmoid(logit)                                     # (N, 1)
        h = beta * xr + (1.0 - beta) * out

    gt_embed = h                                                         # (N, HC)
    gt_final = jnp.dot(pmean_ref[...], gt_embed,
                       preferred_element_type=jnp.float32)               # (G, HC) mean pool

    # ---- GIN stack (GINConv eps=0): nn((A + I) @ g), fully fused ----------
    g = gt_embed
    for (w1, b1, w2, b2) in gin_w:
        agg = jnp.dot(A, g, preferred_element_type=jnp.float32) + g      # (A + I) @ g
        h1 = jnp.dot(agg, w1[...], preferred_element_type=jnp.float32) + b1[...]
        h1 = jnp.maximum(h1, 0.0)
        g = jnp.dot(h1, w2[...], preferred_element_type=jnp.float32) + b2[...]
    gin_final = jnp.dot(padd_ref[...], g,
                        preferred_element_type=jnp.float32)              # (G, hidden) add pool

    # ---- readout: concat([gt_final, gin_final]) realized as split-weight matmuls ----
    w1full = wr1[...]
    r1 = (jnp.dot(gt_final, w1full[0:HC, :], preferred_element_type=jnp.float32)
          + jnp.dot(gin_final, w1full[HC:, :], preferred_element_type=jnp.float32)
          + br1[...])
    r1 = jnp.maximum(r1, 0.0)
    o_ref[...] = (jnp.dot(r1, wr2[...], preferred_element_type=jnp.float32)
                  + br2[...]).astype(o_ref.dtype)


def fused_forward(flat_params, x, A, E_flat, Pmean, Padd, *,
                  heads, head_dim, n_gt, n_gin, num_targets):
    N = x.shape[0]
    G = Pmean.shape[0]
    kernel = functools.partial(
        _fused_forward_kernel, heads=heads, head_dim=head_dim,
        n_gt=n_gt, n_gin=n_gin, n_nodes=N)
    return pl.pallas_call(
        kernel,
        out_shape=jax.ShapeDtypeStruct((G, num_targets), jnp.float32),
    )(x, A, E_flat, Pmean, Padd, *flat_params)


# ---------------------------------------------------------------------------
# Parameter init / preparation
# ---------------------------------------------------------------------------

def init_params(key, num_features, num_targets, hidden, heads, edge_dim,
                num_layers_GIN, num_layers_GT):
    HC = hidden * heads

    def nrm(k, shape, scale=0.1):
        return scale * jax.random.normal(k, shape, dtype=jnp.float32)

    params = {"gt": [], "gin": []}
    for l in range(num_layers_GT):
        in_dim = num_features if l == 0 else HC
        ks = jax.random.split(key, 11)
        key = ks[-1]
        params["gt"].append({
            "wq": nrm(ks[0], (in_dim, HC)), "bq": nrm(ks[1], (HC,)),
            "wk": nrm(ks[2], (in_dim, HC)), "bk": nrm(ks[3], (HC,)),
            "wv": nrm(ks[4], (in_dim, HC)), "bv": nrm(ks[5], (HC,)),
            "we": nrm(ks[6], (edge_dim, HC)),                   # lin_edge (bias=False)
            "wskip": nrm(ks[7], (in_dim, HC)), "bskip": nrm(ks[8], (HC,)),
            "wbeta": nrm(ks[9], (3 * HC, 1)),                   # lin_beta (bias=False)
        })
    for l in range(num_layers_GIN):
        in_dim = HC if l == 0 else hidden
        ks = jax.random.split(key, 5)
        key = ks[-1]
        params["gin"].append({
            "w1": nrm(ks[0], (in_dim, hidden)), "b1": nrm(ks[1], (hidden,)),
            "w2": nrm(ks[2], (hidden, hidden)), "b2": nrm(ks[3], (hidden,)),
        })
    ks = jax.random.split(key, 4)
    params["wr1"] = nrm(ks[0], (HC + hidden, hidden))
    params["br1"] = nrm(ks[1], (hidden,))
    params["wr2"] = nrm(ks[2], (hidden, num_targets))
    params["br2"] = nrm(ks[3], (num_targets,))
    return params


def prepare_params(params):
    """Flatten to kernel-arg order; cast ONCE to f32; Q|K|V|skip weights concatenated;
    1-D biases reshaped to (1, n)."""
    flat = []
    for lp in params["gt"]:
        wqkvs = jnp.concatenate([lp["wq"], lp["wk"], lp["wv"], lp["wskip"]], axis=1)
        bqkvs = jnp.concatenate([lp["bq"], lp["bk"], lp["bv"], lp["bskip"]])[None, :]
        flat += [wqkvs, bqkvs, lp["we"], lp["wbeta"]]
    for lp in params["gin"]:
        flat += [lp["w1"], lp["b1"][None, :], lp["w2"], lp["b2"][None, :]]
    flat += [params["wr1"], params["br1"][None, :],
             params["wr2"], params["br2"][None, :]]
    return [a.astype(jnp.float32) for a in flat]


# ---------------------------------------------------------------------------
# Main
# ---------------------------------------------------------------------------

if __name__ == "__main__":
    # Hyper-parameters (small, consistent with the module signature)
    num_features, num_targets = 8, 1
    hidden, heads, edge_dim = 8, 2, 4
    num_layers_GT, num_layers_GIN = 2, 2
    # dropout on attention coefficients = 0 / eval-mode -> identity

    # Synthetic batched graph: 2 graphs x 8 nodes, bidirectional ring edges per graph
    G, N_per = 2, 8
    N = G * N_per
    src, tgt = [], []
    for g in range(G):
        off = g * N_per
        for i in range(N_per):
            j = (i + 1) % N_per
            src += [off + i, off + j]
            tgt += [off + j, off + i]
    edge_index = jnp.array([src, tgt], dtype=jnp.int32)               # row0=src, row1=tgt
    E = edge_index.shape[1]

    key = jax.random.PRNGKey(0)
    kx, ke, kp = jax.random.split(key, 3)
    x = jax.random.normal(kx, (N, num_features), dtype=jnp.float32)
    edge_attr = jax.random.normal(ke, (E, edge_dim), dtype=jnp.float32)
    batch = jnp.repeat(jnp.arange(G, dtype=jnp.int32), N_per)

    # Densify graph structure (host-side glue); graph has no duplicate edges.
    A = jnp.zeros((N, N), jnp.float32).at[edge_index[1], edge_index[0]].set(1.0)
    E_dense = jnp.zeros((N, N, edge_dim), jnp.float32).at[edge_index[1], edge_index[0]].set(edge_attr)
    E_flat = E_dense.reshape(N * N, edge_dim)

    # Pooling matrices from `batch`
    onehot = (batch[None, :] == jnp.arange(G)[:, None]).astype(jnp.float32)   # (G, N)
    Pmean = onehot / jnp.sum(onehot, axis=1, keepdims=True)
    Padd = onehot

    params = init_params(kp, num_features, num_targets, hidden, heads, edge_dim,
                         num_layers_GIN, num_layers_GT)
    flat_params = prepare_params(params)

    out = fused_forward(flat_params, x, A, E_flat, Pmean, Padd,
                        heads=heads, head_dim=hidden,
                        n_gt=num_layers_GT, n_gin=num_layers_GIN,
                        num_targets=num_targets)
    out = jax.block_until_ready(out)
    assert out.shape == (G, num_targets)
    print("KERNEL_OK")
</pallas_src>

<mosaic_0001>
module attributes {stable_mosaic.version = 11 : i64} {
  func.func @_fused_forward_kernel(%arg0: memref<16x8xf32, #tpu.memory_space<vmem>>, %arg1: memref<16x16xf32, #tpu.memory_space<vmem>>, %arg2: memref<256x4xf32, #tpu.memory_space<vmem>>, %arg3: memref<2x16xf32, #tpu.memory_space<vmem>>, %arg4: memref<2x16xf32, #tpu.memory_space<vmem>>, %arg5: memref<8x64xf32, #tpu.memory_space<vmem>>, %arg6: memref<1x64xf32, #tpu.memory_space<vmem>>, %arg7: memref<4x16xf32, #tpu.memory_space<vmem>>, %arg8: memref<48x1xf32, #tpu.memory_space<vmem>>, %arg9: memref<16x64xf32, #tpu.memory_space<vmem>>, %arg10: memref<1x64xf32, #tpu.memory_space<vmem>>, %arg11: memref<4x16xf32, #tpu.memory_space<vmem>>, %arg12: memref<48x1xf32, #tpu.memory_space<vmem>>, %arg13: memref<16x8xf32, #tpu.memory_space<vmem>>, %arg14: memref<1x8xf32, #tpu.memory_space<vmem>>, %arg15: memref<8x8xf32, #tpu.memory_space<vmem>>, %arg16: memref<1x8xf32, #tpu.memory_space<vmem>>, %arg17: memref<8x8xf32, #tpu.memory_space<vmem>>, %arg18: memref<1x8xf32, #tpu.memory_space<vmem>>, %arg19: memref<8x8xf32, #tpu.memory_space<vmem>>, %arg20: memref<1x8xf32, #tpu.memory_space<vmem>>, %arg21: memref<24x8xf32, #tpu.memory_space<vmem>>, %arg22: memref<1x8xf32, #tpu.memory_space<vmem>>, %arg23: memref<8x1xf32, #tpu.memory_space<vmem>>, %arg24: memref<1x1xf32, #tpu.memory_space<vmem>>, %arg25: memref<2x1xf32, #tpu.memory_space<vmem>>) attributes {dimension_semantics = [], scalar_prefetch = 0 : i64, scratch_operands = 0 : i64, tpu.core_type = #tpu.core_type<tc>} {
    %c0 = arith.constant 0 : index
    %c0_0 = arith.constant 0 : index
    %0 = vector.load %arg1[%c0, %c0_0] : memref<16x16xf32, #tpu.memory_space<vmem>>, vector<16x16xf32>
    %cst = arith.constant 0.000000e+00 : f32
    %1 = vector.broadcast %cst : f32 to vector<16x16xf32>
    %2 = arith.cmpf ogt, %0, %1 : vector<16x16xf32>
    %c0_1 = arith.constant 0 : index
    %c0_2 = arith.constant 0 : index
    %3 = vector.load %arg2[%c0_1, %c0_2] : memref<256x4xf32, #tpu.memory_space<vmem>>, vector<256x4xf32>
    %c0_3 = arith.constant 0 : index
    %c0_4 = arith.constant 0 : index
    %4 = vector.load %arg0[%c0_3, %c0_4] : memref<16x8xf32, #tpu.memory_space<vmem>>, vector<16x8xf32>
    %c0_5 = arith.constant 0 : index
    %c0_6 = arith.constant 0 : index
    %5 = vector.load %arg5[%c0_5, %c0_6] : memref<8x64xf32, #tpu.memory_space<vmem>>, vector<8x64xf32>
    %cst_7 = arith.constant dense<0.000000e+00> : vector<16x64xf32>
    %6 = tpu.matmul %4, %5, %cst_7 {dimension_numbers = #tpu.dot_dimension_numbers<[1], [0], [0], [1], [0, 0, 1, 1], [], []>} : vector<16x8xf32>, vector<8x64xf32>, vector<16x64xf32> -> vector<16x64xf32>
    %c0_8 = arith.constant 0 : index
    %c0_9 = arith.constant 0 : index
    %7 = vector.load %arg6[%c0_8, %c0_9] : memref<1x64xf32, #tpu.memory_space<vmem>>, vector<1x64xf32>
    %8 = vector.broadcast %7 : vector<1x64xf32> to vector<16x64xf32>
    %9 = arith.addf %6, %8 : vector<16x64xf32>
    %10 = vector.extract_strided_slice %9 {offsets = [0, 0], sizes = [16, 16], strides = [1, 1]} : vector<16x64xf32> to vector<16x16xf32>
    %11 = vector.extract_strided_slice %9 {offsets = [0, 16], sizes = [16, 16], strides = [1, 1]} : vector<16x64xf32> to vector<16x16xf32>
    %12 = vector.extract_strided_slice %9 {offsets = [0, 32], sizes = [16, 16], strides = [1, 1]} : vector<16x64xf32> to vector<16x16xf32>
    %13 = vector.extract_strided_slice %9 {offsets = [0, 48], sizes = [16, 16], strides = [1, 1]} : vector<16x64xf32> to vector<16x16xf32>
    %c0_10 = arith.constant 0 : index
    %c0_11 = arith.constant 0 : index
    %14 = vector.load %arg7[%c0_10, %c0_11] : memref<4x16xf32, #tpu.memory_space<vmem>>, vector<4x16xf32>
    %cst_12 = arith.constant dense<0.000000e+00> : vector<256x16xf32>
    %15 = tpu.matmul %3, %14, %cst_12 {dimension_numbers = #tpu.dot_dimension_numbers<[1], [0], [0], [1], [0, 0, 1, 1], [], []>} : vector<256x4xf32>, vector<4x16xf32>, vector<256x16xf32> -> vector<256x16xf32>
    %16 = vector.shape_cast %15 : vector<256x16xf32> to vector<16x16x16xf32>
    %17 = vector.extract_strided_slice %10 {offsets = [0, 0], sizes = [16, 8], strides = [1, 1]} : vector<16x16xf32> to vector<16x8xf32>
    %18 = vector.extract_strided_slice %11 {offsets = [0, 0], sizes = [16, 8], strides = [1, 1]} : vector<16x16xf32> to vector<16x8xf32>
    %19 = vector.extract_strided_slice %12 {offsets = [0, 0], sizes = [16, 8], strides = [1, 1]} : vector<16x16xf32> to vector<16x8xf32>
    %20 = vector.extract_strided_slice %16 {offsets = [0, 0, 0], sizes = [16, 16, 8], strides = [1, 1, 1]} : vector<16x16x16xf32> to vector<16x16x8xf32>
    %21 = tpu.transpose %18, [1, 0] : vector<16x8xf32> -> vector<8x16xf32>
    %cst_13 = arith.constant dense<0.000000e+00> : vector<16x16xf32>
    %22 = tpu.matmul %17, %21, %cst_13 {dimension_numbers = #tpu.dot_dimension_numbers<[1], [0], [0], [1], [0, 0, 1, 1], [], []>} : vector<16x8xf32>, vector<8x16xf32>, vector<16x16xf32> -> vector<16x16xf32>
    %23 = vector.shape_cast %17 : vector<16x8xf32> to vector<16x1x8xf32>
    %24 = vector.broadcast %23 : vector<16x1x8xf32> to vector<16x16x8xf32>
    %25 = arith.mulf %24, %20 : vector<16x16x8xf32>
    %cst_14 = arith.constant dense<0.000000e+00> : vector<16x16xf32>
    %26 = vector.multi_reduction <add>, %25, %cst_14 [2] : vector<16x16x8xf32> to vector<16x16xf32>
    %27 = arith.addf %22, %26 : vector<16x16xf32>
    %cst_15 = arith.constant 0.353553385 : f32
    %28 = vector.broadcast %cst_15 : f32 to vector<16x16xf32>
    %29 = arith.mulf %27, %28 : vector<16x16xf32>
    %cst_16 = arith.constant -1.000000e+30 : f32
    %30 = vector.broadcast %cst_16 : f32 to vector<16x16xf32>
    %31 = arith.select %2, %29, %30 : vector<16x16xi1>, vector<16x16xf32>
    %cst_17 = arith.constant dense<0xFF800000> : vector<16xf32>
    %32 = vector.multi_reduction <maximumf>, %31, %cst_17 [1] : vector<16x16xf32> to vector<16xf32>
    %33 = vector.shape_cast %32 : vector<16xf32> to vector<16x1xf32>
    %34 = vector.broadcast %33 : vector<16x1xf32> to vector<16x16xf32>
    %35 = arith.subf %31, %34 : vector<16x16xf32>
    %36 = math.exp %35 : vector<16x16xf32>
    %37 = arith.mulf %36, %0 : vector<16x16xf32>
    %cst_18 = arith.constant dense<0.000000e+00> : vector<16xf32>
    %38 = vector.multi_reduction <add>, %37, %cst_18 [1] : vector<16x16xf32> to vector<16xf32>
    %39 = vector.shape_cast %38 : vector<16xf32> to vector<16x1xf32>
    %cst_19 = arith.constant dense<0.000000e+00> : vector<16x8xf32>
    %40 = tpu.matmul %37, %19, %cst_19 {dimension_numbers = #tpu.dot_dimension_numbers<[1], [0], [0], [1], [0, 0, 1, 1], [], []>} : vector<16x16xf32>, vector<16x8xf32>, vector<16x8xf32> -> vector<16x8xf32>
    %41 = vector.shape_cast %37 : vector<16x16xf32> to vector<16x16x1xf32>
    %42 = vector.broadcast %41 : vector<16x16x1xf32> to vector<16x16x8xf32>
    %43 = arith.mulf %42, %20 : vector<16x16x8xf32>
    %cst_20 = arith.constant dense<0.000000e+00> : vector<16x8xf32>
    %44 = vector.multi_reduction <add>, %43, %cst_20 [1] : vector<16x16x8xf32> to vector<16x8xf32>
    %45 = arith.addf %40, %44 : vector<16x8xf32>
    %cst_21 = arith.constant 0.000000e+00 : f32
    %46 = vector.broadcast %cst_21 : f32 to vector<16x1xf32>
    %47 = arith.cmpf ogt, %39, %46 : vector<16x1xf32>
    %cst_22 = arith.constant 1.000000e+00 : f32
    %48 = vector.broadcast %cst_22 : f32 to vector<16x1xf32>
    %49 = arith.select %47, %39, %48 : vector<16x1xi1>, vector<16x1xf32>
    %cst_23 = arith.constant 0.000000e+00 : f32
    %50 = vector.broadcast %cst_23 : f32 to vector<16x1xf32>
    %51 = arith.cmpf ogt, %39, %50 : vector<16x1xf32>
    %52 = vector.broadcast %49 : vector<16x1xf32> to vector<16x8xf32>
    %53 = arith.divf %45, %52 : vector<16x8xf32>
    %cst_24 = arith.constant 0.000000e+00 : f32
    %54 = vector.shape_cast %51 : vector<16x1xi1> to vector<16x1xi1>
    %55 = vector.broadcast %54 : vector<16x1xi1> to vector<16x8xi1>
    %56 = vector.broadcast %cst_24 : f32 to vector<16x8xf32>
    %57 = arith.select %55, %53, %56 : vector<16x8xi1>, vector<16x8xf32>
    %58 = vector.extract_strided_slice %10 {offsets = [0, 8], sizes = [16, 8], strides = [1, 1]} : vector<16x16xf32> to vector<16x8xf32>
    %59 = vector.extract_strided_slice %11 {offsets = [0, 8], sizes = [16, 8], strides = [1, 1]} : vector<16x16xf32> to vector<16x8xf32>
    %60 = vector.extract_strided_slice %12 {offsets = [0, 8], sizes = [16, 8], strides = [1, 1]} : vector<16x16xf32> to vector<16x8xf32>
    %61 = vector.extract_strided_slice %16 {offsets = [0, 0, 8], sizes = [16, 16, 8], strides = [1, 1, 1]} : vector<16x16x16xf32> to vector<16x16x8xf32>
    %62 = tpu.transpose %59, [1, 0] : vector<16x8xf32> -> vector<8x16xf32>
    %cst_25 = arith.constant dense<0.000000e+00> : vector<16x16xf32>
    %63 = tpu.matmul %58, %62, %cst_25 {dimension_numbers = #tpu.dot_dimension_numbers<[1], [0], [0], [1], [0, 0, 1, 1], [], []>} : vector<16x8xf32>, vector<8x16xf32>, vector<16x16xf32> -> vector<16x16xf32>
    %64 = vector.shape_cast %58 : vector<16x8xf32> to vector<16x1x8xf32>
    %65 = vector.broadcast %64 : vector<16x1x8xf32> to vector<16x16x8xf32>
    %66 = arith.mulf %65, %61 : vector<16x16x8xf32>
    %cst_26 = arith.constant dense<0.000000e+00> : vector<16x16xf32>
    %67 = vector.multi_reduction <add>, %66, %cst_26 [2] : vector<16x16x8xf32> to vector<16x16xf32>
    %68 = arith.addf %63, %67 : vector<16x16xf32>
    %cst_27 = arith.constant 0.353553385 : f32
    %69 = vector.broadcast %cst_27 : f32 to vector<16x16xf32>
    %70 = arith.mulf %68, %69 : vector<16x16xf32>
    %cst_28 = arith.constant -1.000000e+30 : f32
    %71 = vector.broadcast %cst_28 : f32 to vector<16x16xf32>
    %72 = arith.select %2, %70, %71 : vector<16x16xi1>, vector<16x16xf32>
    %cst_29 = arith.constant dense<0xFF800000> : vector<16xf32>
    %73 = vector.multi_reduction <maximumf>, %72, %cst_29 [1] : vector<16x16xf32> to vector<16xf32>
    %74 = vector.shape_cast %73 : vector<16xf32> to vector<16x1xf32>
    %75 = vector.broadcast %74 : vector<16x1xf32> to vector<16x16xf32>
    %76 = arith.subf %72, %75 : vector<16x16xf32>
    %77 = math.exp %76 : vector<16x16xf32>
    %78 = arith.mulf %77, %0 : vector<16x16xf32>
    %cst_30 = arith.constant dense<0.000000e+00> : vector<16xf32>
    %79 = vector.multi_reduction <add>, %78, %cst_30 [1] : vector<16x16xf32> to vector<16xf32>
    %80 = vector.shape_cast %79 : vector<16xf32> to vector<16x1xf32>
    %cst_31 = arith.constant dense<0.000000e+00> : vector<16x8xf32>
    %81 = tpu.matmul %78, %60, %cst_31 {dimension_numbers = #tpu.dot_dimension_numbers<[1], [0], [0], [1], [0, 0, 1, 1], [], []>} : vector<16x16xf32>, vector<16x8xf32>, vector<16x8xf32> -> vector<16x8xf32>
    %82 = vector.shape_cast %78 : vector<16x16xf32> to vector<16x16x1xf32>
    %83 = vector.broadcast %82 : vector<16x16x1xf32> to vector<16x16x8xf32>
    %84 = arith.mulf %83, %61 : vector<16x16x8xf32>
    %cst_32 = arith.constant dense<0.000000e+00> : vector<16x8xf32>
    %85 = vector.multi_reduction <add>, %84, %cst_32 [1] : vector<16x16x8xf32> to vector<16x8xf32>
    %86 = arith.addf %81, %85 : vector<16x8xf32>
    %cst_33 = arith.constant 0.000000e+00 : f32
    %87 = vector.broadcast %cst_33 : f32 to vector<16x1xf32>
    %88 = arith.cmpf ogt, %80, %87 : vector<16x1xf32>
    %cst_34 = arith.constant 1.000000e+00 : f32
    %89 = vector.broadcast %cst_34 : f32 to vector<16x1xf32>
    %90 = arith.select %88, %80, %89 : vector<16x1xi1>, vector<16x1xf32>
    %cst_35 = arith.constant 0.000000e+00 : f32
    %91 = vector.broadcast %cst_35 : f32 to vector<16x1xf32>
    %92 = arith.cmpf ogt, %80, %91 : vector<16x1xf32>
    %93 = vector.broadcast %90 : vector<16x1xf32> to vector<16x8xf32>
    %94 = arith.divf %86, %93 : vector<16x8xf32>
    %cst_36 = arith.constant 0.000000e+00 : f32
    %95 = vector.shape_cast %92 : vector<16x1xi1> to vector<16x1xi1>
    %96 = vector.broadcast %95 : vector<16x1xi1> to vector<16x8xi1>
    %97 = vector.broadcast %cst_36 : f32 to vector<16x8xf32>
    %98 = arith.select %96, %94, %97 : vector<16x8xi1>, vector<16x8xf32>
    %99 = tpu.concatenate %57, %98 in 1 : vector<16x8xf32>, vector<16x8xf32> -> vector<16x16xf32>
    %c0_37 = arith.constant 0 : index
    %c0_38 = arith.constant 0 : index
    %100 = vector.load %arg8[%c0_37, %c0_38] : memref<48x1xf32, #tpu.memory_space<vmem>>, vector<48x1xf32>
    %101 = vector.extract_strided_slice %100 {offsets = [0, 0], sizes = [16, 1], strides = [1, 1]} : vector<48x1xf32> to vector<16x1xf32>
    %cst_39 = arith.constant dense<0.000000e+00> : vector<16x1xf32>
    %102 = tpu.matmul %99, %101, %cst_39 {dimension_numbers = #tpu.dot_dimension_numbers<[1], [0], [0], [1], [0, 0, 1, 1], [], []>} : vector<16x16xf32>, vector<16x1xf32>, vector<16x1xf32> -> vector<16x1xf32>
    %103 = vector.extract_strided_slice %100 {offsets = [16, 0], sizes = [16, 1], strides = [1, 1]} : vector<48x1xf32> to vector<16x1xf32>
    %cst_40 = arith.constant dense<0.000000e+00> : vector<16x1xf32>
    %104 = tpu.matmul %13, %103, %cst_40 {dimension_numbers = #tpu.dot_dimension_numbers<[1], [0], [0], [1], [0, 0, 1, 1], [], []>} : vector<16x16xf32>, vector<16x1xf32>, vector<16x1xf32> -> vector<16x1xf32>
    %105 = arith.addf %102, %104 : vector<16x1xf32>
    %106 = arith.subf %99, %13 : vector<16x16xf32>
    %107 = vector.extract_strided_slice %100 {offsets = [32, 0], sizes = [16, 1], strides = [1, 1]} : vector<48x1xf32> to vector<16x1xf32>
    %cst_41 = arith.constant dense<0.000000e+00> : vector<16x1xf32>
    %108 = tpu.matmul %106, %107, %cst_41 {dimension_numbers = #tpu.dot_dimension_numbers<[1], [0], [0], [1], [0, 0, 1, 1], [], []>} : vector<16x16xf32>, vector<16x1xf32>, vector<16x1xf32> -> vector<16x1xf32>
    %109 = arith.addf %105, %108 : vector<16x1xf32>
    %110 = arith.negf %109 : vector<16x1xf32>
    %111 = math.exp %110 : vector<16x1xf32>
    %cst_42 = arith.constant 1.000000e+00 : f32
    %112 = vector.broadcast %cst_42 : f32 to vector<16x1xf32>
    %113 = arith.addf %112, %111 : vector<16x1xf32>
    %114 = arith.divf %112, %113 : vector<16x1xf32>
    %115 = vector.broadcast %114 : vector<16x1xf32> to vector<16x16xf32>
    %116 = arith.mulf %115, %13 : vector<16x16xf32>
    %cst_43 = arith.constant 1.000000e+00 : f32
    %117 = vector.broadcast %cst_43 : f32 to vector<16x1xf32>
    %118 = arith.subf %117, %114 : vector<16x1xf32>
    %119 = vector.broadcast %118 : vector<16x1xf32> to vector<16x16xf32>
    %120 = arith.mulf %119, %99 : vector<16x16xf32>
    %121 = arith.addf %116, %120 : vector<16x16xf32>
    %c0_44 = arith.constant 0 : index
    %c0_45 = arith.constant 0 : index
    %122 = vector.load %arg9[%c0_44, %c0_45] : memref<16x64xf32, #tpu.memory_space<vmem>>, vector<16x64xf32>
    %cst_46 = arith.constant dense<0.000000e+00> : vector<16x64xf32>
    %123 = tpu.matmul %121, %122, %cst_46 {dimension_numbers = #tpu.dot_dimension_numbers<[1], [0], [0], [1], [0, 0, 1, 1], [], []>} : vector<16x16xf32>, vector<16x64xf32>, vector<16x64xf32> -> vector<16x64xf32>
    %c0_47 = arith.constant 0 : index
    %c0_48 = arith.constant 0 : index
    %124 = vector.load %arg10[%c0_47, %c0_48] : memref<1x64xf32, #tpu.memory_space<vmem>>, vector<1x64xf32>
    %125 = vector.broadcast %124 : vector<1x64xf32> to vector<16x64xf32>
    %126 = arith.addf %123, %125 : vector<16x64xf32>
    %127 = vector.extract_strided_slice %126 {offsets = [0, 0], sizes = [16, 16], strides = [1, 1]} : vector<16x64xf32> to vector<16x16xf32>
    %128 = vector.extract_strided_slice %126 {offsets = [0, 16], sizes = [16, 16], strides = [1, 1]} : vector<16x64xf32> to vector<16x16xf32>
    %129 = vector.extract_strided_slice %126 {offsets = [0, 32], sizes = [16, 16], strides = [1, 1]} : vector<16x64xf32> to vector<16x16xf32>
    %130 = vector.extract_strided_slice %126 {offsets = [0, 48], sizes = [16, 16], strides = [1, 1]} : vector<16x64xf32> to vector<16x16xf32>
    %c0_49 = arith.constant 0 : index
    %c0_50 = arith.constant 0 : index
    %131 = vector.load %arg11[%c0_49, %c0_50] : memref<4x16xf32, #tpu.memory_space<vmem>>, vector<4x16xf32>
    %cst_51 = arith.constant dense<0.000000e+00> : vector<256x16xf32>
    %132 = tpu.matmul %3, %131, %cst_51 {dimension_numbers = #tpu.dot_dimension_numbers<[1], [0], [0], [1], [0, 0, 1, 1], [], []>} : vector<256x4xf32>, vector<4x16xf32>, vector<256x16xf32> -> vector<256x16xf32>
    %133 = vector.shape_cast %132 : vector<256x16xf32> to vector<16x16x16xf32>
    %134 = vector.extract_strided_slice %127 {offsets = [0, 0], sizes = [16, 8], strides = [1, 1]} : vector<16x16xf32> to vector<16x8xf32>
    %135 = vector.extract_strided_slice %128 {offsets = [0, 0], sizes = [16, 8], strides = [1, 1]} : vector<16x16xf32> to vector<16x8xf32>
    %136 = vector.extract_strided_slice %129 {offsets = [0, 0], sizes = [16, 8], strides = [1, 1]} : vector<16x16xf32> to vector<16x8xf32>
    %137 = vector.extract_strided_slice %133 {offsets = [0, 0, 0], sizes = [16, 16, 8], strides = [1, 1, 1]} : vector<16x16x16xf32> to vector<16x16x8xf32>
    %138 = tpu.transpose %135, [1, 0] : vector<16x8xf32> -> vector<8x16xf32>
    %cst_52 = arith.constant dense<0.000000e+00> : vector<16x16xf32>
    %139 = tpu.matmul %134, %138, %cst_52 {dimension_numbers = #tpu.dot_dimension_numbers<[1], [0], [0], [1], [0, 0, 1, 1], [], []>} : vector<16x8xf32>, vector<8x16xf32>, vector<16x16xf32> -> vector<16x16xf32>
    %140 = vector.shape_cast %134 : vector<16x8xf32> to vector<16x1x8xf32>
    %141 = vector.broadcast %140 : vector<16x1x8xf32> to vector<16x16x8xf32>
    %142 = arith.mulf %141, %137 : vector<16x16x8xf32>
    %cst_53 = arith.constant dense<0.000000e+00> : vector<16x16xf32>
    %143 = vector.multi_reduction <add>, %142, %cst_53 [2] : vector<16x16x8xf32> to vector<16x16xf32>
    %144 = arith.addf %139, %143 : vector<16x16xf32>
    %cst_54 = arith.constant 0.353553385 : f32
    %145 = vector.broadcast %cst_54 : f32 to vector<16x16xf32>
    %146 = arith.mulf %144, %145 : vector<16x16xf32>
    %cst_55 = arith.constant -1.000000e+30 : f32
    %147 = vector.broadcast %cst_55 : f32 to vector<16x16xf32>
    %148 = arith.select %2, %146, %147 : vector<16x16xi1>, vector<16x16xf32>
    %cst_56 = arith.constant dense<0xFF800000> : vector<16xf32>
    %149 = vector.multi_reduction <maximumf>, %148, %cst_56 [1] : vector<16x16xf32> to vector<16xf32>
    %150 = vector.shape_cast %149 : vector<16xf32> to vector<16x1xf32>
    %151 = vector.broadcast %150 : vector<16x1xf32> to vector<16x16xf32>
    %152 = arith.subf %148, %151 : vector<16x16xf32>
    %153 = math.exp %152 : vector<16x16xf32>
    %154 = arith.mulf %153, %0 : vector<16x16xf32>
    %cst_57 = arith.constant dense<0.000000e+00> : vector<16xf32>
    %155 = vector.multi_reduction <add>, %154, %cst_57 [1] : vector<16x16xf32> to vector<16xf32>
    %156 = vector.shape_cast %155 : vector<16xf32> to vector<16x1xf32>
    %cst_58 = arith.constant dense<0.000000e+00> : vector<16x8xf32>
    %157 = tpu.matmul %154, %136, %cst_58 {dimension_numbers = #tpu.dot_dimension_numbers<[1], [0], [0], [1], [0, 0, 1, 1], [], []>} : vector<16x16xf32>, vector<16x8xf32>, vector<16x8xf32> -> vector<16x8xf32>
    %158 = vector.shape_cast %154 : vector<16x16xf32> to vector<16x16x1xf32>
    %159 = vector.broadcast %158 : vector<16x16x1xf32> to vector<16x16x8xf32>
    %160 = arith.mulf %159, %137 : vector<16x16x8xf32>
    %cst_59 = arith.constant dense<0.000000e+00> : vector<16x8xf32>
    %161 = vector.multi_reduction <add>, %160, %cst_59 [1] : vector<16x16x8xf32> to vector<16x8xf32>
    %162 = arith.addf %157, %161 : vector<16x8xf32>
    %cst_60 = arith.constant 0.000000e+00 : f32
    %163 = vector.broadcast %cst_60 : f32 to vector<16x1xf32>
    %164 = arith.cmpf ogt, %156, %163 : vector<16x1xf32>
    %cst_61 = arith.constant 1.000000e+00 : f32
    %165 = vector.broadcast %cst_61 : f32 to vector<16x1xf32>
    %166 = arith.select %164, %156, %165 : vector<16x1xi1>, vector<16x1xf32>
    %cst_62 = arith.constant 0.000000e+00 : f32
    %167 = vector.broadcast %cst_62 : f32 to vector<16x1xf32>
    %168 = arith.cmpf ogt, %156, %167 : vector<16x1xf32>
    %169 = vector.broadcast %166 : vector<16x1xf32> to vector<16x8xf32>
    %170 = arith.divf %162, %169 : vector<16x8xf32>
    %cst_63 = arith.constant 0.000000e+00 : f32
    %171 = vector.shape_cast %168 : vector<16x1xi1> to vector<16x1xi1>
    %172 = vector.broadcast %171 : vector<16x1xi1> to vector<16x8xi1>
    %173 = vector.broadcast %cst_63 : f32 to vector<16x8xf32>
    %174 = arith.select %172, %170, %173 : vector<16x8xi1>, vector<16x8xf32>
    %175 = vector.extract_strided_slice %127 {offsets = [0, 8], sizes = [16, 8], strides = [1, 1]} : vector<16x16xf32> to vector<16x8xf32>
    %176 = vector.extract_strided_slice %128 {offsets = [0, 8], sizes = [16, 8], strides = [1, 1]} : vector<16x16xf32> to vector<16x8xf32>
    %177 = vector.extract_strided_slice %129 {offsets = [0, 8], sizes = [16, 8], strides = [1, 1]} : vector<16x16xf32> to vector<16x8xf32>
    %178 = vector.extract_strided_slice %133 {offsets = [0, 0, 8], sizes = [16, 16, 8], strides = [1, 1, 1]} : vector<16x16x16xf32> to vector<16x16x8xf32>
    %179 = tpu.transpose %176, [1, 0] : vector<16x8xf32> -> vector<8x16xf32>
    %cst_64 = arith.constant dense<0.000000e+00> : vector<16x16xf32>
    %180 = tpu.matmul %175, %179, %cst_64 {dimension_numbers = #tpu.dot_dimension_numbers<[1], [0], [0], [1], [0, 0, 1, 1], [], []>} : vector<16x8xf32>, vector<8x16xf32>, vector<16x16xf32> -> vector<16x16xf32>
    %181 = vector.shape_cast %175 : vector<16x8xf32> to vector<16x1x8xf32>
    %182 = vector.broadcast %181 : vector<16x1x8xf32> to vector<16x16x8xf32>
    %183 = arith.mulf %182, %178 : vector<16x16x8xf32>
    %cst_65 = arith.constant dense<0.000000e+00> : vector<16x16xf32>
    %184 = vector.multi_reduction <add>, %183, %cst_65 [2] : vector<16x16x8xf32> to vector<16x16xf32>
    %185 = arith.addf %180, %184 : vector<16x16xf32>
    %cst_66 = arith.constant 0.353553385 : f32
    %186 = vector.broadcast %cst_66 : f32 to vector<16x16xf32>
    %187 = arith.mulf %185, %186 : vector<16x16xf32>
    %cst_67 = arith.constant -1.000000e+30 : f32
    %188 = vector.broadcast %cst_67 : f32 to vector<16x16xf32>
    %189 = arith.select %2, %187, %188 : vector<16x16xi1>, vector<16x16xf32>
    %cst_68 = arith.constant dense<0xFF800000> : vector<16xf32>
    %190 = vector.multi_reduction <maximumf>, %189, %cst_68 [1] : vector<16x16xf32> to vector<16xf32>
    %191 = vector.shape_cast %190 : vector<16xf32> to vector<16x1xf32>
    %192 = vector.broadcast %191 : vector<16x1xf32> to vector<16x16xf32>
    %193 = arith.subf %189, %192 : vector<16x16xf32>
    %194 = math.exp %193 : vector<16x16xf32>
    %195 = arith.mulf %194, %0 : vector<16x16xf32>
    %cst_69 = arith.constant dense<0.000000e+00> : vector<16xf32>
    %196 = vector.multi_reduction <add>, %195, %cst_69 [1] : vector<16x16xf32> to vector<16xf32>
    %197 = vector.shape_cast %196 : vector<16xf32> to vector<16x1xf32>
    %cst_70 = arith.constant dense<0.000000e+00> : vector<16x8xf32>
    %198 = tpu.matmul %195, %177, %cst_70 {dimension_numbers = #tpu.dot_dimension_numbers<[1], [0], [0], [1], [0, 0, 1, 1], [], []>} : vector<16x16xf32>, vector<16x8xf32>, vector<16x8xf32> -> vector<16x8xf32>
    %199 = vector.shape_cast %195 : vector<16x16xf32> to vector<16x16x1xf32>
    %200 = vector.broadcast %199 : vector<16x16x1xf32> to vector<16x16x8xf32>
    %201 = arith.mulf %200, %178 : vector<16x16x8xf32>
    %cst_71 = arith.constant dense<0.000000e+00> : vector<16x8xf32>
    %202 = vector.multi_reduction <add>, %201, %cst_71 [1] : vector<16x16x8xf32> to vector<16x8xf32>
    %203 = arith.addf %198, %202 : vector<16x8xf32>
    %cst_72 = arith.constant 0.000000e+00 : f32
    %204 = vector.broadcast %cst_72 : f32 to vector<16x1xf32>
    %205 = arith.cmpf ogt, %197, %204 : vector<16x1xf32>
    %cst_73 = arith.constant 1.000000e+00 : f32
    %206 = vector.broadcast %cst_73 : f32 to vector<16x1xf32>
    %207 = arith.select %205, %197, %206 : vector<16x1xi1>, vector<16x1xf32>
    %cst_74 = arith.constant 0.000000e+00 : f32
    %208 = vector.broadcast %cst_74 : f32 to vector<16x1xf32>
    %209 = arith.cmpf ogt, %197, %208 : vector<16x1xf32>
    %210 = vector.broadcast %207 : vector<16x1xf32> to vector<16x8xf32>
    %211 = arith.divf %203, %210 : vector<16x8xf32>
    %cst_75 = arith.constant 0.000000e+00 : f32
    %212 = vector.shape_cast %209 : vector<16x1xi1> to vector<16x1xi1>
    %213 = vector.broadcast %212 : vector<16x1xi1> to vector<16x8xi1>
    %214 = vector.broadcast %cst_75 : f32 to vector<16x8xf32>
    %215 = arith.select %213, %211, %214 : vector<16x8xi1>, vector<16x8xf32>
    %216 = tpu.concatenate %174, %215 in 1 : vector<16x8xf32>, vector<16x8xf32> -> vector<16x16xf32>
    %c0_76 = arith.constant 0 : index
    %c0_77 = arith.constant 0 : index
    %217 = vector.load %arg12[%c0_76, %c0_77] : memref<48x1xf32, #tpu.memory_space<vmem>>, vector<48x1xf32>
    %218 = vector.extract_strided_slice %217 {offsets = [0, 0], sizes = [16, 1], strides = [1, 1]} : vector<48x1xf32> to vector<16x1xf32>
    %cst_78 = arith.constant dense<0.000000e+00> : vector<16x1xf32>
    %219 = tpu.matmul %216, %218, %cst_78 {dimension_numbers = #tpu.dot_dimension_numbers<[1], [0], [0], [1], [0, 0, 1, 1], [], []>} : vector<16x16xf32>, vector<16x1xf32>, vector<16x1xf32> -> vector<16x1xf32>
    %220 = vector.extract_strided_slice %217 {offsets = [16, 0], sizes = [16, 1], strides = [1, 1]} : vector<48x1xf32> to vector<16x1xf32>
    %cst_79 = arith.constant dense<0.000000e+00> : vector<16x1xf32>
    %221 = tpu.matmul %130, %220, %cst_79 {dimension_numbers = #tpu.dot_dimension_numbers<[1], [0], [0], [1], [0, 0, 1, 1], [], []>} : vector<16x16xf32>, vector<16x1xf32>, vector<16x1xf32> -> vector<16x1xf32>
    %222 = arith.addf %219, %221 : vector<16x1xf32>
    %223 = arith.subf %216, %130 : vector<16x16xf32>
    %224 = vector.extract_strided_slice %217 {offsets = [32, 0], sizes = [16, 1], strides = [1, 1]} : vector<48x1xf32> to vector<16x1xf32>
    %cst_80 = arith.constant dense<0.000000e+00> : vector<16x1xf32>
    %225 = tpu.matmul %223, %224, %cst_80 {dimension_numbers = #tpu.dot_dimension_numbers<[1], [0], [0], [1], [0, 0, 1, 1], [], []>} : vector<16x16xf32>, vector<16x1xf32>, vector<16x1xf32> -> vector<16x1xf32>
    %226 = arith.addf %222, %225 : vector<16x1xf32>
    %227 = arith.negf %226 : vector<16x1xf32>
    %228 = math.exp %227 : vector<16x1xf32>
    %cst_81 = arith.constant 1.000000e+00 : f32
    %229 = vector.broadcast %cst_81 : f32 to vector<16x1xf32>
    %230 = arith.addf %229, %228 : vector<16x1xf32>
    %231 = arith.divf %229, %230 : vector<16x1xf32>
    %232 = vector.broadcast %231 : vector<16x1xf32> to vector<16x16xf32>
    %233 = arith.mulf %232, %130 : vector<16x16xf32>
    %cst_82 = arith.constant 1.000000e+00 : f32
    %234 = vector.broadcast %cst_82 : f32 to vector<16x1xf32>
    %235 = arith.subf %234, %231 : vector<16x1xf32>
    %236 = vector.broadcast %235 : vector<16x1xf32> to vector<16x16xf32>
    %237 = arith.mulf %236, %216 : vector<16x16xf32>
    %238 = arith.addf %233, %237 : vector<16x16xf32>
    %c0_83 = arith.constant 0 : index
    %c0_84 = arith.constant 0 : index
    %239 = vector.load %arg3[%c0_83, %c0_84] : memref<2x16xf32, #tpu.memory_space<vmem>>, vector<2x16xf32>
    %cst_85 = arith.constant dense<0.000000e+00> : vector<2x16xf32>
    %240 = tpu.matmul %239, %238, %cst_85 {dimension_numbers = #tpu.dot_dimension_numbers<[1], [0], [0], [1], [0, 0, 1, 1], [], []>} : vector<2x16xf32>, vector<16x16xf32>, vector<2x16xf32> -> vector<2x16xf32>
    %cst_86 = arith.constant dense<0.000000e+00> : vector<16x16xf32>
    %241 = tpu.matmul %0, %238, %cst_86 {dimension_numbers = #tpu.dot_dimension_numbers<[1], [0], [0], [1], [0, 0, 1, 1], [], []>} : vector<16x16xf32>, vector<16x16xf32>, vector<16x16xf32> -> vector<16x16xf32>
    %242 = arith.addf %241, %238 : vector<16x16xf32>
    %c0_87 = arith.constant 0 : index
    %c0_88 = arith.constant 0 : index
    %243 = vector.load %arg13[%c0_87, %c0_88] : memref<16x8xf32, #tpu.memory_space<vmem>>, vector<16x8xf32>
    %cst_89 = arith.constant dense<0.000000e+00> : vector<16x8xf32>
    %244 = tpu.matmul %242, %243, %cst_89 {dimension_numbers = #tpu.dot_dimension_numbers<[1], [0], [0], [1], [0, 0, 1, 1], [], []>} : vector<16x16xf32>, vector<16x8xf32>, vector<16x8xf32> -> vector<16x8xf32>
    %c0_90 = arith.constant 0 : index
    %c0_91 = arith.constant 0 : index
    %245 = vector.load %arg14[%c0_90, %c0_91] : memref<1x8xf32, #tpu.memory_space<vmem>>, vector<1x8xf32>
    %246 = vector.broadcast %245 : vector<1x8xf32> to vector<16x8xf32>
    %247 = arith.addf %244, %246 : vector<16x8xf32>
    %cst_92 = arith.constant 0.000000e+00 : f32
    %248 = vector.broadcast %cst_92 : f32 to vector<16x8xf32>
    %249 = arith.maximumf %247, %248 : vector<16x8xf32>
    %c0_93 = arith.constant 0 : index
    %c0_94 = arith.constant 0 : index
    %250 = vector.load %arg15[%c0_93, %c0_94] : memref<8x8xf32, #tpu.memory_space<vmem>>, vector<8x8xf32>
    %cst_95 = arith.constant dense<0.000000e+00> : vector<16x8xf32>
    %251 = tpu.matmul %249, %250, %cst_95 {dimension_numbers = #tpu.dot_dimension_numbers<[1], [0], [0], [1], [0, 0, 1, 1], [], []>} : vector<16x8xf32>, vector<8x8xf32>, vector<16x8xf32> -> vector<16x8xf32>
    %c0_96 = arith.constant 0 : index
    %c0_97 = arith.constant 0 : index
    %252 = vector.load %arg16[%c0_96, %c0_97] : memref<1x8xf32, #tpu.memory_space<vmem>>, vector<1x8xf32>
    %253 = vector.broadcast %252 : vector<1x8xf32> to vector<16x8xf32>
    %254 = arith.addf %251, %253 : vector<16x8xf32>
    %cst_98 = arith.constant dense<0.000000e+00> : vector<16x8xf32>
    %255 = tpu.matmul %0, %254, %cst_98 {dimension_numbers = #tpu.dot_dimension_numbers<[1], [0], [0], [1], [0, 0, 1, 1], [], []>} : vector<16x16xf32>, vector<16x8xf32>, vector<16x8xf32> -> vector<16x8xf32>
    %256 = arith.addf %255, %254 : vector<16x8xf32>
    %c0_99 = arith.constant 0 : index
    %c0_100 = arith.constant 0 : index
    %257 = vector.load %arg17[%c0_99, %c0_100] : memref<8x8xf32, #tpu.memory_space<vmem>>, vector<8x8xf32>
    %cst_101 = arith.constant dense<0.000000e+00> : vector<16x8xf32>
    %258 = tpu.matmul %256, %257, %cst_101 {dimension_numbers = #tpu.dot_dimension_numbers<[1], [0], [0], [1], [0, 0, 1, 1], [], []>} : vector<16x8xf32>, vector<8x8xf32>, vector<16x8xf32> -> vector<16x8xf32>
    %c0_102 = arith.constant 0 : index
    %c0_103 = arith.constant 0 : index
    %259 = vector.load %arg18[%c0_102, %c0_103] : memref<1x8xf32, #tpu.memory_space<vmem>>, vector<1x8xf32>
    %260 = vector.broadcast %259 : vector<1x8xf32> to vector<16x8xf32>
    %261 = arith.addf %258, %260 : vector<16x8xf32>
    %cst_104 = arith.constant 0.000000e+00 : f32
    %262 = vector.broadcast %cst_104 : f32 to vector<16x8xf32>
    %263 = arith.maximumf %261, %262 : vector<16x8xf32>
    %c0_105 = arith.constant 0 : index
    %c0_106 = arith.constant 0 : index
    %264 = vector.load %arg19[%c0_105, %c0_106] : memref<8x8xf32, #tpu.memory_space<vmem>>, vector<8x8xf32>
    %cst_107 = arith.constant dense<0.000000e+00> : vector<16x8xf32>
    %265 = tpu.matmul %263, %264, %cst_107 {dimension_numbers = #tpu.dot_dimension_numbers<[1], [0], [0], [1], [0, 0, 1, 1], [], []>} : vector<16x8xf32>, vector<8x8xf32>, vector<16x8xf32> -> vector<16x8xf32>
    %c0_108 = arith.constant 0 : index
    %c0_109 = arith.constant 0 : index
    %266 = vector.load %arg20[%c0_108, %c0_109] : memref<1x8xf32, #tpu.memory_space<vmem>>, vector<1x8xf32>
    %267 = vector.broadcast %266 : vector<1x8xf32> to vector<16x8xf32>
    %268 = arith.addf %265, %267 : vector<16x8xf32>
    %c0_110 = arith.constant 0 : index
    %c0_111 = arith.constant 0 : index
    %269 = vector.load %arg4[%c0_110, %c0_111] : memref<2x16xf32, #tpu.memory_space<vmem>>, vector<2x16xf32>
    %cst_112 = arith.constant dense<0.000000e+00> : vector<2x8xf32>
    %270 = tpu.matmul %269, %268, %cst_112 {dimension_numbers = #tpu.dot_dimension_numbers<[1], [0], [0], [1], [0, 0, 1, 1], [], []>} : vector<2x16xf32>, vector<16x8xf32>, vector<2x8xf32> -> vector<2x8xf32>
    %c0_113 = arith.constant 0 : index
    %c0_114 = arith.constant 0 : index
    %271 = vector.load %arg21[%c0_113, %c0_114] : memref<24x8xf32, #tpu.memory_space<vmem>>, vector<24x8xf32>
    %272 = vector.extract_strided_slice %271 {offsets = [0, 0], sizes = [16, 8], strides = [1, 1]} : vector<24x8xf32> to vector<16x8xf32>
    %cst_115 = arith.constant dense<0.000000e+00> : vector<2x8xf32>
    %273 = tpu.matmul %240, %272, %cst_115 {dimension_numbers = #tpu.dot_dimension_numbers<[1], [0], [0], [1], [0, 0, 1, 1], [], []>} : vector<2x16xf32>, vector<16x8xf32>, vector<2x8xf32> -> vector<2x8xf32>
    %274 = vector.extract_strided_slice %271 {offsets = [16, 0], sizes = [8, 8], strides = [1, 1]} : vector<24x8xf32> to vector<8x8xf32>
    %cst_116 = arith.constant dense<0.000000e+00> : vector<2x8xf32>
    %275 = tpu.matmul %270, %274, %cst_116 {dimension_numbers = #tpu.dot_dimension_numbers<[1], [0], [0], [1], [0, 0, 1, 1], [], []>} : vector<2x8xf32>, vector<8x8xf32>, vector<2x8xf32> -> vector<2x8xf32>
    %276 = arith.addf %273, %275 : vector<2x8xf32>
    %c0_117 = arith.constant 0 : index
    %c0_118 = arith.constant 0 : index
    %277 = vector.load %arg22[%c0_117, %c0_118] : memref<1x8xf32, #tpu.memory_space<vmem>>, vector<1x8xf32>
    %278 = vector.broadcast %277 : vector<1x8xf32> to vector<2x8xf32>
    %279 = arith.addf %276, %278 : vector<2x8xf32>
    %cst_119 = arith.constant 0.000000e+00 : f32
    %280 = vector.broadcast %cst_119 : f32 to vector<2x8xf32>
    %281 = arith.maximumf %279, %280 : vector<2x8xf32>
    %c0_120 = arith.constant 0 : index
    %c0_121 = arith.constant 0 : index
    %282 = vector.load %arg23[%c0_120, %c0_121] : memref<8x1xf32, #tpu.memory_space<vmem>>, vector<8x1xf32>
    %cst_122 = arith.constant dense<0.000000e+00> : vector<2x1xf32>
    %283 = tpu.matmul %281, %282, %cst_122 {dimension_numbers = #tpu.dot_dimension_numbers<[1], [0], [0], [1], [0, 0, 1, 1], [], []>} : vector<2x8xf32>, vector<8x1xf32>, vector<2x1xf32> -> vector<2x1xf32>
    %c0_123 = arith.constant 0 : index
    %c0_124 = arith.constant 0 : index
    %284 = vector.load %arg24[%c0_123, %c0_124] : memref<1x1xf32, #tpu.memory_space<vmem>>, vector<1x1xf32>
    %285 = vector.broadcast %284 : vector<1x1xf32> to vector<2x1xf32>
    %286 = arith.addf %283, %285 : vector<2x1xf32>
    %c0_125 = arith.constant 0 : index
    %c0_126 = arith.constant 0 : index
    %287 = vector.load %arg25[%c0_125, %c0_126] : memref<2x1xf32, #tpu.memory_space<vmem>>, vector<2x1xf32>
    tpu.vector_store %arg25[%c0_125, %c0_126], %286 {strides = array<i32>} : memref<2x1xf32, #tpu.memory_space<vmem>>, vector<2x1xf32>,
    return
  }
}

</mosaic_0001>

<llo_original>
// kernel: tpu_custom_call.1
$region0: #{tpu_custom_call.1}
  #allocation0 [shape = 'u32[]', space=smem, size = 0x4, offset = 0x4, fixed_abs, tag = 'smem constant byte address 0x4 - core index']
  #allocation1 [shape = 'u32[72,128]{1,0:T(1,128)}', space=vmem, size = 0x9000, scoped, tag = 'internal scratch']
  #allocation2 [shape = 'f32[1,1]{1,0:T(1,128)S(1)}', space=vmem, size = 0x200, scoped, tag = 'scoped memory for tpu_custom_call.1']
  %s0 = inlined_call_operand.vmem [shape: f32[16,8], index: 0, kind: input, shape index: {}]
  %s1 = inlined_call_operand.vmem [shape: f32[16,16], index: 1, kind: input, shape index: {}]
  %s2 = inlined_call_operand.vmem [shape: f32[256,4], index: 2, kind: input, shape index: {}]
  %s3 = inlined_call_operand.vmem [shape: f32[2,16], index: 3, kind: input, shape index: {}]
  %s4 = inlined_call_operand.vmem [shape: f32[2,16], index: 4, kind: input, shape index: {}]
  %s5 = inlined_call_operand.vmem [shape: f32[8,64], index: 5, kind: input, shape index: {}]
  %s6 = inlined_call_operand.vmem [shape: f32[1,64], index: 6, kind: input, shape index: {}]
  %s7 = inlined_call_operand.vmem [shape: f32[4,16], index: 7, kind: input, shape index: {}]
  %s8 = inlined_call_operand.vmem [shape: f32[48,1], index: 8, kind: input, shape index: {}]
  %s9 = inlined_call_operand.vmem [shape: f32[16,64], index: 9, kind: input, shape index: {}]
  %s10 = inlined_call_operand.vmem [shape: f32[1,64], index: 10, kind: input, shape index: {}]
  %s11 = inlined_call_operand.vmem [shape: f32[4,16], index: 11, kind: input, shape index: {}]
  %s12 = inlined_call_operand.vmem [shape: f32[48,1], index: 12, kind: input, shape index: {}]
  %s13 = inlined_call_operand.vmem [shape: f32[16,8], index: 13, kind: input, shape index: {}]
  %s14 = inlined_call_operand.vmem [shape: f32[1,8], index: 14, kind: input, shape index: {}]
  %s15 = inlined_call_operand.vmem [shape: f32[8,8], index: 15, kind: input, shape index: {}]
  %s16 = inlined_call_operand.vmem [shape: f32[1,8], index: 16, kind: input, shape index: {}]
  %s17 = inlined_call_operand.vmem [shape: f32[8,8], index: 17, kind: input, shape index: {}]
  %s18 = inlined_call_operand.vmem [shape: f32[1,8], index: 18, kind: input, shape index: {}]
  %s19 = inlined_call_operand.vmem [shape: f32[8,8], index: 19, kind: input, shape index: {}]
  %s20 = inlined_call_operand.vmem [shape: f32[1,8], index: 20, kind: input, shape index: {}]
  %s21 = inlined_call_operand.vmem [shape: f32[24,8], index: 21, kind: input, shape index: {}]
  %s22 = inlined_call_operand.vmem [shape: f32[1,8], index: 22, kind: input, shape index: {}]
  %s23 = inlined_call_operand.vmem [shape: f32[8,1], index: 23, kind: input, shape index: {}]
  %s24 = inlined_call_operand.<no memory space> [shape: f32[1,1], index: 24, kind: input, shape index: {}]
  %s25 = inlined_call_operand.vmem [shape: f32[2,1], index: 25, kind: output, shape index: {}]
  %s26 = sld [smem:[#allocation0]]
  $region110: #{tpu_custom_call.1} parent=0
    _
  %s28 = ssub.s32 1, %s26
  %s29 = scalar_select 0, %s28, %s26
  %v30 = vstv %s24
  %31 = vst [vmem:[#allocation2] sm:$0x1] %v30
  // Predicated region
  $region2: #{tpu_custom_call.1} parent=0 // pred_check
    _
  $region3: #{tpu_custom_call.1} parent=0 // pred_check_branch
    %33 = sbr.rel (0) target = $region5
  $region4: #{tpu_custom_call.1} parent=0 // pred_region
    _
  $region5: #{tpu_custom_call.1} parent=0 // pred_fallthru
    _
  // Predicated region
  $region6: #{tpu_custom_call.1} parent=0 // pred_check
    _
  $region7: #{tpu_custom_call.1} parent=0 // pred_check_branch
    %35 = sbr.rel (0) target = $region9
  $region8: #{tpu_custom_call.1} parent=0 // pred_region
    _
  $region9: #{tpu_custom_call.1} parent=0 // pred_fallthru
    _
  // Predicated region
  $region10: #{tpu_custom_call.1} parent=0 // pred_check
    _
  $region11: #{tpu_custom_call.1} parent=0 // pred_check_branch
    %37 = sbr.rel (0) target = $region13
  $region12: #{tpu_custom_call.1} parent=0 // pred_region
    _
  $region13: #{tpu_custom_call.1} parent=0 // pred_fallthru
    _
  // Predicated region
  $region14: #{tpu_custom_call.1} parent=0 // pred_check
    _
  $region15: #{tpu_custom_call.1} parent=0 // pred_check_branch
    %39 = sbr.rel (0) target = $region17
  $region16: #{tpu_custom_call.1} parent=0 // pred_region
    _
  $region17: #{tpu_custom_call.1} parent=0 // pred_fallthru
    _
  // Predicated region
  $region18: #{tpu_custom_call.1} parent=0 // pred_check
    _
  $region19: #{tpu_custom_call.1} parent=0 // pred_check_branch
    %41 = sbr.rel (0) target = $region21
  $region20: #{tpu_custom_call.1} parent=0 // pred_region
    _
  $region21: #{tpu_custom_call.1} parent=0 // pred_fallthru
    _
  // Predicated region
  $region22: #{tpu_custom_call.1} parent=0 // pred_check
    _
  $region23: #{tpu_custom_call.1} parent=0 // pred_check_branch
    %43 = sbr.rel (0) target = $region25
  $region24: #{tpu_custom_call.1} parent=0 // pred_region
    _
  $region25: #{tpu_custom_call.1} parent=0 // pred_fallthru
    _
  // Predicated region
  $region26: #{tpu_custom_call.1} parent=0 // pred_check
    _
  $region27: #{tpu_custom_call.1} parent=0 // pred_check_branch
    %45 = sbr.rel (0) target = $region29
  $region28: #{tpu_custom_call.1} parent=0 // pred_region
    _
  $region29: #{tpu_custom_call.1} parent=0 // pred_fallthru
    _
  // Predicated region
  $region30: #{tpu_custom_call.1} parent=0 // pred_check
    _
  $region31: #{tpu_custom_call.1} parent=0 // pred_check_branch
    %47 = sbr.rel (0) target = $region33
  $region32: #{tpu_custom_call.1} parent=0 // pred_region
    _
  $region33: #{tpu_custom_call.1} parent=0 // pred_fallthru
    _
  // Predicated region
  $region34: #{tpu_custom_call.1} parent=0 // pred_check
    _
  $region35: #{tpu_custom_call.1} parent=0 // pred_check_branch
    %49 = sbr.rel (0) target = $region37
  $region36: #{tpu_custom_call.1} parent=0 // pred_region
    _
  $region37: #{tpu_custom_call.1} parent=0 // pred_fallthru
    _
  // Predicated region
  $region38: #{tpu_custom_call.1} parent=0 // pred_check
    _
  $region39: #{tpu_custom_call.1} parent=0 // pred_check_branch
    %51 = sbr.rel (0) target = $region41
  $region40: #{tpu_custom_call.1} parent=0 // pred_region
    _
  $region41: #{tpu_custom_call.1} parent=0 // pred_fallthru
    _
  // Predicated region
  $region42: #{tpu_custom_call.1} parent=0 // pred_check
    _
  $region43: #{tpu_custom_call.1} parent=0 // pred_check_branch
    %53 = sbr.rel (0) target = $region45
  $region44: #{tpu_custom_call.1} parent=0 // pred_region
    _
  $region45: #{tpu_custom_call.1} parent=0 // pred_fallthru
    _
  // Predicated region
  $region46: #{tpu_custom_call.1} parent=0 // pred_check
    _
  $region47: #{tpu_custom_call.1} parent=0 // pred_check_branch
    %55 = sbr.rel (0) target = $region49
  $region48: #{tpu_custom_call.1} parent=0 // pred_region
    _
  $region49: #{tpu_custom_call.1} parent=0 // pred_fallthru
    _
  // Predicated region
  $region50: #{tpu_custom_call.1} parent=0 // pred_check
    _
  $region51: #{tpu_custom_call.1} parent=0 // pred_check_branch
    %57 = sbr.rel (0) target = $region53
  $region52: #{tpu_custom_call.1} parent=0 // pred_region
    _
  $region53: #{tpu_custom_call.1} parent=0 // pred_fallthru
    _
  // Predicated region
  $region54: #{tpu_custom_call.1} parent=0 // pred_check
    _
  $region55: #{tpu_custom_call.1} parent=0 // pred_check_branch
    %59 = sbr.rel (0) target = $region57
  $region56: #{tpu_custom_call.1} parent=0 // pred_region
    _
  $region57: #{tpu_custom_call.1} parent=0 // pred_fallthru
    _
  // Predicated region
  $region58: #{tpu_custom_call.1} parent=0 // pred_check
    _
  $region59: #{tpu_custom_call.1} parent=0 // pred_check_branch
    %61 = sbr.rel (0) target = $region61
  $region60: #{tpu_custom_call.1} parent=0 // pred_region
    _
  $region61: #{tpu_custom_call.1} parent=0 // pred_fallthru
    _
  // Predicated region
  $region62: #{tpu_custom_call.1} parent=0 // pred_check
    _
  $region63: #{tpu_custom_call.1} parent=0 // pred_check_branch
    %63 = sbr.rel (0) target = $region65
  $region64: #{tpu_custom_call.1} parent=0 // pred_region
    _
  $region65: #{tpu_custom_call.1} parent=0 // pred_fallthru
    _
  // Predicated region
  $region66: #{tpu_custom_call.1} parent=0 // pred_check
    _
  $region67: #{tpu_custom_call.1} parent=0 // pred_check_branch
    %65 = sbr.rel (0) target = $region69
  $region68: #{tpu_custom_call.1} parent=0 // pred_region
    _
  $region69: #{tpu_custom_call.1} parent=0 // pred_fallthru
    _
  // Predicated region
  $region70: #{tpu_custom_call.1} parent=0 // pred_check
    _
  $region71: #{tpu_custom_call.1} parent=0 // pred_check_branch
    %67 = sbr.rel (0) target = $region73
  $region72: #{tpu_custom_call.1} parent=0 // pred_region
    _
  $region73: #{tpu_custom_call.1} parent=0 // pred_fallthru
    _
  // Predicated region
  $region74: #{tpu_custom_call.1} parent=0 // pred_check
    _
  $region75: #{tpu_custom_call.1} parent=0 // pred_check_branch
    %69 = sbr.rel (0) target = $region77
  $region76: #{tpu_custom_call.1} parent=0 // pred_region
    _
  $region77: #{tpu_custom_call.1} parent=0 // pred_fallthru
    _
  // Predicated region
  $region78: #{tpu_custom_call.1} parent=0 // pred_check
    _
  $region79: #{tpu_custom_call.1} parent=0 // pred_check_branch
    %71 = sbr.rel (0) target = $region81
  $region80: #{tpu_custom_call.1} parent=0 // pred_region
    _
  $region81: #{tpu_custom_call.1} parent=0 // pred_fallthru
    _
  // Predicated region
  $region82: #{tpu_custom_call.1} parent=0 // pred_check
    _
  $region83: #{tpu_custom_call.1} parent=0 // pred_check_branch
    %73 = sbr.rel (0) target = $region85
  $region84: #{tpu_custom_call.1} parent=0 // pred_region
    _
  $region85: #{tpu_custom_call.1} parent=0 // pred_fallthru
    _
  // Predicated region
  $region86: #{tpu_custom_call.1} parent=0 // pred_check
    _
  $region87: #{tpu_custom_call.1} parent=0 // pred_check_branch
    %75 = sbr.rel (0) target = $region89
  $region88: #{tpu_custom_call.1} parent=0 // pred_region
    _
  $region89: #{tpu_custom_call.1} parent=0 // pred_fallthru
    _
  // Predicated region
  $region90: #{tpu_custom_call.1} parent=0 // pred_check
    _
  $region91: #{tpu_custom_call.1} parent=0 // pred_check_branch
    %77 = sbr.rel (0) target = $region93
  $region92: #{tpu_custom_call.1} parent=0 // pred_region
    _
  $region93: #{tpu_custom_call.1} parent=0 // pred_fallthru
    _
  // Predicated region
  $region94: #{tpu_custom_call.1} parent=0 // pred_check
    _
  $region95: #{tpu_custom_call.1} parent=0 // pred_check_branch
    %79 = sbr.rel (0) target = $region97
  $region96: #{tpu_custom_call.1} parent=0 // pred_region
    _
  $region97: #{tpu_custom_call.1} parent=0 // pred_fallthru
    _
  // Predicated region
  $region98: #{tpu_custom_call.1} parent=0 // pred_check
    _
  $region99: #{tpu_custom_call.1} parent=0 // pred_check_branch
    %81 = sbr.rel (0) target = $region101
  $region100: #{tpu_custom_call.1} parent=0 // pred_region
    _
  $region101: #{tpu_custom_call.1} parent=0 // pred_fallthru
    _
  %v82 = vld [vmem:[%s1] sm:$0xff]
  %v83 = vld [vmem:[%s1 + $0x8] sm:$0xff]
  %vm84 = vcmp.gt.f32.partialorder %v82, 0.0
  %vm85 = vcmp.gt.f32.partialorder %v83, 0.0
  %v86 = vld [vmem:[%s2] sm:$0xff]
  %v87 = vld [vmem:[%s2 + $0x8] sm:$0xff]
  %v88 = vld [vmem:[%s2 + $0x10] sm:$0xff]
  %v89 = vld [vmem:[%s2 + $0x18] sm:$0xff]
  %v90 = vld [vmem:[%s2 + $0x20] sm:$0xff]
  %v91 = vld [vmem:[%s2 + $0x28] sm:$0xff]
  %v92 = vld [vmem:[%s2 + $0x30] sm:$0xff]
  %v93 = vld [vmem:[%s2 + $0x38] sm:$0xff]
  %v94 = vld [vmem:[%s2 + $0x40] sm:$0xff]
  %v95 = vld [vmem:[%s2 + $0x48] sm:$0xff]
  %v96 = vld [vmem:[%s2 + $0x50] sm:$0xff]
  %v97 = vld [vmem:[%s2 + $0x58] sm:$0xff]
  %v98 = vld [vmem:[%s2 + $0x60] sm:$0xff]
  %v99 = vld [vmem:[%s2 + $0x68] sm:$0xff]
  %v100 = vld [vmem:[%s2 + $0x70] sm:$0xff]
  %v101 = vld [vmem:[%s2 + $0x78] sm:$0xff]
  %v102 = vld [vmem:[%s2 + $0x80] sm:$0xff]
  %v103 = vld [vmem:[%s2 + $0x88] sm:$0xff]
  %v104 = vld [vmem:[%s2 + $0x90] sm:$0xff]
  %v105 = vld [vmem:[%s2 + $0x98] sm:$0xff]
  %v106 = vld [vmem:[%s2 + $0xa0] sm:$0xff]
  %v107 = vld [vmem:[%s2 + $0xa8] sm:$0xff]
  %v108 = vld [vmem:[%s2 + $0xb0] sm:$0xff]
  %v109 = vld [vmem:[%s2 + $0xb8] sm:$0xff]
  %v110 = vld [vmem:[%s2 + $0xc0] sm:$0xff]
  %v111 = vld [vmem:[%s2 + $0xc8] sm:$0xff]
  %v112 = vld [vmem:[%s2 + $0xd0] sm:$0xff]
  %v113 = vld [vmem:[%s2 + $0xd8] sm:$0xff]
  %v114 = vld [vmem:[%s2 + $0xe0] sm:$0xff]
  %v115 = vld [vmem:[%s2 + $0xe8] sm:$0xff]
  %v116 = vld [vmem:[%s2 + $0xf0] sm:$0xff]
  %v117 = vld [vmem:[%s2 + $0xf8] sm:$0xff]
  %v118 = vld [vmem:[%s0] sm:$0xff]
  %v119 = vld [vmem:[%s0 + $0x8] sm:$0xff]
  %v120 = vld [vmem:[%s5] sm:$0xff]
  %v121 = vld [vmem:[%s6] sm:$0x1]
  %v123 = vperm.slane %v121, 0
  %vm125 = vcmask 64512
  %v127 = vsel %vm125, %v118, 0
  %v130 = vsel %vm125, %v119, 0
  %132 = vmatpush.msra.mxu0 0.0
  %133 = vmatpush.msra.mxu0 0.0
  %134 = vmatpush.msra.mxu0 0.0
  %135 = vmatpush.msra.mxu0 0.0
  %136 = vmatpush.msra.mxu0 0.0
  %137 = vmatpush.msra.mxu0 0.0
  %138 = vmatpush.msra.mxu0 0.0
  %139 = vmatpush.msra.mxu0 0.0
  %140 = vmatpush.msra.mxu0 0.0
  %141 = vmatpush.msra.mxu0 0.0
  %142 = vmatpush.msra.mxu0 0.0
  %143 = vmatpush.msra.mxu0 0.0
  %144 = vmatpush.msra.mxu0 0.0
  %145 = vmatpush.msra.mxu0 0.0
  %146 = vmatpush.msra.mxu0 0.0
  %147 = vmatpush.msra.mxu0 %v120
  %148 = vmatmul.f32.gmra.mxu0 %v127
  %v149 = vpop.f32.mrf.mxu0
  %v150 = vadd.f32 %v123, %v149
  %151 = vmatmul.f32.gmra.mxu0 %v130
  %v152 = vpop.f32.mrf.mxu0
  %v153 = vadd.f32 %v123, %v152
  %154 = vdwg.mxu0
  %v155 = vld [vmem:[%s7] sm:$0xf]
  %vm156 = vcmask 31744
  %v158 = vsel %vm156, %v86, 0
  %v161 = vsel %vm156, %v87, 0
  %v164 = vsel %vm156, %v88, 0
  %v167 = vsel %vm156, %v89, 0
  %v170 = vsel %vm156, %v90, 0
  %v173 = vsel %vm156, %v91, 0
  %v176 = vsel %vm156, %v92, 0
  %v179 = vsel %vm156, %v93, 0
  %v182 = vsel %vm156, %v94, 0
  %v185 = vsel %vm156, %v95, 0
  %v188 = vsel %vm156, %v96, 0
  %v191 = vsel %vm156, %v97, 0
  %v194 = vsel %vm156, %v98, 0
  %v197 = vsel %vm156, %v99, 0
  %v200 = vsel %vm156, %v100, 0
  %v203 = vsel %vm156, %v101, 0
  %v206 = vsel %vm156, %v102, 0
  %v209 = vsel %vm156, %v103, 0
  %v212 = vsel %vm156, %v104, 0
  %v215 = vsel %vm156, %v105, 0
  %v218 = vsel %vm156, %v106, 0
  %v221 = vsel %vm156, %v107, 0
  %v224 = vsel %vm156, %v108, 0
  %v227 = vsel %vm156, %v109, 0
  %v230 = vsel %vm156, %v110, 0
  %v233 = vsel %vm156, %v111, 0
  %v236 = vsel %vm156, %v112, 0
  %v239 = vsel %vm156, %v113, 0
  %v242 = vsel %vm156, %v114, 0
  %v245 = vsel %vm156, %v115, 0
  %v248 = vsel %vm156, %v116, 0
  %v251 = vsel %vm156, %v117, 0
  %vm253 = vcmask 1043456
  %v255 = vsel %vm253, %v155, 0
  %257 = vmatpush.msra.mxu0 0.0
  %258 = vmatpush.msra.mxu0 0.0
  %259 = vmatpush.msra.mxu0 0.0
  %260 = vmatpush.msra.mxu0 0.0
  %261 = vmatpush.msra.mxu0 0.0
  %262 = vmatpush.msra.mxu0 0.0
  %263 = vmatpush.msra.mxu0 0.0
  %264 = vmatpush.msra.mxu0 0.0
  %265 = vmatpush.msra.mxu0 0.0
  %266 = vmatpush.msra.mxu0 0.0
  %267 = vmatpush.msra.mxu0 0.0
  %268 = vmatpush.msra.mxu0 0.0
  %269 = vmatpush.msra.mxu0 0.0
  %270 = vmatpush.msra.mxu0 0.0
  %271 = vmatpush.msra.mxu0 0.0
  %272 = vmatpush.msra.mxu0 %v255
  %273 = vmatmul.f32.gmra.mxu0 %v158
  %v274 = vpop.f32.mrf.mxu0
  %v275 = vadd.f32 0.0, %v274
  %276 = vmatmul.f32.gmra.mxu0 %v161
  %v277 = vpop.f32.mrf.mxu0
  %v278 = vadd.f32 0.0, %v277
  %279 = vmatmul.f32.gmra.mxu0 %v164
  %v280 = vpop.f32.mrf.mxu0
  %v281 = vadd.f32 0.0, %v280
  %282 = vmatmul.f32.gmra.mxu0 %v167
  %v283 = vpop.f32.mrf.mxu0
  %v284 = vadd.f32 0.0, %v283
  %285 = vmatmul.f32.gmra.mxu0 %v170
  %v286 = vpop.f32.mrf.mxu0
  %v287 = vadd.f32 0.0, %v286
  %288 = vmatmul.f32.gmra.mxu0 %v173
  %v289 = vpop.f32.mrf.mxu0
  %v290 = vadd.f32 0.0, %v289
  %291 = vmatmul.f32.gmra.mxu0 %v176
  %v292 = vpop.f32.mrf.mxu0
  %v293 = vadd.f32 0.0, %v292
  %294 = vmatmul.f32.gmra.mxu0 %v179
  %v295 = vpop.f32.mrf.mxu0
  %v296 = vadd.f32 0.0, %v295
  %297 = vmatmul.f32.gmra.mxu0 %v182
  %v298 = vpop.f32.mrf.mxu0
  %v299 = vadd.f32 0.0, %v298
  %300 = vmatmul.f32.gmra.mxu0 %v185
  %v301 = vpop.f32.mrf.mxu0
  %v302 = vadd.f32 0.0, %v301
  %303 = vmatmul.f32.gmra.mxu0 %v188
  %v304 = vpop.f32.mrf.mxu0
  %v305 = vadd.f32 0.0, %v304
  %306 = vmatmul.f32.gmra.mxu0 %v191
  %v307 = vpop.f32.mrf.mxu0
  %v308 = vadd.f32 0.0, %v307
  %309 = vmatmul.f32.gmra.mxu0 %v194
  %v310 = vpop.f32.mrf.mxu0
  %v311 = vadd.f32 0.0, %v310
  %312 = vmatmul.f32.gmra.mxu0 %v197
  %v313 = vpop.f32.mrf.mxu0
  %v314 = vadd.f32 0.0, %v313
  %315 = vmatmul.f32.gmra.mxu0 %v200
  %v316 = vpop.f32.mrf.mxu0
  %v317 = vadd.f32 0.0, %v316
  %318 = vmatmul.f32.gmra.mxu0 %v203
  %v319 = vpop.f32.mrf.mxu0
  %v320 = vadd.f32 0.0, %v319
  %321 = vmatmul.f32.gmra.mxu0 %v206
  %v322 = vpop.f32.mrf.mxu0
  %v323 = vadd.f32 0.0, %v322
  %324 = vmatmul.f32.gmra.mxu0 %v209
  %v325 = vpop.f32.mrf.mxu0
  %v326 = vadd.f32 0.0, %v325
  %327 = vmatmul.f32.gmra.mxu0 %v212
  %v328 = vpop.f32.mrf.mxu0
  %v329 = vadd.f32 0.0, %v328
  %330 = vmatmul.f32.gmra.mxu0 %v215
  %v331 = vpop.f32.mrf.mxu0
  %v332 = vadd.f32 0.0, %v331
  %333 = vmatmul.f32.gmra.mxu0 %v218
  %v334 = vpop.f32.mrf.mxu0
  %v335 = vadd.f32 0.0, %v334
  %336 = vmatmul.f32.gmra.mxu0 %v221
  %v337 = vpop.f32.mrf.mxu0
  %v338 = vadd.f32 0.0, %v337
  %339 = vmatmul.f32.gmra.mxu0 %v224
  %v340 = vpop.f32.mrf.mxu0
  %v341 = vadd.f32 0.0, %v340
  %342 = vmatmul.f32.gmra.mxu0 %v227
  %v343 = vpop.f32.mrf.mxu0
  %v344 = vadd.f32 0.0, %v343
  %345 = vmatmul.f32.gmra.mxu0 %v230
  %v346 = vpop.f32.mrf.mxu0
  %v347 = vadd.f32 0.0, %v346
  %348 = vmatmul.f32.gmra.mxu0 %v233
  %v349 = vpop.f32.mrf.mxu0
  %v350 = vadd.f32 0.0, %v349
  %351 = vmatmul.f32.gmra.mxu0 %v236
  %v352 = vpop.f32.mrf.mxu0
  %v353 = vadd.f32 0.0, %v352
  %354 = vmatmul.f32.gmra.mxu0 %v239
  %v355 = vpop.f32.mrf.mxu0
  %v356 = vadd.f32 0.0, %v355
  %357 = vmatmul.f32.gmra.mxu0 %v242
  %v358 = vpop.f32.mrf.mxu0
  %v359 = vadd.f32 0.0, %v358
  %360 = vmatmul.f32.gmra.mxu0 %v245
  %v361 = vpop.f32.mrf.mxu0
  %v362 = vadd.f32 0.0, %v361
  %363 = vmatmul.f32.gmra.mxu0 %v248
  %v364 = vpop.f32.mrf.mxu0
  %v365 = vadd.f32 0.0, %v364
  %366 = vmatmul.f32.gmra.mxu0 %v251
  %v367 = vpop.f32.mrf.mxu0
  %v368 = vadd.f32 0.0, %v367
  %369 = vdwg.mxu0
  %v372 = vrot.slane %v150, 1
  %v373 = vrot.slane %v150, 2
  %v374 = vrot.slane %v150, 3
  %v375 = vrot.slane %v150, 4
  %v376 = vrot.slane %v150, 5
  %v377 = vrot.slane %v150, 6
  %v378 = vrot.slane %v150, 7
  %v379 = vrot.slane %v153, 1
  %v380 = vrot.slane %v153, 2
  %v381 = vrot.slane %v153, 3
  %v382 = vrot.slane %v153, 4
  %v383 = vrot.slane %v153, 5
  %v384 = vrot.slane %v153, 6
  %v385 = vrot.slane %v153, 7
  %v386 = vperm.slane %v150, 0
  %v387 = vperm.slane %v372, 0
  %v388 = vperm.slane %v373, 0
  %v389 = vperm.slane %v374, 0
  %v390 = vperm.slane %v375, 0
  %v391 = vperm.slane %v376, 0
  %v392 = vperm.slane %v377, 0
  %v393 = vperm.slane %v378, 0
  %v394 = vperm.slane %v153, 0
  %v395 = vperm.slane %v379, 0
  %v396 = vperm.slane %v380, 0
  %v397 = vperm.slane %v381, 0
  %v398 = vperm.slane %v382, 0
  %v399 = vperm.slane %v383, 0
  %v400 = vperm.slane %v384, 0
  %v401 = vperm.slane %v385, 0
  %v418 = vmul.f32 %v386, %v275
  %v419 = vmul.f32 %v386, %v278
  %v420 = vmul.f32 %v387, %v281
  %v421 = vmul.f32 %v387, %v284
  %v422 = vmul.f32 %v388, %v287
  %v423 = vmul.f32 %v388, %v290
  %v424 = vmul.f32 %v389, %v293
  %v425 = vmul.f32 %v389, %v296
  %v426 = vmul.f32 %v390, %v299
  %v427 = vmul.f32 %v390, %v302
  %v428 = vmul.f32 %v391, %v305
  %v429 = vmul.f32 %v391, %v308
  %v430 = vmul.f32 %v392, %v311
  %v431 = vmul.f32 %v392, %v314
  %v432 = vmul.f32 %v393, %v317
  %v433 = vmul.f32 %v393, %v320
  %v434 = vmul.f32 %v394, %v323
  %v435 = vmul.f32 %v394, %v326
  %v436 = vmul.f32 %v395, %v329
  %v437 = vmul.f32 %v395, %v332
  %v438 = vmul.f32 %v396, %v335
  %v439 = vmul.f32 %v396, %v338
  %v440 = vmul.f32 %v397, %v341
  %v441 = vmul.f32 %v397, %v344
  %v442 = vmul.f32 %v398, %v347
  %v443 = vmul.f32 %v398, %v350
  %v444 = vmul.f32 %v399, %v353
  %v445 = vmul.f32 %v399, %v356
  %v446 = vmul.f32 %v400, %v359
  %v447 = vmul.f32 %v400, %v362
  %v448 = vmul.f32 %v401, %v365
  %v449 = vmul.f32 %v401, %v368
  %v450 = vsel %vm125, %v418, 0.0
  %451 = vadd.xlane.f32.xlu0 %v450
  %v452 = vpop.xlane.xlu0 %451
  %v453 = vsel %vm125, %v419, 0.0
  %454 = vadd.xlane.f32.xlu0 %v453
  %v455 = vpop.xlane.xlu0 %454
  %v456 = vsel %vm125, %v420, 0.0
  %457 = vadd.xlane.f32.xlu0 %v456
  %v458 = vpop.xlane.xlu0 %457
  %v459 = vsel %vm125, %v421, 0.0
  %460 = vadd.xlane.f32.xlu0 %v459
  %v461 = vpop.xlane.xlu0 %460
  %v462 = vsel %vm125, %v422, 0.0
  %463 = vadd.xlane.f32.xlu0 %v462
  %v464 = vpop.xlane.xlu0 %463
  %v465 = vsel %vm125, %v423, 0.0
  %466 = vadd.xlane.f32.xlu0 %v465
  %v467 = vpop.xlane.xlu0 %466
  %v468 = vsel %vm125, %v424, 0.0
  %469 = vadd.xlane.f32.xlu0 %v468
  %v470 = vpop.xlane.xlu0 %469
  %v471 = vsel %vm125, %v425, 0.0
  %472 = vadd.xlane.f32.xlu0 %v471
  %v473 = vpop.xlane.xlu0 %472
  %v474 = vsel %vm125, %v426, 0.0
  %475 = vadd.xlane.f32.xlu0 %v474
  %v476 = vpop.xlane.xlu0 %475
  %v477 = vsel %vm125, %v427, 0.0
  %478 = vadd.xlane.f32.xlu0 %v477
  %v479 = vpop.xlane.xlu0 %478
  %v480 = vsel %vm125, %v428, 0.0
  %481 = vadd.xlane.f32.xlu0 %v480
  %v482 = vpop.xlane.xlu0 %481
  %v483 = vsel %vm125, %v429, 0.0
  %484 = vadd.xlane.f32.xlu0 %v483
  %v485 = vpop.xlane.xlu0 %484
  %v486 = vsel %vm125, %v430, 0.0
  %487 = vadd.xlane.f32.xlu0 %v486
  %v488 = vpop.xlane.xlu0 %487
  %v489 = vsel %vm125, %v431, 0.0
  %490 = vadd.xlane.f32.xlu0 %v489
  %v491 = vpop.xlane.xlu0 %490
  %v492 = vsel %vm125, %v432, 0.0
  %493 = vadd.xlane.f32.xlu0 %v492
  %v494 = vpop.xlane.xlu0 %493
  %v495 = vsel %vm125, %v433, 0.0
  %496 = vadd.xlane.f32.xlu0 %v495
  %v497 = vpop.xlane.xlu0 %496
  %v498 = vsel %vm125, %v434, 0.0
  %499 = vadd.xlane.f32.xlu0 %v498
  %v500 = vpop.xlane.xlu0 %499
  %v501 = vsel %vm125, %v435, 0.0
  %502 = vadd.xlane.f32.xlu0 %v501
  %v503 = vpop.xlane.xlu0 %502
  %v504 = vsel %vm125, %v436, 0.0
  %505 = vadd.xlane.f32.xlu0 %v504
  %v506 = vpop.xlane.xlu0 %505
  %v507 = vsel %vm125, %v437, 0.0
  %508 = vadd.xlane.f32.xlu0 %v507
  %v509 = vpop.xlane.xlu0 %508
  %v510 = vsel %vm125, %v438, 0.0
  %511 = vadd.xlane.f32.xlu0 %v510
  %v512 = vpop.xlane.xlu0 %511
  %v513 = vsel %vm125, %v439, 0.0
  %514 = vadd.xlane.f32.xlu0 %v513
  %v515 = vpop.xlane.xlu0 %514
  %v516 = vsel %vm125, %v440, 0.0
  %517 = vadd.xlane.f32.xlu0 %v516
  %v518 = vpop.xlane.xlu0 %517
  %v519 = vsel %vm125, %v441, 0.0
  %520 = vadd.xlane.f32.xlu0 %v519
  %v521 = vpop.xlane.xlu0 %520
  %v522 = vsel %vm125, %v442, 0.0
  %523 = vadd.xlane.f32.xlu0 %v522
  %v524 = vpop.xlane.xlu0 %523
  %v525 = vsel %vm125, %v443, 0.0
  %526 = vadd.xlane.f32.xlu0 %v525
  %v527 = vpop.xlane.xlu0 %526
  %v528 = vsel %vm125, %v444, 0.0
  %529 = vadd.xlane.f32.xlu0 %v528
  %v530 = vpop.xlane.xlu0 %529
  %v531 = vsel %vm125, %v445, 0.0
  %532 = vadd.xlane.f32.xlu0 %v531
  %v533 = vpop.xlane.xlu0 %532
  %v534 = vsel %vm125, %v446, 0.0
  %535 = vadd.xlane.f32.xlu0 %v534
  %v536 = vpop.xlane.xlu0 %535
  %v537 = vsel %vm125, %v447, 0.0
  %538 = vadd.xlane.f32.xlu0 %v537
  %v539 = vpop.xlane.xlu0 %538
  %v540 = vsel %vm125, %v448, 0.0
  %541 = vadd.xlane.f32.xlu0 %v540
  %v542 = vpop.xlane.xlu0 %541
  %v543 = vsel %vm125, %v449, 0.0
  %544 = vadd.xlane.f32.xlu0 %v543
  %v545 = vpop.xlane.xlu0 %544
  %546 = vrot.lane.b32.xlu0 %v150, 112
  %v547 = vpop.permute.xlu0 %546
  %548 = vrot.lane.b32.xlu0 %v153, 112
  %v549 = vpop.permute.xlu0 %548
  %v582 = vlaneseq
  %v583 = vand.u32 %v582, 127
  %v584 = vperm.slane %v452, %v583
  %v585 = vadd.s32 %v583, 4294967288
  %v586 = vperm.slane %v455, %v585
  %vm587 = vcmask 130112
  %v588 = vsel %vm587, %v586, %v584
  %v589 = vperm.slane %v458, %v583
  %v590 = vperm.slane %v461, %v585
  %v591 = vsel %vm587, %v590, %v589
  %v592 = vperm.slane %v464, %v583
  %v593 = vperm.slane %v467, %v585
  %v594 = vsel %vm587, %v593, %v592
  %v595 = vperm.slane %v470, %v583
  %v596 = vperm.slane %v473, %v585
  %v597 = vsel %vm587, %v596, %v595
  %v598 = vperm.slane %v476, %v583
  %v599 = vperm.slane %v479, %v585
  %v600 = vsel %vm587, %v599, %v598
  %v601 = vperm.slane %v482, %v583
  %v602 = vperm.slane %v485, %v585
  %v603 = vsel %vm587, %v602, %v601
  %v604 = vperm.slane %v488, %v583
  %v605 = vperm.slane %v491, %v585
  %v606 = vsel %vm587, %v605, %v604
  %v607 = vperm.slane %v494, %v583
  %v608 = vperm.slane %v497, %v585
  %v609 = vsel %vm587, %v608, %v607
  %v610 = vperm.slane %v500, %v583
  %v611 = vperm.slane %v503, %v585
  %v612 = vsel %vm587, %v611, %v610
  %v613 = vperm.slane %v506, %v583
  %v614 = vperm.slane %v509, %v585
  %v615 = vsel %vm587, %v614, %v613
  %v616 = vperm.slane %v512, %v583
  %v617 = vperm.slane %v515, %v585
  %v618 = vsel %vm587, %v617, %v616
  %v619 = vperm.slane %v518, %v583
  %v620 = vperm.slane %v521, %v585
  %v621 = vsel %vm587, %v620, %v619
  %v622 = vperm.slane %v524, %v583
  %v623 = vperm.slane %v527, %v585
  %v624 = vsel %vm587, %v623, %v622
  %v625 = vperm.slane %v530, %v583
  %v626 = vperm.slane %v533, %v585
  %v627 = vsel %vm587, %v626, %v625
  %v628 = vperm.slane %v536, %v583
  %v629 = vperm.slane %v539, %v585
  %v630 = vsel %vm587, %v629, %v628
  %v631 = vperm.slane %v542, %v583
  %v632 = vperm.slane %v545, %v585
  %v633 = vsel %vm587, %v632, %v631
  %vm634 = vcmask 1041409
  %v635 = vsel %vm634, %v591, %v588
  %vm636 = vcmask 1042434
  %v637 = vsel %vm636, %v594, %v635
  %vm638 = vcmask 1043459
  %v639 = vsel %vm638, %v597, %v637
  %vm640 = vcmask 1044484
  %v641 = vsel %vm640, %v600, %v639
  %vm642 = vcmask 1045509
  %v643 = vsel %vm642, %v603, %v641
  %vm644 = vcmask 1046534
  %v645 = vsel %vm644, %v606, %v643
  %vm646 = vcmask 1047559
  %v647 = vsel %vm646, %v609, %v645
  %v648 = vsel %vm634, %v615, %v612
  %v649 = vsel %vm636, %v618, %v648
  %v650 = vsel %vm638, %v621, %v649
  %v651 = vsel %vm640, %v624, %v650
  %v652 = vsel %vm642, %v627, %v651
  %v653 = vsel %vm644, %v630, %v652
  %v654 = vsel %vm646, %v633, %v653
  %v657 = vsel %vm125, %v150, 0
  %v659 = vsel %vm125, %v153, 0
  %v661 = vsel %vm125, %v547, 0
  %v663 = vsel %vm125, %v549, 0
  %665 = vmatpush.xpose.msra.mxu0 0.0
  %666 = vmatpush.xpose.msra.mxu0 0.0
  %667 = vmatpush.xpose.msra.mxu0 0.0
  %668 = vmatpush.xpose.msra.mxu0 0.0
  %669 = vmatpush.xpose.msra.mxu0 0.0
  %670 = vmatpush.xpose.msra.mxu0 0.0
  %671 = vmatpush.xpose.msra.mxu0 0.0
  %672 = vmatpush.xpose.msra.mxu0 0.0
  %673 = vmatpush.xpose.msra.mxu0 0.0
  %674 = vmatpush.xpose.msra.mxu0 0.0
  %675 = vmatpush.xpose.msra.mxu0 0.0
  %676 = vmatpush.xpose.msra.mxu0 0.0
  %677 = vmatpush.xpose.msra.mxu0 0.0
  %678 = vmatpush.xpose.msra.mxu0 0.0
  %679 = vmatpush.xpose.msra.mxu0 %v663
  %680 = vmatpush.xpose.msra.mxu0 %v661
  %681 = vmatmul.f32.gmra.mxu0 %v657
  %v682 = vpop.f32.mrf.mxu0
  %v683 = vadd.f32 %v647, %v682
  %684 = vmatmul.f32.gmra.mxu0 %v659
  %v685 = vpop.f32.mrf.mxu0
  %v686 = vadd.f32 %v654, %v685
  %687 = vdwg.mxu0
  %v688 = vmul.f32 %v683, 0.35355338
  %v689 = vmul.f32 %v686, 0.35355338
  %v690 = vsel %vm84, %v688, -1e+30
  %v691 = vsel %vm85, %v689, -1e+30
  %vm692 = vcmask 130048
  %v693 = vsel %vm692, %v690, -inf
  %694 = vmax.xlane.f32.xlu0 %v693
  %v695 = vpop.xlane.xlu0 %694
  %v696 = vsel %vm692, %v691, -inf
  %697 = vmax.xlane.f32.xlu0 %v696
  %v698 = vpop.xlane.xlu0 %697
  %v699 = vsub.f32 %v690, %v695
  %v700 = vsub.f32 %v691, %v698
  %v701 = vmul.f32 %v699, 1.442695
  %v702 = vpow.pop %v701
  %v703 = vmul.f32 %v700, 1.442695
  %v704 = vpow.pop %v703
  %v705 = vmul.f32 %v702, %v82
  %v706 = vmul.f32 %v704, %v83
  %v707 = vsel %vm692, %v705, 0.0
  %708 = vadd.xlane.f32.xlu0 %v707
  %v709 = vpop.xlane.xlu0 %708
  %v710 = vsel %vm692, %v706, 0.0
  %711 = vadd.xlane.f32.xlu0 %v710
  %v712 = vpop.xlane.xlu0 %711
  %v713 = vperm.slane %v705, 0
  %v714 = vlaneseq
  %v715 = vshrl.u32 %v714, 7
  %717 = vset.pattern.permute.xlu0 %v715
  %718 = vperm.xlu0 %717, %v713
  %v719 = vpop.permute.xlu0 %718
  %v720 = vlaneseq
  %v721 = vshrl.u32 %v720, 7
  %v722 = vadd.s32 %v721, 8
  %723 = vset.pattern.permute.xlu0 %v722
  %724 = vperm.xlu0 %723, %v713
  %v725 = vpop.permute.xlu0 %724
  %v726 = vperm.slane %v705, 1
  %v727 = vlaneseq
  %v728 = vshrl.u32 %v727, 7
  %730 = vset.pattern.permute.xlu0 %v728
  %731 = vperm.xlu0 %730, %v726
  %v732 = vpop.permute.xlu0 %731
  %v733 = vlaneseq
  %v734 = vshrl.u32 %v733, 7
  %v735 = vadd.s32 %v734, 8
  %736 = vset.pattern.permute.xlu0 %v735
  %737 = vperm.xlu0 %736, %v726
  %v738 = vpop.permute.xlu0 %737
  %v739 = vperm.slane %v705, 2
  %v740 = vlaneseq
  %v741 = vshrl.u32 %v740, 7
  %743 = vset.pattern.permute.xlu0 %v741
  %744 = vperm.xlu0 %743, %v739
  %v745 = vpop.permute.xlu0 %744
  %v746 = vlaneseq
  %v747 = vshrl.u32 %v746, 7
  %v748 = vadd.s32 %v747, 8
  %749 = vset.pattern.permute.xlu0 %v748
  %750 = vperm.xlu0 %749, %v739
  %v751 = vpop.permute.xlu0 %750
  %v752 = vperm.slane %v705, 3
  %v753 = vlaneseq
  %v754 = vshrl.u32 %v753, 7
  %756 = vset.pattern.permute.xlu0 %v754
  %757 = vperm.xlu0 %756, %v752
  %v758 = vpop.permute.xlu0 %757
  %v759 = vlaneseq
  %v760 = vshrl.u32 %v759, 7
  %v761 = vadd.s32 %v760, 8
  %762 = vset.pattern.permute.xlu0 %v761
  %763 = vperm.xlu0 %762, %v752
  %v764 = vpop.permute.xlu0 %763
  %v765 = vperm.slane %v705, 4
  %v766 = vlaneseq
  %v767 = vshrl.u32 %v766, 7
  %769 = vset.pattern.permute.xlu0 %v767
  %770 = vperm.xlu0 %769, %v765
  %v771 = vpop.permute.xlu0 %770
  %v772 = vlaneseq
  %v773 = vshrl.u32 %v772, 7
  %v774 = vadd.s32 %v773, 8
  %775 = vset.pattern.permute.xlu0 %v774
  %776 = vperm.xlu0 %775, %v765
  %v777 = vpop.permute.xlu0 %776
  %v778 = vperm.slane %v705, 5
  %v779 = vlaneseq
  %v780 = vshrl.u32 %v779, 7
  %782 = vset.pattern.permute.xlu0 %v780
  %783 = vperm.xlu0 %782, %v778
  %v784 = vpop.permute.xlu0 %783
  %v785 = vlaneseq
  %v786 = vshrl.u32 %v785, 7
  %v787 = vadd.s32 %v786, 8
  %788 = vset.pattern.permute.xlu0 %v787
  %789 = vperm.xlu0 %788, %v778
  %v790 = vpop.permute.xlu0 %789
  %v791 = vperm.slane %v705, 6
  %v792 = vlaneseq
  %v793 = vshrl.u32 %v792, 7
  %795 = vset.pattern.permute.xlu0 %v793
  %796 = vperm.xlu0 %795, %v791
  %v797 = vpop.permute.xlu0 %796
  %v798 = vlaneseq
  %v799 = vshrl.u32 %v798, 7
  %v800 = vadd.s32 %v799, 8
  %801 = vset.pattern.permute.xlu0 %v800
  %802 = vperm.xlu0 %801, %v791
  %v803 = vpop.permute.xlu0 %802
  %v804 = vperm.slane %v705, 7
  %v805 = vlaneseq
  %v806 = vshrl.u32 %v805, 7
  %808 = vset.pattern.permute.xlu0 %v806
  %809 = vperm.xlu0 %808, %v804
  %v810 = vpop.permute.xlu0 %809
  %v811 = vlaneseq
  %v812 = vshrl.u32 %v811, 7
  %v813 = vadd.s32 %v812, 8
  %814 = vset.pattern.permute.xlu0 %v813
  %815 = vperm.xlu0 %814, %v804
  %v816 = vpop.permute.xlu0 %815
  %v817 = vperm.slane %v706, 0
  %v818 = vlaneseq
  %v819 = vshrl.u32 %v818, 7
  %821 = vset.pattern.permute.xlu0 %v819
  %822 = vperm.xlu0 %821, %v817
  %v823 = vpop.permute.xlu0 %822
  %v824 = vlaneseq
  %v825 = vshrl.u32 %v824, 7
  %v826 = vadd.s32 %v825, 8
  %827 = vset.pattern.permute.xlu0 %v826
  %828 = vperm.xlu0 %827, %v817
  %v829 = vpop.permute.xlu0 %828
  %v830 = vperm.slane %v706, 1
  %v831 = vlaneseq
  %v832 = vshrl.u32 %v831, 7
  %834 = vset.pattern.permute.xlu0 %v832
  %835 = vperm.xlu0 %834, %v830
  %v836 = vpop.permute.xlu0 %835
  %v837 = vlaneseq
  %v838 = vshrl.u32 %v837, 7
  %v839 = vadd.s32 %v838, 8
  %840 = vset.pattern.permute.xlu0 %v839
  %841 = vperm.xlu0 %840, %v830
  %v842 = vpop.permute.xlu0 %841
  %v843 = vperm.slane %v706, 2
  %v844 = vlaneseq
  %v845 = vshrl.u32 %v844, 7
  %847 = vset.pattern.permute.xlu0 %v845
  %848 = vperm.xlu0 %847, %v843
  %v849 = vpop.permute.xlu0 %848
  %v850 = vlaneseq
  %v851 = vshrl.u32 %v850, 7
  %v852 = vadd.s32 %v851, 8
  %853 = vset.pattern.permute.xlu0 %v852
  %854 = vperm.xlu0 %853, %v843
  %v855 = vpop.permute.xlu0 %854
  %v856 = vperm.slane %v706, 3
  %v857 = vlaneseq
  %v858 = vshrl.u32 %v857, 7
  %860 = vset.pattern.permute.xlu0 %v858
  %861 = vperm.xlu0 %860, %v856
  %v862 = vpop.permute.xlu0 %861
  %v863 = vlaneseq
  %v864 = vshrl.u32 %v863, 7
  %v865 = vadd.s32 %v864, 8
  %866 = vset.pattern.permute.xlu0 %v865
  %867 = vperm.xlu0 %866, %v856
  %v868 = vpop.permute.xlu0 %867
  %v869 = vperm.slane %v706, 4
  %v870 = vlaneseq
  %v871 = vshrl.u32 %v870, 7
  %873 = vset.pattern.permute.xlu0 %v871
  %874 = vperm.xlu0 %873, %v869
  %v875 = vpop.permute.xlu0 %874
  %v876 = vlaneseq
  %v877 = vshrl.u32 %v876, 7
  %v878 = vadd.s32 %v877, 8
  %879 = vset.pattern.permute.xlu0 %v878
  %880 = vperm.xlu0 %879, %v869
  %v881 = vpop.permute.xlu0 %880
  %v882 = vperm.slane %v706, 5
  %v883 = vlaneseq
  %v884 = vshrl.u32 %v883, 7
  %886 = vset.pattern.permute.xlu0 %v884
  %887 = vperm.xlu0 %886, %v882
  %v888 = vpop.permute.xlu0 %887
  %v889 = vlaneseq
  %v890 = vshrl.u32 %v889, 7
  %v891 = vadd.s32 %v890, 8
  %892 = vset.pattern.permute.xlu0 %v891
  %893 = vperm.xlu0 %892, %v882
  %v894 = vpop.permute.xlu0 %893
  %v895 = vperm.slane %v706, 6
  %v896 = vlaneseq
  %v897 = vshrl.u32 %v896, 7
  %899 = vset.pattern.permute.xlu0 %v897
  %900 = vperm.xlu0 %899, %v895
  %v901 = vpop.permute.xlu0 %900
  %v902 = vlaneseq
  %v903 = vshrl.u32 %v902, 7
  %v904 = vadd.s32 %v903, 8
  %905 = vset.pattern.permute.xlu0 %v904
  %906 = vperm.xlu0 %905, %v895
  %v907 = vpop.permute.xlu0 %906
  %v908 = vperm.slane %v706, 7
  %v909 = vlaneseq
  %v910 = vshrl.u32 %v909, 7
  %912 = vset.pattern.permute.xlu0 %v910
  %913 = vperm.xlu0 %912, %v908
  %v914 = vpop.permute.xlu0 %913
  %v915 = vlaneseq
  %v916 = vshrl.u32 %v915, 7
  %v917 = vadd.s32 %v916, 8
  %918 = vset.pattern.permute.xlu0 %v917
  %919 = vperm.xlu0 %918, %v908
  %v920 = vpop.permute.xlu0 %919
  %v921 = vmul.f32 %v719, %v275
  %v922 = vmul.f32 %v725, %v278
  %v923 = vmul.f32 %v732, %v281
  %v924 = vmul.f32 %v738, %v284
  %v925 = vmul.f32 %v745, %v287
  %v926 = vmul.f32 %v751, %v290
  %v927 = vmul.f32 %v758, %v293
  %v928 = vmul.f32 %v764, %v296
  %v929 = vmul.f32 %v771, %v299
  %v930 = vmul.f32 %v777, %v302
  %v931 = vmul.f32 %v784, %v305
  %v932 = vmul.f32 %v790, %v308
  %v933 = vmul.f32 %v797, %v311
  %v934 = vmul.f32 %v803, %v314
  %v935 = vmul.f32 %v810, %v317
  %v936 = vmul.f32 %v816, %v320
  %v937 = vmul.f32 %v823, %v323
  %v938 = vmul.f32 %v829, %v326
  %v939 = vmul.f32 %v836, %v329
  %v940 = vmul.f32 %v842, %v332
  %v941 = vmul.f32 %v849, %v335
  %v942 = vmul.f32 %v855, %v338
  %v943 = vmul.f32 %v862, %v341
  %v944 = vmul.f32 %v868, %v344
  %v945 = vmul.f32 %v875, %v347
  %v946 = vmul.f32 %v881, %v350
  %v947 = vmul.f32 %v888, %v353
  %v948 = vmul.f32 %v894, %v356
  %v949 = vmul.f32 %v901, %v359
  %v950 = vmul.f32 %v907, %v362
  %v951 = vmul.f32 %v914, %v365
  %v952 = vmul.f32 %v920, %v368
  %v953 = vsel %vm125, %v921, 0.0
  %v954 = vsel %vm125, %v922, 0.0
  %v955 = vadd.f32 %v953, %v954
  %v956 = vrot.slane %v955, 4
  %v957 = vadd.f32 %v955, %v956
  %v958 = vrot.slane %v957, 2
  %v959 = vadd.f32 %v957, %v958
  %v960 = vrot.slane %v959, 1
  %v961 = vadd.f32 %v959, %v960
  %v962 = vsel %vm125, %v923, 0.0
  %v963 = vsel %vm125, %v924, 0.0
  %v964 = vadd.f32 %v962, %v963
  %v965 = vrot.slane %v964, 4
  %v966 = vadd.f32 %v964, %v965
  %v967 = vrot.slane %v966, 2
  %v968 = vadd.f32 %v966, %v967
  %v969 = vrot.slane %v968, 1
  %v970 = vadd.f32 %v968, %v969
  %v971 = vsel %vm125, %v925, 0.0
  %v972 = vsel %vm125, %v926, 0.0
  %v973 = vadd.f32 %v971, %v972
  %v974 = vrot.slane %v973, 4
  %v975 = vadd.f32 %v973, %v974
  %v976 = vrot.slane %v975, 2
  %v977 = vadd.f32 %v975, %v976
  %v978 = vrot.slane %v977, 1
  %v979 = vadd.f32 %v977, %v978
  %v980 = vsel %vm125, %v927, 0.0
  %v981 = vsel %vm125, %v928, 0.0
  %v982 = vadd.f32 %v980, %v981
  %v983 = vrot.slane %v982, 4
  %v984 = vadd.f32 %v982, %v983
  %v985 = vrot.slane %v984, 2
  %v986 = vadd.f32 %v984, %v985
  %v987 = vrot.slane %v986, 1
  %v988 = vadd.f32 %v986, %v987
  %v989 = vsel %vm125, %v929, 0.0
  %v990 = vsel %vm125, %v930, 0.0
  %v991 = vadd.f32 %v989, %v990
  %v992 = vrot.slane %v991, 4
  %v993 = vadd.f32 %v991, %v992
  %v994 = vrot.slane %v993, 2
  %v995 = vadd.f32 %v993, %v994
  %v996 = vrot.slane %v995, 1
  %v997 = vadd.f32 %v995, %v996
  %v998 = vsel %vm125, %v931, 0.0
  %v999 = vsel %vm125, %v932, 0.0
  %v1000 = vadd.f32 %v998, %v999
  %v1001 = vrot.slane %v1000, 4
  %v1002 = vadd.f32 %v1000, %v1001
  %v1003 = vrot.slane %v1002, 2
  %v1004 = vadd.f32 %v1002, %v1003
  %v1005 = vrot.slane %v1004, 1
  %v1006 = vadd.f32 %v1004, %v1005
  %v1007 = vsel %vm125, %v933, 0.0
  %v1008 = vsel %vm125, %v934, 0.0
  %v1009 = vadd.f32 %v1007, %v1008
  %v1010 = vrot.slane %v1009, 4
  %v1011 = vadd.f32 %v1009, %v1010
  %v1012 = vrot.slane %v1011, 2
  %v1013 = vadd.f32 %v1011, %v1012
  %v1014 = vrot.slane %v1013, 1
  %v1015 = vadd.f32 %v1013, %v1014
  %v1016 = vsel %vm125, %v935, 0.0
  %v1017 = vsel %vm125, %v936, 0.0
  %v1018 = vadd.f32 %v1016, %v1017
  %v1019 = vrot.slane %v1018, 4
  %v1020 = vadd.f32 %v1018, %v1019
  %v1021 = vrot.slane %v1020, 2
  %v1022 = vadd.f32 %v1020, %v1021
  %v1023 = vrot.slane %v1022, 1
  %v1024 = vadd.f32 %v1022, %v1023
  %v1025 = vsel %vm125, %v937, 0.0
  %v1026 = vsel %vm125, %v938, 0.0
  %v1027 = vadd.f32 %v1025, %v1026
  %v1028 = vrot.slane %v1027, 4
  %v1029 = vadd.f32 %v1027, %v1028
  %v1030 = vrot.slane %v1029, 2
  %v1031 = vadd.f32 %v1029, %v1030
  %v1032 = vrot.slane %v1031, 1
  %v1033 = vadd.f32 %v1031, %v1032
  %v1034 = vsel %vm125, %v939, 0.0
  %v1035 = vsel %vm125, %v940, 0.0
  %v1036 = vadd.f32 %v1034, %v1035
  %v1037 = vrot.slane %v1036, 4
  %v1038 = vadd.f32 %v1036, %v1037
  %v1039 = vrot.slane %v1038, 2
  %v1040 = vadd.f32 %v1038, %v1039
  %v1041 = vrot.slane %v1040, 1
  %v1042 = vadd.f32 %v1040, %v1041
  %v1043 = vsel %vm125, %v941, 0.0
  %v1044 = vsel %vm125, %v942, 0.0
  %v1045 = vadd.f32 %v1043, %v1044
  %v1046 = vrot.slane %v1045, 4
  %v1047 = vadd.f32 %v1045, %v1046
  %v1048 = vrot.slane %v1047, 2
  %v1049 = vadd.f32 %v1047, %v1048
  %v1050 = vrot.slane %v1049, 1
  %v1051 = vadd.f32 %v1049, %v1050
  %v1052 = vsel %vm125, %v943, 0.0
  %v1053 = vsel %vm125, %v944, 0.0
  %v1054 = vadd.f32 %v1052, %v1053
  %v1055 = vrot.slane %v1054, 4
  %v1056 = vadd.f32 %v1054, %v1055
  %v1057 = vrot.slane %v1056, 2
  %v1058 = vadd.f32 %v1056, %v1057
  %v1059 = vrot.slane %v1058, 1
  %v1060 = vadd.f32 %v1058, %v1059
  %v1061 = vsel %vm125, %v945, 0.0
  %v1062 = vsel %vm125, %v946, 0.0
  %v1063 = vadd.f32 %v1061, %v1062
  %v1064 = vrot.slane %v1063, 4
  %v1065 = vadd.f32 %v1063, %v1064
  %v1066 = vrot.slane %v1065, 2
  %v1067 = vadd.f32 %v1065, %v1066
  %v1068 = vrot.slane %v1067, 1
  %v1069 = vadd.f32 %v1067, %v1068
  %v1070 = vsel %vm125, %v947, 0.0
  %v1071 = vsel %vm125, %v948, 0.0
  %v1072 = vadd.f32 %v1070, %v1071
  %v1073 = vrot.slane %v1072, 4
  %v1074 = vadd.f32 %v1072, %v1073
  %v1075 = vrot.slane %v1074, 2
  %v1076 = vadd.f32 %v1074, %v1075
  %v1077 = vrot.slane %v1076, 1
  %v1078 = vadd.f32 %v1076, %v1077
  %v1079 = vsel %vm125, %v949, 0.0
  %v1080 = vsel %vm125, %v950, 0.0
  %v1081 = vadd.f32 %v1079, %v1080
  %v1082 = vrot.slane %v1081, 4
  %v1083 = vadd.f32 %v1081, %v1082
  %v1084 = vrot.slane %v1083, 2
  %v1085 = vadd.f32 %v1083, %v1084
  %v1086 = vrot.slane %v1085, 1
  %v1087 = vadd.f32 %v1085, %v1086
  %v1088 = vsel %vm125, %v951, 0.0
  %v1089 = vsel %vm125, %v952, 0.0
  %v1090 = vadd.f32 %v1088, %v1089
  %v1091 = vrot.slane %v1090, 4
  %v1092 = vadd.f32 %v1090, %v1091
  %v1093 = vrot.slane %v1092, 2
  %v1094 = vadd.f32 %v1092, %v1093
  %v1095 = vrot.slane %v1094, 1
  %v1096 = vadd.f32 %v1094, %v1095
  %1097 = vrot.lane.b32.xlu0 %v150, 96
  %v1098 = vpop.permute.xlu0 %1097
  %1099 = vrot.lane.b32.xlu0 %v153, 96
  %v1100 = vpop.permute.xlu0 %1099
  %v1119 = vsel %vm634, %v970, %v961
  %v1120 = vsel %vm636, %v979, %v1119
  %v1121 = vsel %vm638, %v988, %v1120
  %v1122 = vsel %vm640, %v997, %v1121
  %v1123 = vsel %vm642, %v1006, %v1122
  %v1124 = vsel %vm644, %v1015, %v1123
  %v1125 = vsel %vm646, %v1024, %v1124
  %v1126 = vsel %vm634, %v1042, %v1033
  %v1127 = vsel %vm636, %v1051, %v1126
  %v1128 = vsel %vm638, %v1060, %v1127
  %v1129 = vsel %vm640, %v1069, %v1128
  %v1130 = vsel %vm642, %v1078, %v1129
  %v1131 = vsel %vm644, %v1087, %v1130
  %v1132 = vsel %vm646, %v1096, %v1131
  %v1136 = vsel %vm692, %v705, 0
  %v1139 = vsel %vm692, %v706, 0
  %1141 = vmatpush.msra.mxu0 0.0
  %1142 = vmatpush.msra.mxu0 0.0
  %1143 = vmatpush.msra.mxu0 0.0
  %1144 = vmatpush.msra.mxu0 0.0
  %1145 = vmatpush.msra.mxu0 0.0
  %1146 = vmatpush.msra.mxu0 0.0
  %1147 = vmatpush.msra.mxu0 0.0
  %1148 = vmatpush.msra.mxu0 0.0
  %1149 = vmatpush.msra.mxu0 0.0
  %1150 = vmatpush.msra.mxu0 0.0
  %1151 = vmatpush.msra.mxu0 0.0
  %1152 = vmatpush.msra.mxu0 0.0
  %1153 = vmatpush.msra.mxu0 0.0
  %1154 = vmatpush.msra.mxu0 0.0
  %1155 = vmatpush.msra.mxu0 %v1100
  %1156 = vmatpush.msra.mxu0 %v1098
  %1157 = vmatmul.f32.gmra.mxu0 %v1136
  %v1158 = vpop.f32.mrf.mxu0
  %v1159 = vadd.f32 %v1125, %v1158
  %1160 = vmatmul.f32.gmra.mxu0 %v1139
  %v1161 = vpop.f32.mrf.mxu0
  %v1162 = vadd.f32 %v1132, %v1161
  %1163 = vdwg.mxu0
  %vm1164 = vcmp.gt.f32.partialorder %v709, 0.0
  %vm1165 = vcmp.gt.f32.partialorder %v712, 0.0
  %v1166 = vsel %vm1164, %v709, 1.0
  %v1167 = vsel %vm1165, %v712, 1.0
  %v1168 = vrcp.pop %v1166
  %v1169 = vmul.f32 %v1166, %v1168
  %v1170 = vsub.f32 1.0, %v1169
  %v1171 = vmul.f32 %v1168, %v1170
  %v1172 = vadd.f32 %v1168, %v1171
  %vm1173 = vweird.f32 %v1166
  %vm1174 = vweird.f32 %v1168
  %vm1175 = vmor %vm1173, %vm1174
  %v1176 = vsel %vm1175, %v1168, %v1172
  %v1177 = vand.u32 2147483647, %v1166
  %vm1178 = vcmp.eq.f32.partialorder %v1177, 8.507059e+37
  %v1179 = vand.u32 %v1166, 2147483648
  %v1180 = vor.u32 1.1754944e-38, %v1179
  %v1181 = vsel %vm1178, %v1180, %v1176
  %v1182 = vmul.f32 %v1159, %v1181
  %v1183 = vrcp.pop %v1167
  %v1184 = vmul.f32 %v1167, %v1183
  %v1185 = vsub.f32 1.0, %v1184
  %v1186 = vmul.f32 %v1183, %v1185
  %v1187 = vadd.f32 %v1183, %v1186
  %vm1188 = vweird.f32 %v1167
  %vm1189 = vweird.f32 %v1183
  %vm1190 = vmor %vm1188, %vm1189
  %v1191 = vsel %vm1190, %v1183, %v1187
  %v1192 = vand.u32 2147483647, %v1167
  %vm1193 = vcmp.eq.f32.partialorder %v1192, 8.507059e+37
  %v1194 = vand.u32 %v1167, 2147483648
  %v1195 = vor.u32 1.1754944e-38, %v1194
  %v1196 = vsel %vm1193, %v1195, %v1191
  %v1197 = vmul.f32 %v1162, %v1196
  %v1198 = vsel %vm1164, 1, 0
  %v1199 = vsel %vm1165, 1, 0
  %vm1200 = vcmp.eq.s32.totalorder %v1198, 1
  %vm1201 = vcmp.eq.s32.totalorder %v1199, 1
  %v1202 = vsel %vm1200, %v1182, 0.0
  %v1203 = vsel %vm1201, %v1197, 0.0
  %1236 = vrot.lane.b32.xlu0 %v418, 120
  %v1237 = vpop.permute.xlu0 %1236
  %1238 = vrot.lane.b32.xlu0 %v419, 120
  %v1239 = vpop.permute.xlu0 %1238
  %1240 = vrot.lane.b32.xlu0 %v420, 120
  %v1241 = vpop.permute.xlu0 %1240
  %1242 = vrot.lane.b32.xlu0 %v421, 120
  %v1243 = vpop.permute.xlu0 %1242
  %1244 = vrot.lane.b32.xlu0 %v422, 120
  %v1245 = vpop.permute.xlu0 %1244
  %1246 = vrot.lane.b32.xlu0 %v423, 120
  %v1247 = vpop.permute.xlu0 %1246
  %1248 = vrot.lane.b32.xlu0 %v424, 120
  %v1249 = vpop.permute.xlu0 %1248
  %1250 = vrot.lane.b32.xlu0 %v425, 120
  %v1251 = vpop.permute.xlu0 %1250
  %1252 = vrot.lane.b32.xlu0 %v426, 120
  %v1253 = vpop.permute.xlu0 %1252
  %1254 = vrot.lane.b32.xlu0 %v427, 120
  %v1255 = vpop.permute.xlu0 %1254
  %1256 = vrot.lane.b32.xlu0 %v428, 120
  %v1257 = vpop.permute.xlu0 %1256
  %1258 = vrot.lane.b32.xlu0 %v429, 120
  %v1259 = vpop.permute.xlu0 %1258
  %1260 = vrot.lane.b32.xlu0 %v430, 120
  %v1261 = vpop.permute.xlu0 %1260
  %1262 = vrot.lane.b32.xlu0 %v431, 120
  %v1263 = vpop.permute.xlu0 %1262
  %1264 = vrot.lane.b32.xlu0 %v432, 120
  %v1265 = vpop.permute.xlu0 %1264
  %1266 = vrot.lane.b32.xlu0 %v433, 120
  %v1267 = vpop.permute.xlu0 %1266
  %1268 = vrot.lane.b32.xlu0 %v434, 120
  %v1269 = vpop.permute.xlu0 %1268
  %1270 = vrot.lane.b32.xlu0 %v435, 120
  %v1271 = vpop.permute.xlu0 %1270
  %1272 = vrot.lane.b32.xlu0 %v436, 120
  %v1273 = vpop.permute.xlu0 %1272
  %1274 = vrot.lane.b32.xlu0 %v437, 120
  %v1275 = vpop.permute.xlu0 %1274
  %1276 = vrot.lane.b32.xlu0 %v438, 120
  %v1277 = vpop.permute.xlu0 %1276
  %1278 = vrot.lane.b32.xlu0 %v439, 120
  %v1279 = vpop.permute.xlu0 %1278
  %1280 = vrot.lane.b32.xlu0 %v440, 120
  %v1281 = vpop.permute.xlu0 %1280
  %1282 = vrot.lane.b32.xlu0 %v441, 120
  %v1283 = vpop.permute.xlu0 %1282
  %1284 = vrot.lane.b32.xlu0 %v442, 120
  %v1285 = vpop.permute.xlu0 %1284
  %1286 = vrot.lane.b32.xlu0 %v443, 120
  %v1287 = vpop.permute.xlu0 %1286
  %1288 = vrot.lane.b32.xlu0 %v444, 120
  %v1289 = vpop.permute.xlu0 %1288
  %1290 = vrot.lane.b32.xlu0 %v445, 120
  %v1291 = vpop.permute.xlu0 %1290
  %1292 = vrot.lane.b32.xlu0 %v446, 120
  %v1293 = vpop.permute.xlu0 %1292
  %1294 = vrot.lane.b32.xlu0 %v447, 120
  %v1295 = vpop.permute.xlu0 %1294
  %1296 = vrot.lane.b32.xlu0 %v448, 120
  %v1297 = vpop.permute.xlu0 %1296
  %1298 = vrot.lane.b32.xlu0 %v449, 120
  %v1299 = vpop.permute.xlu0 %1298
  %v1332 = vsel %vm125, %v1237, 0.0
  %1333 = vadd.xlane.f32.xlu0 %v1332
  %v1334 = vpop.xlane.xlu0 %1333
  %v1335 = vsel %vm125, %v1239, 0.0
  %1336 = vadd.xlane.f32.xlu0 %v1335
  %v1337 = vpop.xlane.xlu0 %1336
  %v1338 = vsel %vm125, %v1241, 0.0
  %1339 = vadd.xlane.f32.xlu0 %v1338
  %v1340 = vpop.xlane.xlu0 %1339
  %v1341 = vsel %vm125, %v1243, 0.0
  %1342 = vadd.xlane.f32.xlu0 %v1341
  %v1343 = vpop.xlane.xlu0 %1342
  %v1344 = vsel %vm125, %v1245, 0.0
  %1345 = vadd.xlane.f32.xlu0 %v1344
  %v1346 = vpop.xlane.xlu0 %1345
  %v1347 = vsel %vm125, %v1247, 0.0
  %1348 = vadd.xlane.f32.xlu0 %v1347
  %v1349 = vpop.xlane.xlu0 %1348
  %v1350 = vsel %vm125, %v1249, 0.0
  %1351 = vadd.xlane.f32.xlu0 %v1350
  %v1352 = vpop.xlane.xlu0 %1351
  %v1353 = vsel %vm125, %v1251, 0.0
  %1354 = vadd.xlane.f32.xlu0 %v1353
  %v1355 = vpop.xlane.xlu0 %1354
  %v1356 = vsel %vm125, %v1253, 0.0
  %1357 = vadd.xlane.f32.xlu0 %v1356
  %v1358 = vpop.xlane.xlu0 %1357
  %v1359 = vsel %vm125, %v1255, 0.0
  %1360 = vadd.xlane.f32.xlu0 %v1359
  %v1361 = vpop.xlane.xlu0 %1360
  %v1362 = vsel %vm125, %v1257, 0.0
  %1363 = vadd.xlane.f32.xlu0 %v1362
  %v1364 = vpop.xlane.xlu0 %1363
  %v1365 = vsel %vm125, %v1259, 0.0
  %1366 = vadd.xlane.f32.xlu0 %v1365
  %v1367 = vpop.xlane.xlu0 %1366
  %v1368 = vsel %vm125, %v1261, 0.0
  %1369 = vadd.xlane.f32.xlu0 %v1368
  %v1370 = vpop.xlane.xlu0 %1369
  %v1371 = vsel %vm125, %v1263, 0.0
  %1372 = vadd.xlane.f32.xlu0 %v1371
  %v1373 = vpop.xlane.xlu0 %1372
  %v1374 = vsel %vm125, %v1265, 0.0
  %1375 = vadd.xlane.f32.xlu0 %v1374
  %v1376 = vpop.xlane.xlu0 %1375
  %v1377 = vsel %vm125, %v1267, 0.0
  %1378 = vadd.xlane.f32.xlu0 %v1377
  %v1379 = vpop.xlane.xlu0 %1378
  %v1380 = vsel %vm125, %v1269, 0.0
  %1381 = vadd.xlane.f32.xlu0 %v1380
  %v1382 = vpop.xlane.xlu0 %1381
  %v1383 = vsel %vm125, %v1271, 0.0
  %1384 = vadd.xlane.f32.xlu0 %v1383
  %v1385 = vpop.xlane.xlu0 %1384
  %v1386 = vsel %vm125, %v1273, 0.0
  %1387 = vadd.xlane.f32.xlu0 %v1386
  %v1388 = vpop.xlane.xlu0 %1387
  %v1389 = vsel %vm125, %v1275, 0.0
  %1390 = vadd.xlane.f32.xlu0 %v1389
  %v1391 = vpop.xlane.xlu0 %1390
  %v1392 = vsel %vm125, %v1277, 0.0
  %1393 = vadd.xlane.f32.xlu0 %v1392
  %v1394 = vpop.xlane.xlu0 %1393
  %v1395 = vsel %vm125, %v1279, 0.0
  %1396 = vadd.xlane.f32.xlu0 %v1395
  %v1397 = vpop.xlane.xlu0 %1396
  %v1398 = vsel %vm125, %v1281, 0.0
  %1399 = vadd.xlane.f32.xlu0 %v1398
  %v1400 = vpop.xlane.xlu0 %1399
  %v1401 = vsel %vm125, %v1283, 0.0
  %1402 = vadd.xlane.f32.xlu0 %v1401
  %v1403 = vpop.xlane.xlu0 %1402
  %v1404 = vsel %vm125, %v1285, 0.0
  %1405 = vadd.xlane.f32.xlu0 %v1404
  %v1406 = vpop.xlane.xlu0 %1405
  %v1407 = vsel %vm125, %v1287, 0.0
  %1408 = vadd.xlane.f32.xlu0 %v1407
  %v1409 = vpop.xlane.xlu0 %1408
  %v1410 = vsel %vm125, %v1289, 0.0
  %1411 = vadd.xlane.f32.xlu0 %v1410
  %v1412 = vpop.xlane.xlu0 %1411
  %v1413 = vsel %vm125, %v1291, 0.0
  %1414 = vadd.xlane.f32.xlu0 %v1413
  %v1415 = vpop.xlane.xlu0 %1414
  %v1416 = vsel %vm125, %v1293, 0.0
  %1417 = vadd.xlane.f32.xlu0 %v1416
  %v1418 = vpop.xlane.xlu0 %1417
  %v1419 = vsel %vm125, %v1295, 0.0
  %1420 = vadd.xlane.f32.xlu0 %v1419
  %v1421 = vpop.xlane.xlu0 %1420
  %v1422 = vsel %vm125, %v1297, 0.0
  %1423 = vadd.xlane.f32.xlu0 %v1422
  %v1424 = vpop.xlane.xlu0 %1423
  %v1425 = vsel %vm125, %v1299, 0.0
  %1426 = vadd.xlane.f32.xlu0 %v1425
  %v1427 = vpop.xlane.xlu0 %1426
  %1428 = vrot.lane.b32.xlu0 %v150, 120
  %v1429 = vpop.permute.xlu0 %1428
  %1430 = vrot.lane.b32.xlu0 %v153, 120
  %v1431 = vpop.permute.xlu0 %1430
  %1432 = vrot.lane.b32.xlu0 %v150, 104
  %v1433 = vpop.permute.xlu0 %1432
  %1434 = vrot.lane.b32.xlu0 %v153, 104
  %v1435 = vpop.permute.xlu0 %1434
  %v1468 = vperm.slane %v1334, %v583
  %v1469 = vperm.slane %v1337, %v585
  %v1470 = vsel %vm587, %v1469, %v1468
  %v1471 = vperm.slane %v1340, %v583
  %v1472 = vperm.slane %v1343, %v585
  %v1473 = vsel %vm587, %v1472, %v1471
  %v1474 = vperm.slane %v1346, %v583
  %v1475 = vperm.slane %v1349, %v585
  %v1476 = vsel %vm587, %v1475, %v1474
  %v1477 = vperm.slane %v1352, %v583
  %v1478 = vperm.slane %v1355, %v585
  %v1479 = vsel %vm587, %v1478, %v1477
  %v1480 = vperm.slane %v1358, %v583
  %v1481 = vperm.slane %v1361, %v585
  %v1482 = vsel %vm587, %v1481, %v1480
  %v1483 = vperm.slane %v1364, %v583
  %v1484 = vperm.slane %v1367, %v585
  %v1485 = vsel %vm587, %v1484, %v1483
  %v1486 = vperm.slane %v1370, %v583
  %v1487 = vperm.slane %v1373, %v585
  %v1488 = vsel %vm587, %v1487, %v1486
  %v1489 = vperm.slane %v1376, %v583
  %v1490 = vperm.slane %v1379, %v585
  %v1491 = vsel %vm587, %v1490, %v1489
  %v1492 = vperm.slane %v1382, %v583
  %v1493 = vperm.slane %v1385, %v585
  %v1494 = vsel %vm587, %v1493, %v1492
  %v1495 = vperm.slane %v1388, %v583
  %v1496 = vperm.slane %v1391, %v585
  %v1497 = vsel %vm587, %v1496, %v1495
  %v1498 = vperm.slane %v1394, %v583
  %v1499 = vperm.slane %v1397, %v585
  %v1500 = vsel %vm587, %v1499, %v1498
  %v1501 = vperm.slane %v1400, %v583
  %v1502 = vperm.slane %v1403, %v585
  %v1503 = vsel %vm587, %v1502, %v1501
  %v1504 = vperm.slane %v1406, %v583
  %v1505 = vperm.slane %v1409, %v585
  %v1506 = vsel %vm587, %v1505, %v1504
  %v1507 = vperm.slane %v1412, %v583
  %v1508 = vperm.slane %v1415, %v585
  %v1509 = vsel %vm587, %v1508, %v1507
  %v1510 = vperm.slane %v1418, %v583
  %v1511 = vperm.slane %v1421, %v585
  %v1512 = vsel %vm587, %v1511, %v1510
  %v1513 = vperm.slane %v1424, %v583
  %v1514 = vperm.slane %v1427, %v585
  %v1515 = vsel %vm587, %v1514, %v1513
  %v1516 = vsel %vm634, %v1473, %v1470
  %v1517 = vsel %vm636, %v1476, %v1516
  %v1518 = vsel %vm638, %v1479, %v1517
  %v1519 = vsel %vm640, %v1482, %v1518
  %v1520 = vsel %vm642, %v1485, %v1519
  %v1521 = vsel %vm644, %v1488, %v1520
  %v1522 = vsel %vm646, %v1491, %v1521
  %v1523 = vsel %vm634, %v1497, %v1494
  %v1524 = vsel %vm636, %v1500, %v1523
  %v1525 = vsel %vm638, %v1503, %v1524
  %v1526 = vsel %vm640, %v1506, %v1525
  %v1527 = vsel %vm642, %v1509, %v1526
  %v1528 = vsel %vm644, %v1512, %v1527
  %v1529 = vsel %vm646, %v1515, %v1528
  %v1532 = vsel %vm125, %v1429, 0
  %v1534 = vsel %vm125, %v1431, 0
  %v1536 = vsel %vm125, %v1433, 0
  %v1538 = vsel %vm125, %v1435, 0
  %1540 = vmatpush.xpose.msra.mxu0 0.0
  %1541 = vmatpush.xpose.msra.mxu0 0.0
  %1542 = vmatpush.xpose.msra.mxu0 0.0
  %1543 = vmatpush.xpose.msra.mxu0 0.0
  %1544 = vmatpush.xpose.msra.mxu0 0.0
  %1545 = vmatpush.xpose.msra.mxu0 0.0
  %1546 = vmatpush.xpose.msra.mxu0 0.0
  %1547 = vmatpush.xpose.msra.mxu0 0.0
  %1548 = vmatpush.xpose.msra.mxu0 0.0
  %1549 = vmatpush.xpose.msra.mxu0 0.0
  %1550 = vmatpush.xpose.msra.mxu0 0.0
  %1551 = vmatpush.xpose.msra.mxu0 0.0
  %1552 = vmatpush.xpose.msra.mxu0 0.0
  %1553 = vmatpush.xpose.msra.mxu0 0.0
  %1554 = vmatpush.xpose.msra.mxu0 %v1538
  %1555 = vmatpush.xpose.msra.mxu0 %v1536
  %1556 = vmatmul.f32.gmra.mxu0 %v1532
  %v1557 = vpop.f32.mrf.mxu0
  %v1558 = vadd.f32 %v1522, %v1557
  %1559 = vmatmul.f32.gmra.mxu0 %v1534
  %v1560 = vpop.f32.mrf.mxu0
  %v1561 = vadd.f32 %v1529, %v1560
  %1562 = vdwg.mxu0
  %v1563 = vmul.f32 %v1558, 0.35355338
  %v1564 = vmul.f32 %v1561, 0.35355338
  %v1565 = vsel %vm84, %v1563, -1e+30
  %v1566 = vsel %vm85, %v1564, -1e+30
  %v1567 = vsel %vm692, %v1565, -inf
  %1568 = vmax.xlane.f32.xlu0 %v1567
  %v1569 = vpop.xlane.xlu0 %1568
  %v1570 = vsel %vm692, %v1566, -inf
  %1571 = vmax.xlane.f32.xlu0 %v1570
  %v1572 = vpop.xlane.xlu0 %1571
  %v1573 = vsub.f32 %v1565, %v1569
  %v1574 = vsub.f32 %v1566, %v1572
  %v1575 = vmul.f32 %v1573, 1.442695
  %v1576 = vpow.pop %v1575
  %v1577 = vmul.f32 %v1574, 1.442695
  %v1578 = vpow.pop %v1577
  %v1579 = vmul.f32 %v1576, %v82
  %v1580 = vmul.f32 %v1578, %v83
  %v1581 = vsel %vm692, %v1579, 0.0
  %1582 = vadd.xlane.f32.xlu0 %v1581
  %v1583 = vpop.xlane.xlu0 %1582
  %v1584 = vsel %vm692, %v1580, 0.0
  %1585 = vadd.xlane.f32.xlu0 %v1584
  %v1586 = vpop.xlane.xlu0 %1585
  %v1587 = vperm.slane %v1579, 0
  %v1588 = vlaneseq
  %v1589 = vshrl.u32 %v1588, 7
  %1591 = vset.pattern.permute.xlu0 %v1589
  %1592 = vperm.xlu0 %1591, %v1587
  %v1593 = vpop.permute.xlu0 %1592
  %v1594 = vlaneseq
  %v1595 = vshrl.u32 %v1594, 7
  %v1596 = vadd.s32 %v1595, 8
  %1597 = vset.pattern.permute.xlu0 %v1596
  %1598 = vperm.xlu0 %1597, %v1587
  %v1599 = vpop.permute.xlu0 %1598
  %v1600 = vperm.slane %v1579, 1
  %v1601 = vlaneseq
  %v1602 = vshrl.u32 %v1601, 7
  %1604 = vset.pattern.permute.xlu0 %v1602
  %1605 = vperm.xlu0 %1604, %v1600
  %v1606 = vpop.permute.xlu0 %1605
  %v1607 = vlaneseq
  %v1608 = vshrl.u32 %v1607, 7
  %v1609 = vadd.s32 %v1608, 8
  %1610 = vset.pattern.permute.xlu0 %v1609
  %1611 = vperm.xlu0 %1610, %v1600
  %v1612 = vpop.permute.xlu0 %1611
  %v1613 = vperm.slane %v1579, 2
  %v1614 = vlaneseq
  %v1615 = vshrl.u32 %v1614, 7
  %1617 = vset.pattern.permute.xlu0 %v1615
  %1618 = vperm.xlu0 %1617, %v1613
  %v1619 = vpop.permute.xlu0 %1618
  %v1620 = vlaneseq
  %v1621 = vshrl.u32 %v1620, 7
  %v1622 = vadd.s32 %v1621, 8
  %1623 = vset.pattern.permute.xlu0 %v1622
  %1624 = vperm.xlu0 %1623, %v1613
  %v1625 = vpop.permute.xlu0 %1624
  %v1626 = vperm.slane %v1579, 3
  %v1627 = vlaneseq
  %v1628 = vshrl.u32 %v1627, 7
  %1630 = vset.pattern.permute.xlu0 %v1628
  %1631 = vperm.xlu0 %1630, %v1626
  %v1632 = vpop.permute.xlu0 %1631
  %v1633 = vlaneseq
  %v1634 = vshrl.u32 %v1633, 7
  %v1635 = vadd.s32 %v1634, 8
  %1636 = vset.pattern.permute.xlu0 %v1635
  %1637 = vperm.xlu0 %1636, %v1626
  %v1638 = vpop.permute.xlu0 %1637
  %v1639 = vperm.slane %v1579, 4
  %v1640 = vlaneseq
  %v1641 = vshrl.u32 %v1640, 7
  %1643 = vset.pattern.permute.xlu0 %v1641
  %1644 = vperm.xlu0 %1643, %v1639
  %v1645 = vpop.permute.xlu0 %1644
  %v1646 = vlaneseq
  %v1647 = vshrl.u32 %v1646, 7
  %v1648 = vadd.s32 %v1647, 8
  %1649 = vset.pattern.permute.xlu0 %v1648
  %1650 = vperm.xlu0 %1649, %v1639
  %v1651 = vpop.permute.xlu0 %1650
  %v1652 = vperm.slane %v1579, 5
  %v1653 = vlaneseq
  %v1654 = vshrl.u32 %v1653, 7
  %1656 = vset.pattern.permute.xlu0 %v1654
  %1657 = vperm.xlu0 %1656, %v1652
  %v1658 = vpop.permute.xlu0 %1657
  %v1659 = vlaneseq
  %v1660 = vshrl.u32 %v1659, 7
  %v1661 = vadd.s32 %v1660, 8
  %1662 = vset.pattern.permute.xlu0 %v1661
  %1663 = vperm.xlu0 %1662, %v1652
  %v1664 = vpop.permute.xlu0 %1663
  %v1665 = vperm.slane %v1579, 6
  %v1666 = vlaneseq
  %v1667 = vshrl.u32 %v1666, 7
  %1669 = vset.pattern.permute.xlu0 %v1667
  %1670 = vperm.xlu0 %1669, %v1665
  %v1671 = vpop.permute.xlu0 %1670
  %v1672 = vlaneseq
  %v1673 = vshrl.u32 %v1672, 7
  %v1674 = vadd.s32 %v1673, 8
  %1675 = vset.pattern.permute.xlu0 %v1674
  %1676 = vperm.xlu0 %1675, %v1665
  %v1677 = vpop.permute.xlu0 %1676
  %v1678 = vperm.slane %v1579, 7
  %v1679 = vlaneseq
  %v1680 = vshrl.u32 %v1679, 7
  %1682 = vset.pattern.permute.xlu0 %v1680
  %1683 = vperm.xlu0 %1682, %v1678
  %v1684 = vpop.permute.xlu0 %1683
  %v1685 = vlaneseq
  %v1686 = vshrl.u32 %v1685, 7
  %v1687 = vadd.s32 %v1686, 8
  %1688 = vset.pattern.permute.xlu0 %v1687
  %1689 = vperm.xlu0 %1688, %v1678
  %v1690 = vpop.permute.xlu0 %1689
  %v1691 = vperm.slane %v1580, 0
  %v1692 = vlaneseq
  %v1693 = vshrl.u32 %v1692, 7
  %1695 = vset.pattern.permute.xlu0 %v1693
  %1696 = vperm.xlu0 %1695, %v1691
  %v1697 = vpop.permute.xlu0 %1696
  %v1698 = vlaneseq
  %v1699 = vshrl.u32 %v1698, 7
  %v1700 = vadd.s32 %v1699, 8
  %1701 = vset.pattern.permute.xlu0 %v1700
  %1702 = vperm.xlu0 %1701, %v1691
  %v1703 = vpop.permute.xlu0 %1702
  %v1704 = vperm.slane %v1580, 1
  %v1705 = vlaneseq
  %v1706 = vshrl.u32 %v1705, 7
  %1708 = vset.pattern.permute.xlu0 %v1706
  %1709 = vperm.xlu0 %1708, %v1704
  %v1710 = vpop.permute.xlu0 %1709
  %v1711 = vlaneseq
  %v1712 = vshrl.u32 %v1711, 7
  %v1713 = vadd.s32 %v1712, 8
  %1714 = vset.pattern.permute.xlu0 %v1713
  %1715 = vperm.xlu0 %1714, %v1704
  %v1716 = vpop.permute.xlu0 %1715
  %v1717 = vperm.slane %v1580, 2
  %v1718 = vlaneseq
  %v1719 = vshrl.u32 %v1718, 7
  %1721 = vset.pattern.permute.xlu0 %v1719
  %1722 = vperm.xlu0 %1721, %v1717
  %v1723 = vpop.permute.xlu0 %1722
  %v1724 = vlaneseq
  %v1725 = vshrl.u32 %v1724, 7
  %v1726 = vadd.s32 %v1725, 8
  %1727 = vset.pattern.permute.xlu0 %v1726
  %1728 = vperm.xlu0 %1727, %v1717
  %v1729 = vpop.permute.xlu0 %1728
  %v1730 = vperm.slane %v1580, 3
  %v1731 = vlaneseq
  %v1732 = vshrl.u32 %v1731, 7
  %1734 = vset.pattern.permute.xlu0 %v1732
  %1735 = vperm.xlu0 %1734, %v1730
  %v1736 = vpop.permute.xlu0 %1735
  %v1737 = vlaneseq
  %v1738 = vshrl.u32 %v1737, 7
  %v1739 = vadd.s32 %v1738, 8
  %1740 = vset.pattern.permute.xlu0 %v1739
  %1741 = vperm.xlu0 %1740, %v1730
  %v1742 = vpop.permute.xlu0 %1741
  %v1743 = vperm.slane %v1580, 4
  %v1744 = vlaneseq
  %v1745 = vshrl.u32 %v1744, 7
  %1747 = vset.pattern.permute.xlu0 %v1745
  %1748 = vperm.xlu0 %1747, %v1743
  %v1749 = vpop.permute.xlu0 %1748
  %v1750 = vlaneseq
  %v1751 = vshrl.u32 %v1750, 7
  %v1752 = vadd.s32 %v1751, 8
  %1753 = vset.pattern.permute.xlu0 %v1752
  %1754 = vperm.xlu0 %1753, %v1743
  %v1755 = vpop.permute.xlu0 %1754
  %v1756 = vperm.slane %v1580, 5
  %v1757 = vlaneseq
  %v1758 = vshrl.u32 %v1757, 7
  %1760 = vset.pattern.permute.xlu0 %v1758
  %1761 = vperm.xlu0 %1760, %v1756
  %v1762 = vpop.permute.xlu0 %1761
  %v1763 = vlaneseq
  %v1764 = vshrl.u32 %v1763, 7
  %v1765 = vadd.s32 %v1764, 8
  %1766 = vset.pattern.permute.xlu0 %v1765
  %1767 = vperm.xlu0 %1766, %v1756
  %v1768 = vpop.permute.xlu0 %1767
  %v1769 = vperm.slane %v1580, 6
  %v1770 = vlaneseq
  %v1771 = vshrl.u32 %v1770, 7
  %1773 = vset.pattern.permute.xlu0 %v1771
  %1774 = vperm.xlu0 %1773, %v1769
  %v1775 = vpop.permute.xlu0 %1774
  %v1776 = vlaneseq
  %v1777 = vshrl.u32 %v1776, 7
  %v1778 = vadd.s32 %v1777, 8
  %1779 = vset.pattern.permute.xlu0 %v1778
  %1780 = vperm.xlu0 %1779, %v1769
  %v1781 = vpop.permute.xlu0 %1780
  %v1782 = vperm.slane %v1580, 7
  %v1783 = vlaneseq
  %v1784 = vshrl.u32 %v1783, 7
  %1786 = vset.pattern.permute.xlu0 %v1784
  %1787 = vperm.xlu0 %1786, %v1782
  %v1788 = vpop.permute.xlu0 %1787
  %v1789 = vlaneseq
  %v1790 = vshrl.u32 %v1789, 7
  %v1791 = vadd.s32 %v1790, 8
  %1792 = vset.pattern.permute.xlu0 %v1791
  %1793 = vperm.xlu0 %1792, %v1782
  %v1794 = vpop.permute.xlu0 %1793
  %v1795 = vmul.f32 %v1593, %v275
  %v1796 = vmul.f32 %v1599, %v278
  %v1797 = vmul.f32 %v1606, %v281
  %v1798 = vmul.f32 %v1612, %v284
  %v1799 = vmul.f32 %v1619, %v287
  %v1800 = vmul.f32 %v1625, %v290
  %v1801 = vmul.f32 %v1632, %v293
  %v1802 = vmul.f32 %v1638, %v296
  %v1803 = vmul.f32 %v1645, %v299
  %v1804 = vmul.f32 %v1651, %v302
  %v1805 = vmul.f32 %v1658, %v305
  %v1806 = vmul.f32 %v1664, %v308
  %v1807 = vmul.f32 %v1671, %v311
  %v1808 = vmul.f32 %v1677, %v314
  %v1809 = vmul.f32 %v1684, %v317
  %v1810 = vmul.f32 %v1690, %v320
  %v1811 = vmul.f32 %v1697, %v323
  %v1812 = vmul.f32 %v1703, %v326
  %v1813 = vmul.f32 %v1710, %v329
  %v1814 = vmul.f32 %v1716, %v332
  %v1815 = vmul.f32 %v1723, %v335
  %v1816 = vmul.f32 %v1729, %v338
  %v1817 = vmul.f32 %v1736, %v341
  %v1818 = vmul.f32 %v1742, %v344
  %v1819 = vmul.f32 %v1749, %v347
  %v1820 = vmul.f32 %v1755, %v350
  %v1821 = vmul.f32 %v1762, %v353
  %v1822 = vmul.f32 %v1768, %v356
  %v1823 = vmul.f32 %v1775, %v359
  %v1824 = vmul.f32 %v1781, %v362
  %v1825 = vmul.f32 %v1788, %v365
  %v1826 = vmul.f32 %v1794, %v368
  %v1827 = vsel %vm587, %v1795, 0.0
  %v1828 = vsel %vm587, %v1796, 0.0
  %v1829 = vadd.f32 %v1827, %v1828
  %v1830 = vrot.slane %v1829, 4
  %v1831 = vadd.f32 %v1829, %v1830
  %v1832 = vrot.slane %v1831, 2
  %v1833 = vadd.f32 %v1831, %v1832
  %v1834 = vrot.slane %v1833, 1
  %v1835 = vadd.f32 %v1833, %v1834
  %v1836 = vsel %vm587, %v1797, 0.0
  %v1837 = vsel %vm587, %v1798, 0.0
  %v1838 = vadd.f32 %v1836, %v1837
  %v1839 = vrot.slane %v1838, 4
  %v1840 = vadd.f32 %v1838, %v1839
  %v1841 = vrot.slane %v1840, 2
  %v1842 = vadd.f32 %v1840, %v1841
  %v1843 = vrot.slane %v1842, 1
  %v1844 = vadd.f32 %v1842, %v1843
  %v1845 = vsel %vm587, %v1799, 0.0
  %v1846 = vsel %vm587, %v1800, 0.0
  %v1847 = vadd.f32 %v1845, %v1846
  %v1848 = vrot.slane %v1847, 4
  %v1849 = vadd.f32 %v1847, %v1848
  %v1850 = vrot.slane %v1849, 2
  %v1851 = vadd.f32 %v1849, %v1850
  %v1852 = vrot.slane %v1851, 1
  %v1853 = vadd.f32 %v1851, %v1852
  %v1854 = vsel %vm587, %v1801, 0.0
  %v1855 = vsel %vm587, %v1802, 0.0
  %v1856 = vadd.f32 %v1854, %v1855
  %v1857 = vrot.slane %v1856, 4
  %v1858 = vadd.f32 %v1856, %v1857
  %v1859 = vrot.slane %v1858, 2
  %v1860 = vadd.f32 %v1858, %v1859
  %v1861 = vrot.slane %v1860, 1
  %v1862 = vadd.f32 %v1860, %v1861
  %v1863 = vsel %vm587, %v1803, 0.0
  %v1864 = vsel %vm587, %v1804, 0.0
  %v1865 = vadd.f32 %v1863, %v1864
  %v1866 = vrot.slane %v1865, 4
  %v1867 = vadd.f32 %v1865, %v1866
  %v1868 = vrot.slane %v1867, 2
  %v1869 = vadd.f32 %v1867, %v1868
  %v1870 = vrot.slane %v1869, 1
  %v1871 = vadd.f32 %v1869, %v1870
  %v1872 = vsel %vm587, %v1805, 0.0
  %v1873 = vsel %vm587, %v1806, 0.0
  %v1874 = vadd.f32 %v1872, %v1873
  %v1875 = vrot.slane %v1874, 4
  %v1876 = vadd.f32 %v1874, %v1875
  %v1877 = vrot.slane %v1876, 2
  %v1878 = vadd.f32 %v1876, %v1877
  %v1879 = vrot.slane %v1878, 1
  %v1880 = vadd.f32 %v1878, %v1879
  %v1881 = vsel %vm587, %v1807, 0.0
  %v1882 = vsel %vm587, %v1808, 0.0
  %v1883 = vadd.f32 %v1881, %v1882
  %v1884 = vrot.slane %v1883, 4
  %v1885 = vadd.f32 %v1883, %v1884
  %v1886 = vrot.slane %v1885, 2
  %v1887 = vadd.f32 %v1885, %v1886
  %v1888 = vrot.slane %v1887, 1
  %v1889 = vadd.f32 %v1887, %v1888
  %v1890 = vsel %vm587, %v1809, 0.0
  %v1891 = vsel %vm587, %v1810, 0.0
  %v1892 = vadd.f32 %v1890, %v1891
  %v1893 = vrot.slane %v1892, 4
  %v1894 = vadd.f32 %v1892, %v1893
  %v1895 = vrot.slane %v1894, 2
  %v1896 = vadd.f32 %v1894, %v1895
  %v1897 = vrot.slane %v1896, 1
  %v1898 = vadd.f32 %v1896, %v1897
  %v1899 = vsel %vm587, %v1811, 0.0
  %v1900 = vsel %vm587, %v1812, 0.0
  %v1901 = vadd.f32 %v1899, %v1900
  %v1902 = vrot.slane %v1901, 4
  %v1903 = vadd.f32 %v1901, %v1902
  %v1904 = vrot.slane %v1903, 2
  %v1905 = vadd.f32 %v1903, %v1904
  %v1906 = vrot.slane %v1905, 1
  %v1907 = vadd.f32 %v1905, %v1906
  %v1908 = vsel %vm587, %v1813, 0.0
  %v1909 = vsel %vm587, %v1814, 0.0
  %v1910 = vadd.f32 %v1908, %v1909
  %v1911 = vrot.slane %v1910, 4
  %v1912 = vadd.f32 %v1910, %v1911
  %v1913 = vrot.slane %v1912, 2
  %v1914 = vadd.f32 %v1912, %v1913
  %v1915 = vrot.slane %v1914, 1
  %v1916 = vadd.f32 %v1914, %v1915
  %v1917 = vsel %vm587, %v1815, 0.0
  %v1918 = vsel %vm587, %v1816, 0.0
  %v1919 = vadd.f32 %v1917, %v1918
  %v1920 = vrot.slane %v1919, 4
  %v1921 = vadd.f32 %v1919, %v1920
  %v1922 = vrot.slane %v1921, 2
  %v1923 = vadd.f32 %v1921, %v1922
  %v1924 = vrot.slane %v1923, 1
  %v1925 = vadd.f32 %v1923, %v1924
  %v1926 = vsel %vm587, %v1817, 0.0
  %v1927 = vsel %vm587, %v1818, 0.0
  %v1928 = vadd.f32 %v1926, %v1927
  %v1929 = vrot.slane %v1928, 4
  %v1930 = vadd.f32 %v1928, %v1929
  %v1931 = vrot.slane %v1930, 2
  %v1932 = vadd.f32 %v1930, %v1931
  %v1933 = vrot.slane %v1932, 1
  %v1934 = vadd.f32 %v1932, %v1933
  %v1935 = vsel %vm587, %v1819, 0.0
  %v1936 = vsel %vm587, %v1820, 0.0
  %v1937 = vadd.f32 %v1935, %v1936
  %v1938 = vrot.slane %v1937, 4
  %v1939 = vadd.f32 %v1937, %v1938
  %v1940 = vrot.slane %v1939, 2
  %v1941 = vadd.f32 %v1939, %v1940
  %v1942 = vrot.slane %v1941, 1
  %v1943 = vadd.f32 %v1941, %v1942
  %v1944 = vsel %vm587, %v1821, 0.0
  %v1945 = vsel %vm587, %v1822, 0.0
  %v1946 = vadd.f32 %v1944, %v1945
  %v1947 = vrot.slane %v1946, 4
  %v1948 = vadd.f32 %v1946, %v1947
  %v1949 = vrot.slane %v1948, 2
  %v1950 = vadd.f32 %v1948, %v1949
  %v1951 = vrot.slane %v1950, 1
  %v1952 = vadd.f32 %v1950, %v1951
  %v1953 = vsel %vm587, %v1823, 0.0
  %v1954 = vsel %vm587, %v1824, 0.0
  %v1955 = vadd.f32 %v1953, %v1954
  %v1956 = vrot.slane %v1955, 4
  %v1957 = vadd.f32 %v1955, %v1956
  %v1958 = vrot.slane %v1957, 2
  %v1959 = vadd.f32 %v1957, %v1958
  %v1960 = vrot.slane %v1959, 1
  %v1961 = vadd.f32 %v1959, %v1960
  %v1962 = vsel %vm587, %v1825, 0.0
  %v1963 = vsel %vm587, %v1826, 0.0
  %v1964 = vadd.f32 %v1962, %v1963
  %v1965 = vrot.slane %v1964, 4
  %v1966 = vadd.f32 %v1964, %v1965
  %v1967 = vrot.slane %v1966, 2
  %v1968 = vadd.f32 %v1966, %v1967
  %v1969 = vrot.slane %v1968, 1
  %v1970 = vadd.f32 %v1968, %v1969
  %1971 = vrot.lane.b32.xlu0 %v150, 88
  %v1972 = vpop.permute.xlu0 %1971
  %1973 = vrot.lane.b32.xlu0 %v153, 88
  %v1974 = vpop.permute.xlu0 %1973
  %v1993 = vsel %vm634, %v1844, %v1835
  %v1994 = vsel %vm636, %v1853, %v1993
  %v1995 = vsel %vm638, %v1862, %v1994
  %v1996 = vsel %vm640, %v1871, %v1995
  %v1997 = vsel %vm642, %v1880, %v1996
  %v1998 = vsel %vm644, %v1889, %v1997
  %v1999 = vsel %vm646, %v1898, %v1998
  %v2000 = vsel %vm634, %v1916, %v1907
  %v2001 = vsel %vm636, %v1925, %v2000
  %v2002 = vsel %vm638, %v1934, %v2001
  %v2003 = vsel %vm640, %v1943, %v2002
  %v2004 = vsel %vm642, %v1952, %v2003
  %v2005 = vsel %vm644, %v1961, %v2004
  %v2006 = vsel %vm646, %v1970, %v2005
  %2007 = vrot.lane.b32.xlu0 %v1999, 120
  %v2008 = vpop.permute.xlu0 %2007
  %2009 = vrot.lane.b32.xlu0 %v2006, 120
  %v2010 = vpop.permute.xlu0 %2009
  %v2014 = vsel %vm692, %v1579, 0
  %v2017 = vsel %vm692, %v1580, 0
  %2019 = vmatpush.msra.mxu0 0.0
  %2020 = vmatpush.msra.mxu0 0.0
  %2021 = vmatpush.msra.mxu0 0.0
  %2022 = vmatpush.msra.mxu0 0.0
  %2023 = vmatpush.msra.mxu0 0.0
  %2024 = vmatpush.msra.mxu0 0.0
  %2025 = vmatpush.msra.mxu0 0.0
  %2026 = vmatpush.msra.mxu0 0.0
  %2027 = vmatpush.msra.mxu0 0.0
  %2028 = vmatpush.msra.mxu0 0.0
  %2029 = vmatpush.msra.mxu0 0.0
  %2030 = vmatpush.msra.mxu0 0.0
  %2031 = vmatpush.msra.mxu0 0.0
  %2032 = vmatpush.msra.mxu0 0.0
  %2033 = vmatpush.msra.mxu0 %v1974
  %2034 = vmatpush.msra.mxu0 %v1972
  %2035 = vmatmul.f32.gmra.mxu0 %v2014
  %v2036 = vpop.f32.mrf.mxu0
  %v2037 = vadd.f32 %v2008, %v2036
  %2038 = vmatmul.f32.gmra.mxu0 %v2017
  %v2039 = vpop.f32.mrf.mxu0
  %v2040 = vadd.f32 %v2010, %v2039
  %2041 = vdwg.mxu0
  %vm2042 = vcmp.gt.f32.partialorder %v1583, 0.0
  %vm2043 = vcmp.gt.f32.partialorder %v1586, 0.0
  %v2044 = vsel %vm2042, %v1583, 1.0
  %v2045 = vsel %vm2043, %v1586, 1.0
  %v2046 = vrcp.pop %v2044
  %v2047 = vmul.f32 %v2044, %v2046
  %v2048 = vsub.f32 1.0, %v2047
  %v2049 = vmul.f32 %v2046, %v2048
  %v2050 = vadd.f32 %v2046, %v2049
  %vm2051 = vweird.f32 %v2044
  %vm2052 = vweird.f32 %v2046
  %vm2053 = vmor %vm2051, %vm2052
  %v2054 = vsel %vm2053, %v2046, %v2050
  %v2055 = vand.u32 2147483647, %v2044
  %vm2056 = vcmp.eq.f32.partialorder %v2055, 8.507059e+37
  %v2057 = vand.u32 %v2044, 2147483648
  %v2058 = vor.u32 1.1754944e-38, %v2057
  %v2059 = vsel %vm2056, %v2058, %v2054
  %v2060 = vmul.f32 %v2037, %v2059
  %v2061 = vrcp.pop %v2045
  %v2062 = vmul.f32 %v2045, %v2061
  %v2063 = vsub.f32 1.0, %v2062
  %v2064 = vmul.f32 %v2061, %v2063
  %v2065 = vadd.f32 %v2061, %v2064
  %vm2066 = vweird.f32 %v2045
  %vm2067 = vweird.f32 %v2061
  %vm2068 = vmor %vm2066, %vm2067
  %v2069 = vsel %vm2068, %v2061, %v2065
  %v2070 = vand.u32 2147483647, %v2045
  %vm2071 = vcmp.eq.f32.partialorder %v2070, 8.507059e+37
  %v2072 = vand.u32 %v2045, 2147483648
  %v2073 = vor.u32 1.1754944e-38, %v2072
  %v2074 = vsel %vm2071, %v2073, %v2069
  %v2075 = vmul.f32 %v2040, %v2074
  %v2076 = vsel %vm2042, 1, 0
  %v2077 = vsel %vm2043, 1, 0
  %vm2078 = vcmp.eq.s32.totalorder %v2076, 1
  %vm2079 = vcmp.eq.s32.totalorder %v2077, 1
  %v2080 = vsel %vm2078, %v2060, 0.0
  %v2081 = vsel %vm2079, %v2075, 0.0
  %2084 = vrot.lane.b32.xlu0 %v2080, 8
  %v2085 = vpop.permute.xlu0 %2084
  %2086 = vrot.lane.b32.xlu0 %v2081, 8
  %v2087 = vpop.permute.xlu0 %2086
  %v2090 = vsel %vm125, %v1202, %v2085
  %v2091 = vsel %vm125, %v1203, %v2087
  %v2092 = vld [vmem:[%s8] sm:$0xff]
  %v2093 = vld [vmem:[%s8 + $0x8] sm:$0xff]
  %v2094 = vld [vmem:[%s8 + $0x10] sm:$0xff]
  %v2095 = vld [vmem:[%s8 + $0x18] sm:$0xff]
  %v2096 = vld [vmem:[%s8 + $0x20] sm:$0xff]
  %v2097 = vld [vmem:[%s8 + $0x28] sm:$0xff]
  %2098 = vrot.lane.b32.xlu0 %v150, 80
  %v2099 = vpop.permute.xlu0 %2098
  %2100 = vrot.lane.b32.xlu0 %v153, 80
  %v2101 = vpop.permute.xlu0 %2100
  %v2102 = vsel %vm692, %v2099, 0
  %v2104 = vsel %vm692, %v2101, 0
  %2106 = vmatpush.msra.mxu0 0.0
  %2107 = vmatpush.msra.mxu0 0.0
  %2108 = vmatpush.msra.mxu0 0.0
  %2109 = vmatpush.msra.mxu0 0.0
  %2110 = vmatpush.msra.mxu0 0.0
  %2111 = vmatpush.msra.mxu0 0.0
  %2112 = vmatpush.msra.mxu0 0.0
  %2113 = vmatpush.msra.mxu0 0.0
  %2114 = vmatpush.msra.mxu0 0.0
  %2115 = vmatpush.msra.mxu0 0.0
  %2116 = vmatpush.msra.mxu0 0.0
  %2117 = vmatpush.msra.mxu0 0.0
  %2118 = vmatpush.msra.mxu0 0.0
  %2119 = vmatpush.msra.mxu0 0.0
  %2120 = vmatpush.msra.mxu0 %v2095
  %2121 = vmatpush.msra.mxu0 %v2094
  %2122 = vmatmul.f32.gmra.mxu0 %v2102
  %v2123 = vpop.f32.mrf.mxu0
  %v2124 = vadd.f32 0.0, %v2123
  %2125 = vmatmul.f32.gmra.mxu0 %v2104
  %v2126 = vpop.f32.mrf.mxu0
  %v2127 = vadd.f32 0.0, %v2126
  %2128 = vdwg.mxu0
  %v2130 = vsel %vm692, %v2090, 0
  %v2133 = vsel %vm692, %v2091, 0
  %2135 = vmatpush.msra.mxu0 0.0
  %2136 = vmatpush.msra.mxu0 0.0
  %2137 = vmatpush.msra.mxu0 0.0
  %2138 = vmatpush.msra.mxu0 0.0
  %2139 = vmatpush.msra.mxu0 0.0
  %2140 = vmatpush.msra.mxu0 0.0
  %2141 = vmatpush.msra.mxu0 0.0
  %2142 = vmatpush.msra.mxu0 0.0
  %2143 = vmatpush.msra.mxu0 0.0
  %2144 = vmatpush.msra.mxu0 0.0
  %2145 = vmatpush.msra.mxu0 0.0
  %2146 = vmatpush.msra.mxu0 0.0
  %2147 = vmatpush.msra.mxu0 0.0
  %2148 = vmatpush.msra.mxu0 0.0
  %2149 = vmatpush.msra.mxu0 %v2093
  %2150 = vmatpush.msra.mxu0 %v2092
  %2151 = vmatmul.f32.gmra.mxu0 %v2130
  %v2152 = vpop.f32.mrf.mxu0
  %v2153 = vadd.f32 %v2124, %v2152
  %2154 = vmatmul.f32.gmra.mxu0 %v2133
  %v2155 = vpop.f32.mrf.mxu0
  %v2156 = vadd.f32 %v2127, %v2155
  %2157 = vdwg.mxu0
  %v2160 = vsub.f32 %v2090, %v2099
  %v2161 = vsub.f32 %v2091, %v2101
  %v2163 = vsel %vm692, %v2160, 0
  %v2166 = vsel %vm692, %v2161, 0
  %2168 = vmatpush.msra.mxu0 0.0
  %2169 = vmatpush.msra.mxu0 0.0
  %2170 = vmatpush.msra.mxu0 0.0
  %2171 = vmatpush.msra.mxu0 0.0
  %2172 = vmatpush.msra.mxu0 0.0
  %2173 = vmatpush.msra.mxu0 0.0
  %2174 = vmatpush.msra.mxu0 0.0
  %2175 = vmatpush.msra.mxu0 0.0
  %2176 = vmatpush.msra.mxu0 0.0
  %2177 = vmatpush.msra.mxu0 0.0
  %2178 = vmatpush.msra.mxu0 0.0
  %2179 = vmatpush.msra.mxu0 0.0
  %2180 = vmatpush.msra.mxu0 0.0
  %2181 = vmatpush.msra.mxu0 0.0
  %2182 = vmatpush.msra.mxu0 %v2097
  %2183 = vmatpush.msra.mxu0 %v2096
  %2184 = vmatmul.f32.gmra.mxu0 %v2163
  %v2185 = vpop.f32.mrf.mxu0
  %v2186 = vadd.f32 0.0, %v2185
  %2187 = vmatmul.f32.gmra.mxu0 %v2166
  %v2188 = vpop.f32.mrf.mxu0
  %v2189 = vadd.f32 0.0, %v2188
  %2190 = vdwg.mxu0
  %v2191 = vadd.f32 %v2153, %v2186
  %v2192 = vadd.f32 %v2156, %v2189
  %v2193 = vxor.u32 %v2191, 2147483648
  %v2194 = vxor.u32 %v2192, 2147483648
  %v2195 = vmul.f32 %v2193, 1.442695
  %v2196 = vpow.pop %v2195
  %v2197 = vmul.f32 %v2194, 1.442695
  %v2198 = vpow.pop %v2197
  %v2199 = vadd.f32 %v2196, 1.0
  %v2200 = vadd.f32 %v2198, 1.0
  %v2201 = vrcp.pop %v2199
  %v2202 = vmul.f32 %v2199, %v2201
  %v2203 = vsub.f32 1.0, %v2202
  %v2204 = vmul.f32 %v2201, %v2203
  %v2205 = vadd.f32 %v2201, %v2204
  %vm2206 = vweird.f32 %v2199
  %vm2207 = vweird.f32 %v2201
  %vm2208 = vmor %vm2206, %vm2207
  %v2209 = vsel %vm2208, %v2201, %v2205
  %v2210 = vand.u32 2147483647, %v2199
  %vm2211 = vcmp.eq.f32.partialorder %v2210, 8.507059e+37
  %v2212 = vand.u32 %v2199, 2147483648
  %v2213 = vor.u32 1.1754944e-38, %v2212
  %v2214 = vsel %vm2211, %v2213, %v2209
  %v2215 = vmul.f32 1.0, %v2214
  %v2216 = vrcp.pop %v2200
  %v2217 = vmul.f32 %v2200, %v2216
  %v2218 = vsub.f32 1.0, %v2217
  %v2219 = vmul.f32 %v2216, %v2218
  %v2220 = vadd.f32 %v2216, %v2219
  %vm2221 = vweird.f32 %v2200
  %vm2222 = vweird.f32 %v2216
  %vm2223 = vmor %vm2221, %vm2222
  %v2224 = vsel %vm2223, %v2216, %v2220
  %v2225 = vand.u32 2147483647, %v2200
  %vm2226 = vcmp.eq.f32.partialorder %v2225, 8.507059e+37
  %v2227 = vand.u32 %v2200, 2147483648
  %v2228 = vor.u32 1.1754944e-38, %v2227
  %v2229 = vsel %vm2226, %v2228, %v2224
  %v2230 = vmul.f32 1.0, %v2229
  %2232 = vset.pattern.permute.xlu0 0
  %2233 = vperm.xlu0 %2232, %v2215
  %v2234 = vpop.permute.xlu0 %2233
  %2237 = vset.pattern.permute.xlu0 0
  %2238 = vperm.xlu0 %2237, %v2230
  %v2239 = vpop.permute.xlu0 %2238
  %v2241 = vmul.f32 %v2234, %v150
  %v2242 = vmul.f32 %v2239, %v153
  %v2243 = vsub.f32 1.0, %v2215
  %v2244 = vsub.f32 1.0, %v2230
  %2246 = vset.pattern.permute.xlu0 0
  %2247 = vperm.xlu0 %2246, %v2243
  %v2248 = vpop.permute.xlu0 %2247
  %2251 = vset.pattern.permute.xlu0 0
  %2252 = vperm.xlu0 %2251, %v2244
  %v2253 = vpop.permute.xlu0 %2252
  %v2255 = vmul.f32 %v2248, %v2090
  %v2256 = vmul.f32 %v2253, %v2091
  %2259 = vrot.lane.b32.xlu0 %v2255, 48
  %v2260 = vpop.permute.xlu0 %2259
  %2261 = vrot.lane.b32.xlu0 %v2256, 48
  %v2262 = vpop.permute.xlu0 %2261
  %v2265 = vadd.f32 %v2241, %v2260
  %v2266 = vadd.f32 %v2242, %v2262
  %v2267 = vld [vmem:[%s9] sm:$0xff]
  %v2268 = vld [vmem:[%s9 + $0x8] sm:$0xff]
  %v2269 = vld [vmem:[%s10] sm:$0x1]
  %v2271 = vperm.slane %v2269, 0
  %2275 = vrot.lane.b32.xlu0 %v2265, 80
  %v2276 = vpop.permute.xlu0 %2275
  %2277 = vrot.lane.b32.xlu0 %v2266, 80
  %v2278 = vpop.permute.xlu0 %2277
  %v2279 = vsel %vm692, %v2276, 0
  %v2281 = vsel %vm692, %v2278, 0
  %2283 = vmatpush.msra.mxu0 0.0
  %2284 = vmatpush.msra.mxu0 0.0
  %2285 = vmatpush.msra.mxu0 0.0
  %2286 = vmatpush.msra.mxu0 0.0
  %2287 = vmatpush.msra.mxu0 0.0
  %2288 = vmatpush.msra.mxu0 0.0
  %2289 = vmatpush.msra.mxu0 0.0
  %2290 = vmatpush.msra.mxu0 0.0
  %2291 = vmatpush.msra.mxu0 0.0
  %2292 = vmatpush.msra.mxu0 0.0
  %2293 = vmatpush.msra.mxu0 0.0
  %2294 = vmatpush.msra.mxu0 0.0
  %2295 = vmatpush.msra.mxu0 0.0
  %2296 = vmatpush.msra.mxu0 0.0
  %2297 = vmatpush.msra.mxu0 %v2268
  %2298 = vmatpush.msra.mxu0 %v2267
  %2299 = vmatmul.f32.gmra.mxu0 %v2279
  %v2300 = vpop.f32.mrf.mxu0
  %v2301 = vadd.f32 %v2271, %v2300
  %2302 = vmatmul.f32.gmra.mxu0 %v2281
  %v2303 = vpop.f32.mrf.mxu0
  %v2304 = vadd.f32 %v2271, %v2303
  %2305 = vdwg.mxu0
  %v2306 = vld [vmem:[%s11] sm:$0xf]
  %v2308 = vsel %vm253, %v2306, 0
  %2310 = vmatpush.msra.mxu0 0.0
  %2311 = vmatpush.msra.mxu0 0.0
  %2312 = vmatpush.msra.mxu0 0.0
  %2313 = vmatpush.msra.mxu0 0.0
  %2314 = vmatpush.msra.mxu0 0.0
  %2315 = vmatpush.msra.mxu0 0.0
  %2316 = vmatpush.msra.mxu0 0.0
  %2317 = vmatpush.msra.mxu0 0.0
  %2318 = vmatpush.msra.mxu0 0.0
  %2319 = vmatpush.msra.mxu0 0.0
  %2320 = vmatpush.msra.mxu0 0.0
  %2321 = vmatpush.msra.mxu0 0.0
  %2322 = vmatpush.msra.mxu0 0.0
  %2323 = vmatpush.msra.mxu0 0.0
  %2324 = vmatpush.msra.mxu0 0.0
  %2325 = vmatpush.msra.mxu0 %v2308
  %2326 = vmatmul.f32.gmra.mxu0 %v158
  %v2327 = vpop.f32.mrf.mxu0
  %v2328 = vadd.f32 0.0, %v2327
  %2329 = vmatmul.f32.gmra.mxu0 %v161
  %v2330 = vpop.f32.mrf.mxu0
  %v2331 = vadd.f32 0.0, %v2330
  %2332 = vmatmul.f32.gmra.mxu0 %v164
  %v2333 = vpop.f32.mrf.mxu0
  %v2334 = vadd.f32 0.0, %v2333
  %2335 = vmatmul.f32.gmra.mxu0 %v167
  %v2336 = vpop.f32.mrf.mxu0
  %v2337 = vadd.f32 0.0, %v2336
  %2338 = vmatmul.f32.gmra.mxu0 %v170
  %v2339 = vpop.f32.mrf.mxu0
  %v2340 = vadd.f32 0.0, %v2339
  %2341 = vmatmul.f32.gmra.mxu0 %v173
  %v2342 = vpop.f32.mrf.mxu0
  %v2343 = vadd.f32 0.0, %v2342
  %2344 = vmatmul.f32.gmra.mxu0 %v176
  %v2345 = vpop.f32.mrf.mxu0
  %v2346 = vadd.f32 0.0, %v2345
  %2347 = vmatmul.f32.gmra.mxu0 %v179
  %v2348 = vpop.f32.mrf.mxu0
  %v2349 = vadd.f32 0.0, %v2348
  %2350 = vmatmul.f32.gmra.mxu0 %v182
  %v2351 = vpop.f32.mrf.mxu0
  %v2352 = vadd.f32 0.0, %v2351
  %2353 = vmatmul.f32.gmra.mxu0 %v185
  %v2354 = vpop.f32.mrf.mxu0
  %v2355 = vadd.f32 0.0, %v2354
  %2356 = vmatmul.f32.gmra.mxu0 %v188
  %v2357 = vpop.f32.mrf.mxu0
  %v2358 = vadd.f32 0.0, %v2357
  %2359 = vmatmul.f32.gmra.mxu0 %v191
  %v2360 = vpop.f32.mrf.mxu0
  %v2361 = vadd.f32 0.0, %v2360
  %2362 = vmatmul.f32.gmra.mxu0 %v194
  %v2363 = vpop.f32.mrf.mxu0
  %v2364 = vadd.f32 0.0, %v2363
  %2365 = vmatmul.f32.gmra.mxu0 %v197
  %v2366 = vpop.f32.mrf.mxu0
  %v2367 = vadd.f32 0.0, %v2366
  %2368 = vmatmul.f32.gmra.mxu0 %v200
  %v2369 = vpop.f32.mrf.mxu0
  %v2370 = vadd.f32 0.0, %v2369
  %2371 = vmatmul.f32.gmra.mxu0 %v203
  %v2372 = vpop.f32.mrf.mxu0
  %v2373 = vadd.f32 0.0, %v2372
  %2374 = vmatmul.f32.gmra.mxu0 %v206
  %v2375 = vpop.f32.mrf.mxu0
  %v2376 = vadd.f32 0.0, %v2375
  %2377 = vmatmul.f32.gmra.mxu0 %v209
  %v2378 = vpop.f32.mrf.mxu0
  %v2379 = vadd.f32 0.0, %v2378
  %2380 = vmatmul.f32.gmra.mxu0 %v212
  %v2381 = vpop.f32.mrf.mxu0
  %v2382 = vadd.f32 0.0, %v2381
  %2383 = vmatmul.f32.gmra.mxu0 %v215
  %v2384 = vpop.f32.mrf.mxu0
  %v2385 = vadd.f32 0.0, %v2384
  %2386 = vmatmul.f32.gmra.mxu0 %v218
  %v2387 = vpop.f32.mrf.mxu0
  %v2388 = vadd.f32 0.0, %v2387
  %2389 = vmatmul.f32.gmra.mxu0 %v221
  %v2390 = vpop.f32.mrf.mxu0
  %v2391 = vadd.f32 0.0, %v2390
  %2392 = vmatmul.f32.gmra.mxu0 %v224
  %v2393 = vpop.f32.mrf.mxu0
  %v2394 = vadd.f32 0.0, %v2393
  %2395 = vmatmul.f32.gmra.mxu0 %v227
  %v2396 = vpop.f32.mrf.mxu0
  %v2397 = vadd.f32 0.0, %v2396
  %2398 = vmatmul.f32.gmra.mxu0 %v230
  %v2399 = vpop.f32.mrf.mxu0
  %v2400 = vadd.f32 0.0, %v2399
  %2401 = vmatmul.f32.gmra.mxu0 %v233
  %v2402 = vpop.f32.mrf.mxu0
  %v2403 = vadd.f32 0.0, %v2402
  %2404 = vmatmul.f32.gmra.mxu0 %v236
  %v2405 = vpop.f32.mrf.mxu0
  %v2406 = vadd.f32 0.0, %v2405
  %2407 = vmatmul.f32.gmra.mxu0 %v239
  %v2408 = vpop.f32.mrf.mxu0
  %v2409 = vadd.f32 0.0, %v2408
  %2410 = vmatmul.f32.gmra.mxu0 %v242
  %v2411 = vpop.f32.mrf.mxu0
  %v2412 = vadd.f32 0.0, %v2411
  %2413 = vmatmul.f32.gmra.mxu0 %v245
  %v2414 = vpop.f32.mrf.mxu0
  %v2415 = vadd.f32 0.0, %v2414
  %2416 = vmatmul.f32.gmra.mxu0 %v248
  %v2417 = vpop.f32.mrf.mxu0
  %v2418 = vadd.f32 0.0, %v2417
  %2419 = vmatmul.f32.gmra.mxu0 %v251
  %v2420 = vpop.f32.mrf.mxu0
  %v2421 = vadd.f32 0.0, %v2420
  %2422 = vdwg.mxu0
  %v2425 = vrot.slane %v2301, 1
  %v2426 = vrot.slane %v2301, 2
  %v2427 = vrot.slane %v2301, 3
  %v2428 = vrot.slane %v2301, 4
  %v2429 = vrot.slane %v2301, 5
  %v2430 = vrot.slane %v2301, 6
  %v2431 = vrot.slane %v2301, 7
  %v2432 = vrot.slane %v2304, 1
  %v2433 = vrot.slane %v2304, 2
  %v2434 = vrot.slane %v2304, 3
  %v2435 = vrot.slane %v2304, 4
  %v2436 = vrot.slane %v2304, 5
  %v2437 = vrot.slane %v2304, 6
  %v2438 = vrot.slane %v2304, 7
  %v2439 = vperm.slane %v2301, 0
  %v2440 = vperm.slane %v2425, 0
  %v2441 = vperm.slane %v2426, 0
  %v2442 = vperm.slane %v2427, 0
  %v2443 = vperm.slane %v2428, 0
  %v2444 = vperm.slane %v2429, 0
  %v2445 = vperm.slane %v2430, 0
  %v2446 = vperm.slane %v2431, 0
  %v2447 = vperm.slane %v2304, 0
  %v2448 = vperm.slane %v2432, 0
  %v2449 = vperm.slane %v2433, 0
  %v2450 = vperm.slane %v2434, 0
  %v2451 = vperm.slane %v2435, 0
  %v2452 = vperm.slane %v2436, 0
  %v2453 = vperm.slane %v2437, 0
  %v2454 = vperm.slane %v2438, 0
  %v2471 = vmul.f32 %v2439, %v2328
  %v2472 = vmul.f32 %v2439, %v2331
  %v2473 = vmul.f32 %v2440, %v2334
  %v2474 = vmul.f32 %v2440, %v2337
  %v2475 = vmul.f32 %v2441, %v2340
  %v2476 = vmul.f32 %v2441, %v2343
  %v2477 = vmul.f32 %v2442, %v2346
  %v2478 = vmul.f32 %v2442, %v2349
  %v2479 = vmul.f32 %v2443, %v2352
  %v2480 = vmul.f32 %v2443, %v2355
  %v2481 = vmul.f32 %v2444, %v2358
  %v2482 = vmul.f32 %v2444, %v2361
  %v2483 = vmul.f32 %v2445, %v2364
  %v2484 = vmul.f32 %v2445, %v2367
  %v2485 = vmul.f32 %v2446, %v2370
  %v2486 = vmul.f32 %v2446, %v2373
  %v2487 = vmul.f32 %v2447, %v2376
  %v2488 = vmul.f32 %v2447, %v2379
  %v2489 = vmul.f32 %v2448, %v2382
  %v2490 = vmul.f32 %v2448, %v2385
  %v2491 = vmul.f32 %v2449, %v2388
  %v2492 = vmul.f32 %v2449, %v2391
  %v2493 = vmul.f32 %v2450, %v2394
  %v2494 = vmul.f32 %v2450, %v2397
  %v2495 = vmul.f32 %v2451, %v2400
  %v2496 = vmul.f32 %v2451, %v2403
  %v2497 = vmul.f32 %v2452, %v2406
  %v2498 = vmul.f32 %v2452, %v2409
  %v2499 = vmul.f32 %v2453, %v2412
  %v2500 = vmul.f32 %v2453, %v2415
  %v2501 = vmul.f32 %v2454, %v2418
  %v2502 = vmul.f32 %v2454, %v2421
  %v2503 = vsel %vm125, %v2471, 0.0
  %2504 = vadd.xlane.f32.xlu0 %v2503
  %v2505 = vpop.xlane.xlu0 %2504
  %v2506 = vsel %vm125, %v2472, 0.0
  %2507 = vadd.xlane.f32.xlu0 %v2506
  %v2508 = vpop.xlane.xlu0 %2507
  %v2509 = vsel %vm125, %v2473, 0.0
  %2510 = vadd.xlane.f32.xlu0 %v2509
  %v2511 = vpop.xlane.xlu0 %2510
  %v2512 = vsel %vm125, %v2474, 0.0
  %2513 = vadd.xlane.f32.xlu0 %v2512
  %v2514 = vpop.xlane.xlu0 %2513
  %v2515 = vsel %vm125, %v2475, 0.0
  %2516 = vadd.xlane.f32.xlu0 %v2515
  %v2517 = vpop.xlane.xlu0 %2516
  %v2518 = vsel %vm125, %v2476, 0.0
  %2519 = vadd.xlane.f32.xlu0 %v2518
  %v2520 = vpop.xlane.xlu0 %2519
  %v2521 = vsel %vm125, %v2477, 0.0
  %2522 = vadd.xlane.f32.xlu0 %v2521
  %v2523 = vpop.xlane.xlu0 %2522
  %v2524 = vsel %vm125, %v2478, 0.0
  %2525 = vadd.xlane.f32.xlu0 %v2524
  %v2526 = vpop.xlane.xlu0 %2525
  %v2527 = vsel %vm125, %v2479, 0.0
  %2528 = vadd.xlane.f32.xlu0 %v2527
  %v2529 = vpop.xlane.xlu0 %2528
  %v2530 = vsel %vm125, %v2480, 0.0
  %2531 = vadd.xlane.f32.xlu0 %v2530
  %v2532 = vpop.xlane.xlu0 %2531
  %v2533 = vsel %vm125, %v2481, 0.0
  %2534 = vadd.xlane.f32.xlu0 %v2533
  %v2535 = vpop.xlane.xlu0 %2534
  %v2536 = vsel %vm125, %v2482, 0.0
  %2537 = vadd.xlane.f32.xlu0 %v2536
  %v2538 = vpop.xlane.xlu0 %2537
  %v2539 = vsel %vm125, %v2483, 0.0
  %2540 = vadd.xlane.f32.xlu0 %v2539
  %v2541 = vpop.xlane.xlu0 %2540
  %v2542 = vsel %vm125, %v2484, 0.0
  %2543 = vadd.xlane.f32.xlu0 %v2542
  %v2544 = vpop.xlane.xlu0 %2543
  %v2545 = vsel %vm125, %v2485, 0.0
  %2546 = vadd.xlane.f32.xlu0 %v2545
  %v2547 = vpop.xlane.xlu0 %2546
  %v2548 = vsel %vm125, %v2486, 0.0
  %2549 = vadd.xlane.f32.xlu0 %v2548
  %v2550 = vpop.xlane.xlu0 %2549
  %v2551 = vsel %vm125, %v2487, 0.0
  %2552 = vadd.xlane.f32.xlu0 %v2551
  %v2553 = vpop.xlane.xlu0 %2552
  %v2554 = vsel %vm125, %v2488, 0.0
  %2555 = vadd.xlane.f32.xlu0 %v2554
  %v2556 = vpop.xlane.xlu0 %2555
  %v2557 = vsel %vm125, %v2489, 0.0
  %2558 = vadd.xlane.f32.xlu0 %v2557
  %v2559 = vpop.xlane.xlu0 %2558
  %v2560 = vsel %vm125, %v2490, 0.0
  %2561 = vadd.xlane.f32.xlu0 %v2560
  %v2562 = vpop.xlane.xlu0 %2561
  %v2563 = vsel %vm125, %v2491, 0.0
  %2564 = vadd.xlane.f32.xlu0 %v2563
  %v2565 = vpop.xlane.xlu0 %2564
  %v2566 = vsel %vm125, %v2492, 0.0
  %2567 = vadd.xlane.f32.xlu0 %v2566
  %v2568 = vpop.xlane.xlu0 %2567
  %v2569 = vsel %vm125, %v2493, 0.0
  %2570 = vadd.xlane.f32.xlu0 %v2569
  %v2571 = vpop.xlane.xlu0 %2570
  %v2572 = vsel %vm125, %v2494, 0.0
  %2573 = vadd.xlane.f32.xlu0 %v2572
  %v2574 = vpop.xlane.xlu0 %2573
  %v2575 = vsel %vm125, %v2495, 0.0
  %2576 = vadd.xlane.f32.xlu0 %v2575
  %v2577 = vpop.xlane.xlu0 %2576
  %v2578 = vsel %vm125, %v2496, 0.0
  %2579 = vadd.xlane.f32.xlu0 %v2578
  %v2580 = vpop.xlane.xlu0 %2579
  %v2581 = vsel %vm125, %v2497, 0.0
  %2582 = vadd.xlane.f32.xlu0 %v2581
  %v2583 = vpop.xlane.xlu0 %2582
  %v2584 = vsel %vm125, %v2498, 0.0
  %2585 = vadd.xlane.f32.xlu0 %v2584
  %v2586 = vpop.xlane.xlu0 %2585
  %v2587 = vsel %vm125, %v2499, 0.0
  %2588 = vadd.xlane.f32.xlu0 %v2587
  %v2589 = vpop.xlane.xlu0 %2588
  %v2590 = vsel %vm125, %v2500, 0.0
  %2591 = vadd.xlane.f32.xlu0 %v2590
  %v2592 = vpop.xlane.xlu0 %2591
  %v2593 = vsel %vm125, %v2501, 0.0
  %2594 = vadd.xlane.f32.xlu0 %v2593
  %v2595 = vpop.xlane.xlu0 %2594
  %v2596 = vsel %vm125, %v2502, 0.0
  %2597 = vadd.xlane.f32.xlu0 %v2596
  %v2598 = vpop.xlane.xlu0 %2597
  %2599 = vrot.lane.b32.xlu0 %v2301, 112
  %v2600 = vpop.permute.xlu0 %2599
  %2601 = vrot.lane.b32.xlu0 %v2304, 112
  %v2602 = vpop.permute.xlu0 %2601
  %v2635 = vperm.slane %v2505, %v583
  %v2636 = vperm.slane %v2508, %v585
  %v2637 = vsel %vm587, %v2636, %v2635
  %v2638 = vperm.slane %v2511, %v583
  %v2639 = vperm.slane %v2514, %v585
  %v2640 = vsel %vm587, %v2639, %v2638
  %v2641 = vperm.slane %v2517, %v583
  %v2642 = vperm.slane %v2520, %v585
  %v2643 = vsel %vm587, %v2642, %v2641
  %v2644 = vperm.slane %v2523, %v583
  %v2645 = vperm.slane %v2526, %v585
  %v2646 = vsel %vm587, %v2645, %v2644
  %v2647 = vperm.slane %v2529, %v583
  %v2648 = vperm.slane %v2532, %v585
  %v2649 = vsel %vm587, %v2648, %v2647
  %v2650 = vperm.slane %v2535, %v583
  %v2651 = vperm.slane %v2538, %v585
  %v2652 = vsel %vm587, %v2651, %v2650
  %v2653 = vperm.slane %v2541, %v583
  %v2654 = vperm.slane %v2544, %v585
  %v2655 = vsel %vm587, %v2654, %v2653
  %v2656 = vperm.slane %v2547, %v583
  %v2657 = vperm.slane %v2550, %v585
  %v2658 = vsel %vm587, %v2657, %v2656
  %v2659 = vperm.slane %v2553, %v583
  %v2660 = vperm.slane %v2556, %v585
  %v2661 = vsel %vm587, %v2660, %v2659
  %v2662 = vperm.slane %v2559, %v583
  %v2663 = vperm.slane %v2562, %v585
  %v2664 = vsel %vm587, %v2663, %v2662
  %v2665 = vperm.slane %v2565, %v583
  %v2666 = vperm.slane %v2568, %v585
  %v2667 = vsel %vm587, %v2666, %v2665
  %v2668 = vperm.slane %v2571, %v583
  %v2669 = vperm.slane %v2574, %v585
  %v2670 = vsel %vm587, %v2669, %v2668
  %v2671 = vperm.slane %v2577, %v583
  %v2672 = vperm.slane %v2580, %v585
  %v2673 = vsel %vm587, %v2672, %v2671
  %v2674 = vperm.slane %v2583, %v583
  %v2675 = vperm.slane %v2586, %v585
  %v2676 = vsel %vm587, %v2675, %v2674
  %v2677 = vperm.slane %v2589, %v583
  %v2678 = vperm.slane %v2592, %v585
  %v2679 = vsel %vm587, %v2678, %v2677
  %v2680 = vperm.slane %v2595, %v583
  %v2681 = vperm.slane %v2598, %v585
  %v2682 = vsel %vm587, %v2681, %v2680
  %v2683 = vsel %vm634, %v2640, %v2637
  %v2684 = vsel %vm636, %v2643, %v2683
  %v2685 = vsel %vm638, %v2646, %v2684
  %v2686 = vsel %vm640, %v2649, %v2685
  %v2687 = vsel %vm642, %v2652, %v2686
  %v2688 = vsel %vm644, %v2655, %v2687
  %v2689 = vsel %vm646, %v2658, %v2688
  %v2690 = vsel %vm634, %v2664, %v2661
  %v2691 = vsel %vm636, %v2667, %v2690
  %v2692 = vsel %vm638, %v2670, %v2691
  %v2693 = vsel %vm640, %v2673, %v2692
  %v2694 = vsel %vm642, %v2676, %v2693
  %v2695 = vsel %vm644, %v2679, %v2694
  %v2696 = vsel %vm646, %v2682, %v2695
  %v2699 = vsel %vm125, %v2301, 0
  %v2701 = vsel %vm125, %v2304, 0
  %v2703 = vsel %vm125, %v2600, 0
  %v2705 = vsel %vm125, %v2602, 0
  %2707 = vmatpush.xpose.msra.mxu0 0.0
  %2708 = vmatpush.xpose.msra.mxu0 0.0
  %2709 = vmatpush.xpose.msra.mxu0 0.0
  %2710 = vmatpush.xpose.msra.mxu0 0.0
  %2711 = vmatpush.xpose.msra.mxu0 0.0
  %2712 = vmatpush.xpose.msra.mxu0 0.0
  %2713 = vmatpush.xpose.msra.mxu0 0.0
  %2714 = vmatpush.xpose.msra.mxu0 0.0
  %2715 = vmatpush.xpose.msra.mxu0 0.0
  %2716 = vmatpush.xpose.msra.mxu0 0.0
  %2717 = vmatpush.xpose.msra.mxu0 0.0
  %2718 = vmatpush.xpose.msra.mxu0 0.0
  %2719 = vmatpush.xpose.msra.mxu0 0.0
  %2720 = vmatpush.xpose.msra.mxu0 0.0
  %2721 = vmatpush.xpose.msra.mxu0 %v2705
  %2722 = vmatpush.xpose.msra.mxu0 %v2703
  %2723 = vmatmul.f32.gmra.mxu0 %v2699
  %v2724 = vpop.f32.mrf.mxu0
  %v2725 = vadd.f32 %v2689, %v2724
  %2726 = vmatmul.f32.gmra.mxu0 %v2701
  %v2727 = vpop.f32.mrf.mxu0
  %v2728 = vadd.f32 %v2696, %v2727
  %2729 = vdwg.mxu0
  %v2730 = vmul.f32 %v2725, 0.35355338
  %v2731 = vmul.f32 %v2728, 0.35355338
  %v2732 = vsel %vm84, %v2730, -1e+30
  %v2733 = vsel %vm85, %v2731, -1e+30
  %v2734 = vsel %vm692, %v2732, -inf
  %2735 = vmax.xlane.f32.xlu0 %v2734
  %v2736 = vpop.xlane.xlu0 %2735
  %v2737 = vsel %vm692, %v2733, -inf
  %2738 = vmax.xlane.f32.xlu0 %v2737
  %v2739 = vpop.xlane.xlu0 %2738
  %v2740 = vsub.f32 %v2732, %v2736
  %v2741 = vsub.f32 %v2733, %v2739
  %v2742 = vmul.f32 %v2740, 1.442695
  %v2743 = vpow.pop %v2742
  %v2744 = vmul.f32 %v2741, 1.442695
  %v2745 = vpow.pop %v2744
  %v2746 = vmul.f32 %v2743, %v82
  %v2747 = vmul.f32 %v2745, %v83
  %v2748 = vsel %vm692, %v2746, 0.0
  %2749 = vadd.xlane.f32.xlu0 %v2748
  %v2750 = vpop.xlane.xlu0 %2749
  %v2751 = vsel %vm692, %v2747, 0.0
  %2752 = vadd.xlane.f32.xlu0 %v2751
  %v2753 = vpop.xlane.xlu0 %2752
  %v2754 = vperm.slane %v2746, 0
  %v2755 = vlaneseq
  %v2756 = vshrl.u32 %v2755, 7
  %2758 = vset.pattern.permute.xlu0 %v2756
  %2759 = vperm.xlu0 %2758, %v2754
  %v2760 = vpop.permute.xlu0 %2759
  %v2761 = vlaneseq
  %v2762 = vshrl.u32 %v2761, 7
  %v2763 = vadd.s32 %v2762, 8
  %2764 = vset.pattern.permute.xlu0 %v2763
  %2765 = vperm.xlu0 %2764, %v2754
  %v2766 = vpop.permute.xlu0 %2765
  %v2767 = vperm.slane %v2746, 1
  %v2768 = vlaneseq
  %v2769 = vshrl.u32 %v2768, 7
  %2771 = vset.pattern.permute.xlu0 %v2769
  %2772 = vperm.xlu0 %2771, %v2767
  %v2773 = vpop.permute.xlu0 %2772
  %v2774 = vlaneseq
  %v2775 = vshrl.u32 %v2774, 7
  %v2776 = vadd.s32 %v2775, 8
  %2777 = vset.pattern.permute.xlu0 %v2776
  %2778 = vperm.xlu0 %2777, %v2767
  %v2779 = vpop.permute.xlu0 %2778
  %v2780 = vperm.slane %v2746, 2
  %v2781 = vlaneseq
  %v2782 = vshrl.u32 %v2781, 7
  %2784 = vset.pattern.permute.xlu0 %v2782
  %2785 = vperm.xlu0 %2784, %v2780
  %v2786 = vpop.permute.xlu0 %2785
  %v2787 = vlaneseq
  %v2788 = vshrl.u32 %v2787, 7
  %v2789 = vadd.s32 %v2788, 8
  %2790 = vset.pattern.permute.xlu0 %v2789
  %2791 = vperm.xlu0 %2790, %v2780
  %v2792 = vpop.permute.xlu0 %2791
  %v2793 = vperm.slane %v2746, 3
  %v2794 = vlaneseq
  %v2795 = vshrl.u32 %v2794, 7
  %2797 = vset.pattern.permute.xlu0 %v2795
  %2798 = vperm.xlu0 %2797, %v2793
  %v2799 = vpop.permute.xlu0 %2798
  %v2800 = vlaneseq
  %v2801 = vshrl.u32 %v2800, 7
  %v2802 = vadd.s32 %v2801, 8
  %2803 = vset.pattern.permute.xlu0 %v2802
  %2804 = vperm.xlu0 %2803, %v2793
  %v2805 = vpop.permute.xlu0 %2804
  %v2806 = vperm.slane %v2746, 4
  %v2807 = vlaneseq
  %v2808 = vshrl.u32 %v2807, 7
  %2810 = vset.pattern.permute.xlu0 %v2808
  %2811 = vperm.xlu0 %2810, %v2806
  %v2812 = vpop.permute.xlu0 %2811
  %v2813 = vlaneseq
  %v2814 = vshrl.u32 %v2813, 7
  %v2815 = vadd.s32 %v2814, 8
  %2816 = vset.pattern.permute.xlu0 %v2815
  %2817 = vperm.xlu0 %2816, %v2806
  %v2818 = vpop.permute.xlu0 %2817
  %v2819 = vperm.slane %v2746, 5
  %v2820 = vlaneseq
  %v2821 = vshrl.u32 %v2820, 7
  %2823 = vset.pattern.permute.xlu0 %v2821
  %2824 = vperm.xlu0 %2823, %v2819
  %v2825 = vpop.permute.xlu0 %2824
  %v2826 = vlaneseq
  %v2827 = vshrl.u32 %v2826, 7
  %v2828 = vadd.s32 %v2827, 8
  %2829 = vset.pattern.permute.xlu0 %v2828
  %2830 = vperm.xlu0 %2829, %v2819
  %v2831 = vpop.permute.xlu0 %2830
  %v2832 = vperm.slane %v2746, 6
  %v2833 = vlaneseq
  %v2834 = vshrl.u32 %v2833, 7
  %2836 = vset.pattern.permute.xlu0 %v2834
  %2837 = vperm.xlu0 %2836, %v2832
  %v2838 = vpop.permute.xlu0 %2837
  %v2839 = vlaneseq
  %v2840 = vshrl.u32 %v2839, 7
  %v2841 = vadd.s32 %v2840, 8
  %2842 = vset.pattern.permute.xlu0 %v2841
  %2843 = vperm.xlu0 %2842, %v2832
  %v2844 = vpop.permute.xlu0 %2843
  %v2845 = vperm.slane %v2746, 7
  %v2846 = vlaneseq
  %v2847 = vshrl.u32 %v2846, 7
  %2849 = vset.pattern.permute.xlu0 %v2847
  %2850 = vperm.xlu0 %2849, %v2845
  %v2851 = vpop.permute.xlu0 %2850
  %v2852 = vlaneseq
  %v2853 = vshrl.u32 %v2852, 7
  %v2854 = vadd.s32 %v2853, 8
  %2855 = vset.pattern.permute.xlu0 %v2854
  %2856 = vperm.xlu0 %2855, %v2845
  %v2857 = vpop.permute.xlu0 %2856
  %v2858 = vperm.slane %v2747, 0
  %v2859 = vlaneseq
  %v2860 = vshrl.u32 %v2859, 7
  %2862 = vset.pattern.permute.xlu0 %v2860
  %2863 = vperm.xlu0 %2862, %v2858
  %v2864 = vpop.permute.xlu0 %2863
  %v2865 = vlaneseq
  %v2866 = vshrl.u32 %v2865, 7
  %v2867 = vadd.s32 %v2866, 8
  %2868 = vset.pattern.permute.xlu0 %v2867
  %2869 = vperm.xlu0 %2868, %v2858
  %v2870 = vpop.permute.xlu0 %2869
  %v2871 = vperm.slane %v2747, 1
  %v2872 = vlaneseq
  %v2873 = vshrl.u32 %v2872, 7
  %2875 = vset.pattern.permute.xlu0 %v2873
  %2876 = vperm.xlu0 %2875, %v2871
  %v2877 = vpop.permute.xlu0 %2876
  %v2878 = vlaneseq
  %v2879 = vshrl.u32 %v2878, 7
  %v2880 = vadd.s32 %v2879, 8
  %2881 = vset.pattern.permute.xlu0 %v2880
  %2882 = vperm.xlu0 %2881, %v2871
  %v2883 = vpop.permute.xlu0 %2882
  %v2884 = vperm.slane %v2747, 2
  %v2885 = vlaneseq
  %v2886 = vshrl.u32 %v2885, 7
  %2888 = vset.pattern.permute.xlu0 %v2886
  %2889 = vperm.xlu0 %2888, %v2884
  %v2890 = vpop.permute.xlu0 %2889
  %v2891 = vlaneseq
  %v2892 = vshrl.u32 %v2891, 7
  %v2893 = vadd.s32 %v2892, 8
  %2894 = vset.pattern.permute.xlu0 %v2893
  %2895 = vperm.xlu0 %2894, %v2884
  %v2896 = vpop.permute.xlu0 %2895
  %v2897 = vperm.slane %v2747, 3
  %v2898 = vlaneseq
  %v2899 = vshrl.u32 %v2898, 7
  %2901 = vset.pattern.permute.xlu0 %v2899
  %2902 = vperm.xlu0 %2901, %v2897
  %v2903 = vpop.permute.xlu0 %2902
  %v2904 = vlaneseq
  %v2905 = vshrl.u32 %v2904, 7
  %v2906 = vadd.s32 %v2905, 8
  %2907 = vset.pattern.permute.xlu0 %v2906
  %2908 = vperm.xlu0 %2907, %v2897
  %v2909 = vpop.permute.xlu0 %2908
  %v2910 = vperm.slane %v2747, 4
  %v2911 = vlaneseq
  %v2912 = vshrl.u32 %v2911, 7
  %2914 = vset.pattern.permute.xlu0 %v2912
  %2915 = vperm.xlu0 %2914, %v2910
  %v2916 = vpop.permute.xlu0 %2915
  %v2917 = vlaneseq
  %v2918 = vshrl.u32 %v2917, 7
  %v2919 = vadd.s32 %v2918, 8
  %2920 = vset.pattern.permute.xlu0 %v2919
  %2921 = vperm.xlu0 %2920, %v2910
  %v2922 = vpop.permute.xlu0 %2921
  %v2923 = vperm.slane %v2747, 5
  %v2924 = vlaneseq
  %v2925 = vshrl.u32 %v2924, 7
  %2927 = vset.pattern.permute.xlu0 %v2925
  %2928 = vperm.xlu0 %2927, %v2923
  %v2929 = vpop.permute.xlu0 %2928
  %v2930 = vlaneseq
  %v2931 = vshrl.u32 %v2930, 7
  %v2932 = vadd.s32 %v2931, 8
  %2933 = vset.pattern.permute.xlu0 %v2932
  %2934 = vperm.xlu0 %2933, %v2923
  %v2935 = vpop.permute.xlu0 %2934
  %v2936 = vperm.slane %v2747, 6
  %v2937 = vlaneseq
  %v2938 = vshrl.u32 %v2937, 7
  %2940 = vset.pattern.permute.xlu0 %v2938
  %2941 = vperm.xlu0 %2940, %v2936
  %v2942 = vpop.permute.xlu0 %2941
  %v2943 = vlaneseq
  %v2944 = vshrl.u32 %v2943, 7
  %v2945 = vadd.s32 %v2944, 8
  %2946 = vset.pattern.permute.xlu0 %v2945
  %2947 = vperm.xlu0 %2946, %v2936
  %v2948 = vpop.permute.xlu0 %2947
  %v2949 = vperm.slane %v2747, 7
  %v2950 = vlaneseq
  %v2951 = vshrl.u32 %v2950, 7
  %2953 = vset.pattern.permute.xlu0 %v2951
  %2954 = vperm.xlu0 %2953, %v2949
  %v2955 = vpop.permute.xlu0 %2954
  %v2956 = vlaneseq
  %v2957 = vshrl.u32 %v2956, 7
  %v2958 = vadd.s32 %v2957, 8
  %2959 = vset.pattern.permute.xlu0 %v2958
  %2960 = vperm.xlu0 %2959, %v2949
  %v2961 = vpop.permute.xlu0 %2960
  %v2962 = vmul.f32 %v2760, %v2328
  %v2963 = vmul.f32 %v2766, %v2331
  %v2964 = vmul.f32 %v2773, %v2334
  %v2965 = vmul.f32 %v2779, %v2337
  %v2966 = vmul.f32 %v2786, %v2340
  %v2967 = vmul.f32 %v2792, %v2343
  %v2968 = vmul.f32 %v2799, %v2346
  %v2969 = vmul.f32 %v2805, %v2349
  %v2970 = vmul.f32 %v2812, %v2352
  %v2971 = vmul.f32 %v2818, %v2355
  %v2972 = vmul.f32 %v2825, %v2358
  %v2973 = vmul.f32 %v2831, %v2361
  %v2974 = vmul.f32 %v2838, %v2364
  %v2975 = vmul.f32 %v2844, %v2367
  %v2976 = vmul.f32 %v2851, %v2370
  %v2977 = vmul.f32 %v2857, %v2373
  %v2978 = vmul.f32 %v2864, %v2376
  %v2979 = vmul.f32 %v2870, %v2379
  %v2980 = vmul.f32 %v2877, %v2382
  %v2981 = vmul.f32 %v2883, %v2385
  %v2982 = vmul.f32 %v2890, %v2388
  %v2983 = vmul.f32 %v2896, %v2391
  %v2984 = vmul.f32 %v2903, %v2394
  %v2985 = vmul.f32 %v2909, %v2397
  %v2986 = vmul.f32 %v2916, %v2400
  %v2987 = vmul.f32 %v2922, %v2403
  %v2988 = vmul.f32 %v2929, %v2406
  %v2989 = vmul.f32 %v2935, %v2409
  %v2990 = vmul.f32 %v2942, %v2412
  %v2991 = vmul.f32 %v2948, %v2415
  %v2992 = vmul.f32 %v2955, %v2418
  %v2993 = vmul.f32 %v2961, %v2421
  %v2994 = vsel %vm125, %v2962, 0.0
  %v2995 = vsel %vm125, %v2963, 0.0
  %v2996 = vadd.f32 %v2994, %v2995
  %v2997 = vrot.slane %v2996, 4
  %v2998 = vadd.f32 %v2996, %v2997
  %v2999 = vrot.slane %v2998, 2
  %v3000 = vadd.f32 %v2998, %v2999
  %v3001 = vrot.slane %v3000, 1
  %v3002 = vadd.f32 %v3000, %v3001
  %v3003 = vsel %vm125, %v2964, 0.0
  %v3004 = vsel %vm125, %v2965, 0.0
  %v3005 = vadd.f32 %v3003, %v3004
  %v3006 = vrot.slane %v3005, 4
  %v3007 = vadd.f32 %v3005, %v3006
  %v3008 = vrot.slane %v3007, 2
  %v3009 = vadd.f32 %v3007, %v3008
  %v3010 = vrot.slane %v3009, 1
  %v3011 = vadd.f32 %v3009, %v3010
  %v3012 = vsel %vm125, %v2966, 0.0
  %v3013 = vsel %vm125, %v2967, 0.0
  %v3014 = vadd.f32 %v3012, %v3013
  %v3015 = vrot.slane %v3014, 4
  %v3016 = vadd.f32 %v3014, %v3015
  %v3017 = vrot.slane %v3016, 2
  %v3018 = vadd.f32 %v3016, %v3017
  %v3019 = vrot.slane %v3018, 1
  %v3020 = vadd.f32 %v3018, %v3019
  %v3021 = vsel %vm125, %v2968, 0.0
  %v3022 = vsel %vm125, %v2969, 0.0
  %v3023 = vadd.f32 %v3021, %v3022
  %v3024 = vrot.slane %v3023, 4
  %v3025 = vadd.f32 %v3023, %v3024
  %v3026 = vrot.slane %v3025, 2
  %v3027 = vadd.f32 %v3025, %v3026
  %v3028 = vrot.slane %v3027, 1
  %v3029 = vadd.f32 %v3027, %v3028
  %v3030 = vsel %vm125, %v2970, 0.0
  %v3031 = vsel %vm125, %v2971, 0.0
  %v3032 = vadd.f32 %v3030, %v3031
  %v3033 = vrot.slane %v3032, 4
  %v3034 = vadd.f32 %v3032, %v3033
  %v3035 = vrot.slane %v3034, 2
  %v3036 = vadd.f32 %v3034, %v3035
  %v3037 = vrot.slane %v3036, 1
  %v3038 = vadd.f32 %v3036, %v3037
  %v3039 = vsel %vm125, %v2972, 0.0
  %v3040 = vsel %vm125, %v2973, 0.0
  %v3041 = vadd.f32 %v3039, %v3040
  %v3042 = vrot.slane %v3041, 4
  %v3043 = vadd.f32 %v3041, %v3042
  %v3044 = vrot.slane %v3043, 2
  %v3045 = vadd.f32 %v3043, %v3044
  %v3046 = vrot.slane %v3045, 1
  %v3047 = vadd.f32 %v3045, %v3046
  %v3048 = vsel %vm125, %v2974, 0.0
  %v3049 = vsel %vm125, %v2975, 0.0
  %v3050 = vadd.f32 %v3048, %v3049
  %v3051 = vrot.slane %v3050, 4
  %v3052 = vadd.f32 %v3050, %v3051
  %v3053 = vrot.slane %v3052, 2
  %v3054 = vadd.f32 %v3052, %v3053
  %v3055 = vrot.slane %v3054, 1
  %v3056 = vadd.f32 %v3054, %v3055
  %v3057 = vsel %vm125, %v2976, 0.0
  %v3058 = vsel %vm125, %v2977, 0.0
  %v3059 = vadd.f32 %v3057, %v3058
  %v3060 = vrot.slane %v3059, 4
  %v3061 = vadd.f32 %v3059, %v3060
  %v3062 = vrot.slane %v3061, 2
  %v3063 = vadd.f32 %v3061, %v3062
  %v3064 = vrot.slane %v3063, 1
  %v3065 = vadd.f32 %v3063, %v3064
  %v3066 = vsel %vm125, %v2978, 0.0
  %v3067 = vsel %vm125, %v2979, 0.0
  %v3068 = vadd.f32 %v3066, %v3067
  %v3069 = vrot.slane %v3068, 4
  %v3070 = vadd.f32 %v3068, %v3069
  %v3071 = vrot.slane %v3070, 2
  %v3072 = vadd.f32 %v3070, %v3071
  %v3073 = vrot.slane %v3072, 1
  %v3074 = vadd.f32 %v3072, %v3073
  %v3075 = vsel %vm125, %v2980, 0.0
  %v3076 = vsel %vm125, %v2981, 0.0
  %v3077 = vadd.f32 %v3075, %v3076
  %v3078 = vrot.slane %v3077, 4
  %v3079 = vadd.f32 %v3077, %v3078
  %v3080 = vrot.slane %v3079, 2
  %v3081 = vadd.f32 %v3079, %v3080
  %v3082 = vrot.slane %v3081, 1
  %v3083 = vadd.f32 %v3081, %v3082
  %v3084 = vsel %vm125, %v2982, 0.0
  %v3085 = vsel %vm125, %v2983, 0.0
  %v3086 = vadd.f32 %v3084, %v3085
  %v3087 = vrot.slane %v3086, 4
  %v3088 = vadd.f32 %v3086, %v3087
  %v3089 = vrot.slane %v3088, 2
  %v3090 = vadd.f32 %v3088, %v3089
  %v3091 = vrot.slane %v3090, 1
  %v3092 = vadd.f32 %v3090, %v3091
  %v3093 = vsel %vm125, %v2984, 0.0
  %v3094 = vsel %vm125, %v2985, 0.0
  %v3095 = vadd.f32 %v3093, %v3094
  %v3096 = vrot.slane %v3095, 4
  %v3097 = vadd.f32 %v3095, %v3096
  %v3098 = vrot.slane %v3097, 2
  %v3099 = vadd.f32 %v3097, %v3098
  %v3100 = vrot.slane %v3099, 1
  %v3101 = vadd.f32 %v3099, %v3100
  %v3102 = vsel %vm125, %v2986, 0.0
  %v3103 = vsel %vm125, %v2987, 0.0
  %v3104 = vadd.f32 %v3102, %v3103
  %v3105 = vrot.slane %v3104, 4
  %v3106 = vadd.f32 %v3104, %v3105
  %v3107 = vrot.slane %v3106, 2
  %v3108 = vadd.f32 %v3106, %v3107
  %v3109 = vrot.slane %v3108, 1
  %v3110 = vadd.f32 %v3108, %v3109
  %v3111 = vsel %vm125, %v2988, 0.0
  %v3112 = vsel %vm125, %v2989, 0.0
  %v3113 = vadd.f32 %v3111, %v3112
  %v3114 = vrot.slane %v3113, 4
  %v3115 = vadd.f32 %v3113, %v3114
  %v3116 = vrot.slane %v3115, 2
  %v3117 = vadd.f32 %v3115, %v3116
  %v3118 = vrot.slane %v3117, 1
  %v3119 = vadd.f32 %v3117, %v3118
  %v3120 = vsel %vm125, %v2990, 0.0
  %v3121 = vsel %vm125, %v2991, 0.0
  %v3122 = vadd.f32 %v3120, %v3121
  %v3123 = vrot.slane %v3122, 4
  %v3124 = vadd.f32 %v3122, %v3123
  %v3125 = vrot.slane %v3124, 2
  %v3126 = vadd.f32 %v3124, %v3125
  %v3127 = vrot.slane %v3126, 1
  %v3128 = vadd.f32 %v3126, %v3127
  %v3129 = vsel %vm125, %v2992, 0.0
  %v3130 = vsel %vm125, %v2993, 0.0
  %v3131 = vadd.f32 %v3129, %v3130
  %v3132 = vrot.slane %v3131, 4
  %v3133 = vadd.f32 %v3131, %v3132
  %v3134 = vrot.slane %v3133, 2
  %v3135 = vadd.f32 %v3133, %v3134
  %v3136 = vrot.slane %v3135, 1
  %v3137 = vadd.f32 %v3135, %v3136
  %3138 = vrot.lane.b32.xlu0 %v2301, 96
  %v3139 = vpop.permute.xlu0 %3138
  %3140 = vrot.lane.b32.xlu0 %v2304, 96
  %v3141 = vpop.permute.xlu0 %3140
  %v3160 = vsel %vm634, %v3011, %v3002
  %v3161 = vsel %vm636, %v3020, %v3160
  %v3162 = vsel %vm638, %v3029, %v3161
  %v3163 = vsel %vm640, %v3038, %v3162
  %v3164 = vsel %vm642, %v3047, %v3163
  %v3165 = vsel %vm644, %v3056, %v3164
  %v3166 = vsel %vm646, %v3065, %v3165
  %v3167 = vsel %vm634, %v3083, %v3074
  %v3168 = vsel %vm636, %v3092, %v3167
  %v3169 = vsel %vm638, %v3101, %v3168
  %v3170 = vsel %vm640, %v3110, %v3169
  %v3171 = vsel %vm642, %v3119, %v3170
  %v3172 = vsel %vm644, %v3128, %v3171
  %v3173 = vsel %vm646, %v3137, %v3172
  %v3177 = vsel %vm692, %v2746, 0
  %v3180 = vsel %vm692, %v2747, 0
  %3182 = vmatpush.msra.mxu0 0.0
  %3183 = vmatpush.msra.mxu0 0.0
  %3184 = vmatpush.msra.mxu0 0.0
  %3185 = vmatpush.msra.mxu0 0.0
  %3186 = vmatpush.msra.mxu0 0.0
  %3187 = vmatpush.msra.mxu0 0.0
  %3188 = vmatpush.msra.mxu0 0.0
  %3189 = vmatpush.msra.mxu0 0.0
  %3190 = vmatpush.msra.mxu0 0.0
  %3191 = vmatpush.msra.mxu0 0.0
  %3192 = vmatpush.msra.mxu0 0.0
  %3193 = vmatpush.msra.mxu0 0.0
  %3194 = vmatpush.msra.mxu0 0.0
  %3195 = vmatpush.msra.mxu0 0.0
  %3196 = vmatpush.msra.mxu0 %v3141
  %3197 = vmatpush.msra.mxu0 %v3139
  %3198 = vmatmul.f32.gmra.mxu0 %v3177
  %v3199 = vpop.f32.mrf.mxu0
  %v3200 = vadd.f32 %v3166, %v3199
  %3201 = vmatmul.f32.gmra.mxu0 %v3180
  %v3202 = vpop.f32.mrf.mxu0
  %v3203 = vadd.f32 %v3173, %v3202
  %3204 = vdwg.mxu0
  %vm3205 = vcmp.gt.f32.partialorder %v2750, 0.0
  %vm3206 = vcmp.gt.f32.partialorder %v2753, 0.0
  %v3207 = vsel %vm3205, %v2750, 1.0
  %v3208 = vsel %vm3206, %v2753, 1.0
  %v3209 = vrcp.pop %v3207
  %v3210 = vmul.f32 %v3207, %v3209
  %v3211 = vsub.f32 1.0, %v3210
  %v3212 = vmul.f32 %v3209, %v3211
  %v3213 = vadd.f32 %v3209, %v3212
  %vm3214 = vweird.f32 %v3207
  %vm3215 = vweird.f32 %v3209
  %vm3216 = vmor %vm3214, %vm3215
  %v3217 = vsel %vm3216, %v3209, %v3213
  %v3218 = vand.u32 2147483647, %v3207
  %vm3219 = vcmp.eq.f32.partialorder %v3218, 8.507059e+37
  %v3220 = vand.u32 %v3207, 2147483648
  %v3221 = vor.u32 1.1754944e-38, %v3220
  %v3222 = vsel %vm3219, %v3221, %v3217
  %v3223 = vmul.f32 %v3200, %v3222
  %v3224 = vrcp.pop %v3208
  %v3225 = vmul.f32 %v3208, %v3224
  %v3226 = vsub.f32 1.0, %v3225
  %v3227 = vmul.f32 %v3224, %v3226
  %v3228 = vadd.f32 %v3224, %v3227
  %vm3229 = vweird.f32 %v3208
  %vm3230 = vweird.f32 %v3224
  %vm3231 = vmor %vm3229, %vm3230
  %v3232 = vsel %vm3231, %v3224, %v3228
  %v3233 = vand.u32 2147483647, %v3208
  %vm3234 = vcmp.eq.f32.partialorder %v3233, 8.507059e+37
  %v3235 = vand.u32 %v3208, 2147483648
  %v3236 = vor.u32 1.1754944e-38, %v3235
  %v3237 = vsel %vm3234, %v3236, %v3232
  %v3238 = vmul.f32 %v3203, %v3237
  %v3239 = vsel %vm3205, 1, 0
  %v3240 = vsel %vm3206, 1, 0
  %vm3241 = vcmp.eq.s32.totalorder %v3239, 1
  %vm3242 = vcmp.eq.s32.totalorder %v3240, 1
  %v3243 = vsel %vm3241, %v3223, 0.0
  %v3244 = vsel %vm3242, %v3238, 0.0
  %3277 = vrot.lane.b32.xlu0 %v2471, 120
  %v3278 = vpop.permute.xlu0 %3277
  %3279 = vrot.lane.b32.xlu0 %v2472, 120
  %v3280 = vpop.permute.xlu0 %3279
  %3281 = vrot.lane.b32.xlu0 %v2473, 120
  %v3282 = vpop.permute.xlu0 %3281
  %3283 = vrot.lane.b32.xlu0 %v2474, 120
  %v3284 = vpop.permute.xlu0 %3283
  %3285 = vrot.lane.b32.xlu0 %v2475, 120
  %v3286 = vpop.permute.xlu0 %3285
  %3287 = vrot.lane.b32.xlu0 %v2476, 120
  %v3288 = vpop.permute.xlu0 %3287
  %3289 = vrot.lane.b32.xlu0 %v2477, 120
  %v3290 = vpop.permute.xlu0 %3289
  %3291 = vrot.lane.b32.xlu0 %v2478, 120
  %v3292 = vpop.permute.xlu0 %3291
  %3293 = vrot.lane.b32.xlu0 %v2479, 120
  %v3294 = vpop.permute.xlu0 %3293
  %3295 = vrot.lane.b32.xlu0 %v2480, 120
  %v3296 = vpop.permute.xlu0 %3295
  %3297 = vrot.lane.b32.xlu0 %v2481, 120
  %v3298 = vpop.permute.xlu0 %3297
  %3299 = vrot.lane.b32.xlu0 %v2482, 120
  %v3300 = vpop.permute.xlu0 %3299
  %3301 = vrot.lane.b32.xlu0 %v2483, 120
  %v3302 = vpop.permute.xlu0 %3301
  %3303 = vrot.lane.b32.xlu0 %v2484, 120
  %v3304 = vpop.permute.xlu0 %3303
  %3305 = vrot.lane.b32.xlu0 %v2485, 120
  %v3306 = vpop.permute.xlu0 %3305
  %3307 = vrot.lane.b32.xlu0 %v2486, 120
  %v3308 = vpop.permute.xlu0 %3307
  %3309 = vrot.lane.b32.xlu0 %v2487, 120
  %v3310 = vpop.permute.xlu0 %3309
  %3311 = vrot.lane.b32.xlu0 %v2488, 120
  %v3312 = vpop.permute.xlu0 %3311
  %3313 = vrot.lane.b32.xlu0 %v2489, 120
  %v3314 = vpop.permute.xlu0 %3313
  %3315 = vrot.lane.b32.xlu0 %v2490, 120
  %v3316 = vpop.permute.xlu0 %3315
  %3317 = vrot.lane.b32.xlu0 %v2491, 120
  %v3318 = vpop.permute.xlu0 %3317
  %3319 = vrot.lane.b32.xlu0 %v2492, 120
  %v3320 = vpop.permute.xlu0 %3319
  %3321 = vrot.lane.b32.xlu0 %v2493, 120
  %v3322 = vpop.permute.xlu0 %3321
  %3323 = vrot.lane.b32.xlu0 %v2494, 120
  %v3324 = vpop.permute.xlu0 %3323
  %3325 = vrot.lane.b32.xlu0 %v2495, 120
  %v3326 = vpop.permute.xlu0 %3325
  %3327 = vrot.lane.b32.xlu0 %v2496, 120
  %v3328 = vpop.permute.xlu0 %3327
  %3329 = vrot.lane.b32.xlu0 %v2497, 120
  %v3330 = vpop.permute.xlu0 %3329
  %3331 = vrot.lane.b32.xlu0 %v2498, 120
  %v3332 = vpop.permute.xlu0 %3331
  %3333 = vrot.lane.b32.xlu0 %v2499, 120
  %v3334 = vpop.permute.xlu0 %3333
  %3335 = vrot.lane.b32.xlu0 %v2500, 120
  %v3336 = vpop.permute.xlu0 %3335
  %3337 = vrot.lane.b32.xlu0 %v2501, 120
  %v3338 = vpop.permute.xlu0 %3337
  %3339 = vrot.lane.b32.xlu0 %v2502, 120
  %v3340 = vpop.permute.xlu0 %3339
  %v3373 = vsel %vm125, %v3278, 0.0
  %3374 = vadd.xlane.f32.xlu0 %v3373
  %v3375 = vpop.xlane.xlu0 %3374
  %v3376 = vsel %vm125, %v3280, 0.0
  %3377 = vadd.xlane.f32.xlu0 %v3376
  %v3378 = vpop.xlane.xlu0 %3377
  %v3379 = vsel %vm125, %v3282, 0.0
  %3380 = vadd.xlane.f32.xlu0 %v3379
  %v3381 = vpop.xlane.xlu0 %3380
  %v3382 = vsel %vm125, %v3284, 0.0
  %3383 = vadd.xlane.f32.xlu0 %v3382
  %v3384 = vpop.xlane.xlu0 %3383
  %v3385 = vsel %vm125, %v3286, 0.0
  %3386 = vadd.xlane.f32.xlu0 %v3385
  %v3387 = vpop.xlane.xlu0 %3386
  %v3388 = vsel %vm125, %v3288, 0.0
  %3389 = vadd.xlane.f32.xlu0 %v3388
  %v3390 = vpop.xlane.xlu0 %3389
  %v3391 = vsel %vm125, %v3290, 0.0
  %3392 = vadd.xlane.f32.xlu0 %v3391
  %v3393 = vpop.xlane.xlu0 %3392
  %v3394 = vsel %vm125, %v3292, 0.0
  %3395 = vadd.xlane.f32.xlu0 %v3394
  %v3396 = vpop.xlane.xlu0 %3395
  %v3397 = vsel %vm125, %v3294, 0.0
  %3398 = vadd.xlane.f32.xlu0 %v3397
  %v3399 = vpop.xlane.xlu0 %3398
  %v3400 = vsel %vm125, %v3296, 0.0
  %3401 = vadd.xlane.f32.xlu0 %v3400
  %v3402 = vpop.xlane.xlu0 %3401
  %v3403 = vsel %vm125, %v3298, 0.0
  %3404 = vadd.xlane.f32.xlu0 %v3403
  %v3405 = vpop.xlane.xlu0 %3404
  %v3406 = vsel %vm125, %v3300, 0.0
  %3407 = vadd.xlane.f32.xlu0 %v3406
  %v3408 = vpop.xlane.xlu0 %3407
  %v3409 = vsel %vm125, %v3302, 0.0
  %3410 = vadd.xlane.f32.xlu0 %v3409
  %v3411 = vpop.xlane.xlu0 %3410
  %v3412 = vsel %vm125, %v3304, 0.0
  %3413 = vadd.xlane.f32.xlu0 %v3412
  %v3414 = vpop.xlane.xlu0 %3413
  %v3415 = vsel %vm125, %v3306, 0.0
  %3416 = vadd.xlane.f32.xlu0 %v3415
  %v3417 = vpop.xlane.xlu0 %3416
  %v3418 = vsel %vm125, %v3308, 0.0
  %3419 = vadd.xlane.f32.xlu0 %v3418
  %v3420 = vpop.xlane.xlu0 %3419
  %v3421 = vsel %vm125, %v3310, 0.0
  %3422 = vadd.xlane.f32.xlu0 %v3421
  %v3423 = vpop.xlane.xlu0 %3422
  %v3424 = vsel %vm125, %v3312, 0.0
  %3425 = vadd.xlane.f32.xlu0 %v3424
  %v3426 = vpop.xlane.xlu0 %3425
  %v3427 = vsel %vm125, %v3314, 0.0
  %3428 = vadd.xlane.f32.xlu0 %v3427
  %v3429 = vpop.xlane.xlu0 %3428
  %v3430 = vsel %vm125, %v3316, 0.0
  %3431 = vadd.xlane.f32.xlu0 %v3430
  %v3432 = vpop.xlane.xlu0 %3431
  %v3433 = vsel %vm125, %v3318, 0.0
  %3434 = vadd.xlane.f32.xlu0 %v3433
  %v3435 = vpop.xlane.xlu0 %3434
  %v3436 = vsel %vm125, %v3320, 0.0
  %3437 = vadd.xlane.f32.xlu0 %v3436
  %v3438 = vpop.xlane.xlu0 %3437
  %v3439 = vsel %vm125, %v3322, 0.0
  %3440 = vadd.xlane.f32.xlu0 %v3439
  %v3441 = vpop.xlane.xlu0 %3440
  %v3442 = vsel %vm125, %v3324, 0.0
  %3443 = vadd.xlane.f32.xlu0 %v3442
  %v3444 = vpop.xlane.xlu0 %3443
  %v3445 = vsel %vm125, %v3326, 0.0
  %3446 = vadd.xlane.f32.xlu0 %v3445
  %v3447 = vpop.xlane.xlu0 %3446
  %v3448 = vsel %vm125, %v3328, 0.0
  %3449 = vadd.xlane.f32.xlu0 %v3448
  %v3450 = vpop.xlane.xlu0 %3449
  %v3451 = vsel %vm125, %v3330, 0.0
  %3452 = vadd.xlane.f32.xlu0 %v3451
  %v3453 = vpop.xlane.xlu0 %3452
  %v3454 = vsel %vm125, %v3332, 0.0
  %3455 = vadd.xlane.f32.xlu0 %v3454
  %v3456 = vpop.xlane.xlu0 %3455
  %v3457 = vsel %vm125, %v3334, 0.0
  %3458 = vadd.xlane.f32.xlu0 %v3457
  %v3459 = vpop.xlane.xlu0 %3458
  %v3460 = vsel %vm125, %v3336, 0.0
  %3461 = vadd.xlane.f32.xlu0 %v3460
  %v3462 = vpop.xlane.xlu0 %3461
  %v3463 = vsel %vm125, %v3338, 0.0
  %3464 = vadd.xlane.f32.xlu0 %v3463
  %v3465 = vpop.xlane.xlu0 %3464
  %v3466 = vsel %vm125, %v3340, 0.0
  %3467 = vadd.xlane.f32.xlu0 %v3466
  %v3468 = vpop.xlane.xlu0 %3467
  %3469 = vrot.lane.b32.xlu0 %v2301, 120
  %v3470 = vpop.permute.xlu0 %3469
  %3471 = vrot.lane.b32.xlu0 %v2304, 120
  %v3472 = vpop.permute.xlu0 %3471
  %3473 = vrot.lane.b32.xlu0 %v2301, 104
  %v3474 = vpop.permute.xlu0 %3473
  %3475 = vrot.lane.b32.xlu0 %v2304, 104
  %v3476 = vpop.permute.xlu0 %3475
  %v3509 = vperm.slane %v3375, %v583
  %v3510 = vperm.slane %v3378, %v585
  %v3511 = vsel %vm587, %v3510, %v3509
  %v3512 = vperm.slane %v3381, %v583
  %v3513 = vperm.slane %v3384, %v585
  %v3514 = vsel %vm587, %v3513, %v3512
  %v3515 = vperm.slane %v3387, %v583
  %v3516 = vperm.slane %v3390, %v585
  %v3517 = vsel %vm587, %v3516, %v3515
  %v3518 = vperm.slane %v3393, %v583
  %v3519 = vperm.slane %v3396, %v585
  %v3520 = vsel %vm587, %v3519, %v3518
  %v3521 = vperm.slane %v3399, %v583
  %v3522 = vperm.slane %v3402, %v585
  %v3523 = vsel %vm587, %v3522, %v3521
  %v3524 = vperm.slane %v3405, %v583
  %v3525 = vperm.slane %v3408, %v585
  %v3526 = vsel %vm587, %v3525, %v3524
  %v3527 = vperm.slane %v3411, %v583
  %v3528 = vperm.slane %v3414, %v585
  %v3529 = vsel %vm587, %v3528, %v3527
  %v3530 = vperm.slane %v3417, %v583
  %v3531 = vperm.slane %v3420, %v585
  %v3532 = vsel %vm587, %v3531, %v3530
  %v3533 = vperm.slane %v3423, %v583
  %v3534 = vperm.slane %v3426, %v585
  %v3535 = vsel %vm587, %v3534, %v3533
  %v3536 = vperm.slane %v3429, %v583
  %v3537 = vperm.slane %v3432, %v585
  %v3538 = vsel %vm587, %v3537, %v3536
  %v3539 = vperm.slane %v3435, %v583
  %v3540 = vperm.slane %v3438, %v585
  %v3541 = vsel %vm587, %v3540, %v3539
  %v3542 = vperm.slane %v3441, %v583
  %v3543 = vperm.slane %v3444, %v585
  %v3544 = vsel %vm587, %v3543, %v3542
  %v3545 = vperm.slane %v3447, %v583
  %v3546 = vperm.slane %v3450, %v585
  %v3547 = vsel %vm587, %v3546, %v3545
  %v3548 = vperm.slane %v3453, %v583
  %v3549 = vperm.slane %v3456, %v585
  %v3550 = vsel %vm587, %v3549, %v3548
  %v3551 = vperm.slane %v3459, %v583
  %v3552 = vperm.slane %v3462, %v585
  %v3553 = vsel %vm587, %v3552, %v3551
  %v3554 = vperm.slane %v3465, %v583
  %v3555 = vperm.slane %v3468, %v585
  %v3556 = vsel %vm587, %v3555, %v3554
  %v3557 = vsel %vm634, %v3514, %v3511
  %v3558 = vsel %vm636, %v3517, %v3557
  %v3559 = vsel %vm638, %v3520, %v3558
  %v3560 = vsel %vm640, %v3523, %v3559
  %v3561 = vsel %vm642, %v3526, %v3560
  %v3562 = vsel %vm644, %v3529, %v3561
  %v3563 = vsel %vm646, %v3532, %v3562
  %v3564 = vsel %vm634, %v3538, %v3535
  %v3565 = vsel %vm636, %v3541, %v3564
  %v3566 = vsel %vm638, %v3544, %v3565
  %v3567 = vsel %vm640, %v3547, %v3566
  %v3568 = vsel %vm642, %v3550, %v3567
  %v3569 = vsel %vm644, %v3553, %v3568
  %v3570 = vsel %vm646, %v3556, %v3569
  %v3573 = vsel %vm125, %v3470, 0
  %v3575 = vsel %vm125, %v3472, 0
  %v3577 = vsel %vm125, %v3474, 0
  %v3579 = vsel %vm125, %v3476, 0
  %3581 = vmatpush.xpose.msra.mxu0 0.0
  %3582 = vmatpush.xpose.msra.mxu0 0.0
  %3583 = vmatpush.xpose.msra.mxu0 0.0
  %3584 = vmatpush.xpose.msra.mxu0 0.0
  %3585 = vmatpush.xpose.msra.mxu0 0.0
  %3586 = vmatpush.xpose.msra.mxu0 0.0
  %3587 = vmatpush.xpose.msra.mxu0 0.0
  %3588 = vmatpush.xpose.msra.mxu0 0.0
  %3589 = vmatpush.xpose.msra.mxu0 0.0
  %3590 = vmatpush.xpose.msra.mxu0 0.0
  %3591 = vmatpush.xpose.msra.mxu0 0.0
  %3592 = vmatpush.xpose.msra.mxu0 0.0
  %3593 = vmatpush.xpose.msra.mxu0 0.0
  %3594 = vmatpush.xpose.msra.mxu0 0.0
  %3595 = vmatpush.xpose.msra.mxu0 %v3579
  %3596 = vmatpush.xpose.msra.mxu0 %v3577
  %3597 = vmatmul.f32.gmra.mxu0 %v3573
  %v3598 = vpop.f32.mrf.mxu0
  %v3599 = vadd.f32 %v3563, %v3598
  %3600 = vmatmul.f32.gmra.mxu0 %v3575
  %v3601 = vpop.f32.mrf.mxu0
  %v3602 = vadd.f32 %v3570, %v3601
  %3603 = vdwg.mxu0
  %v3604 = vmul.f32 %v3599, 0.35355338
  %v3605 = vmul.f32 %v3602, 0.35355338
  %v3606 = vsel %vm84, %v3604, -1e+30
  %v3607 = vsel %vm85, %v3605, -1e+30
  %v3608 = vsel %vm692, %v3606, -inf
  %3609 = vmax.xlane.f32.xlu0 %v3608
  %v3610 = vpop.xlane.xlu0 %3609
  %v3611 = vsel %vm692, %v3607, -inf
  %3612 = vmax.xlane.f32.xlu0 %v3611
  %v3613 = vpop.xlane.xlu0 %3612
  %v3614 = vsub.f32 %v3606, %v3610
  %v3615 = vsub.f32 %v3607, %v3613
  %v3616 = vmul.f32 %v3614, 1.442695
  %v3617 = vpow.pop %v3616
  %v3618 = vmul.f32 %v3615, 1.442695
  %v3619 = vpow.pop %v3618
  %v3620 = vmul.f32 %v3617, %v82
  %v3621 = vmul.f32 %v3619, %v83
  %v3622 = vsel %vm692, %v3620, 0.0
  %3623 = vadd.xlane.f32.xlu0 %v3622
  %v3624 = vpop.xlane.xlu0 %3623
  %v3625 = vsel %vm692, %v3621, 0.0
  %3626 = vadd.xlane.f32.xlu0 %v3625
  %v3627 = vpop.xlane.xlu0 %3626
  %v3628 = vperm.slane %v3620, 0
  %v3629 = vlaneseq
  %v3630 = vshrl.u32 %v3629, 7
  %3632 = vset.pattern.permute.xlu0 %v3630
  %3633 = vperm.xlu0 %3632, %v3628
  %v3634 = vpop.permute.xlu0 %3633
  %v3635 = vlaneseq
  %v3636 = vshrl.u32 %v3635, 7
  %v3637 = vadd.s32 %v3636, 8
  %3638 = vset.pattern.permute.xlu0 %v3637
  %3639 = vperm.xlu0 %3638, %v3628
  %v3640 = vpop.permute.xlu0 %3639
  %v3641 = vperm.slane %v3620, 1
  %v3642 = vlaneseq
  %v3643 = vshrl.u32 %v3642, 7
  %3645 = vset.pattern.permute.xlu0 %v3643
  %3646 = vperm.xlu0 %3645, %v3641
  %v3647 = vpop.permute.xlu0 %3646
  %v3648 = vlaneseq
  %v3649 = vshrl.u32 %v3648, 7
  %v3650 = vadd.s32 %v3649, 8
  %3651 = vset.pattern.permute.xlu0 %v3650
  %3652 = vperm.xlu0 %3651, %v3641
  %v3653 = vpop.permute.xlu0 %3652
  %v3654 = vperm.slane %v3620, 2
  %v3655 = vlaneseq
  %v3656 = vshrl.u32 %v3655, 7
  %3658 = vset.pattern.permute.xlu0 %v3656
  %3659 = vperm.xlu0 %3658, %v3654
  %v3660 = vpop.permute.xlu0 %3659
  %v3661 = vlaneseq
  %v3662 = vshrl.u32 %v3661, 7
  %v3663 = vadd.s32 %v3662, 8
  %3664 = vset.pattern.permute.xlu0 %v3663
  %3665 = vperm.xlu0 %3664, %v3654
  %v3666 = vpop.permute.xlu0 %3665
  %v3667 = vperm.slane %v3620, 3
  %v3668 = vlaneseq
  %v3669 = vshrl.u32 %v3668, 7
  %3671 = vset.pattern.permute.xlu0 %v3669
  %3672 = vperm.xlu0 %3671, %v3667
  %v3673 = vpop.permute.xlu0 %3672
  %v3674 = vlaneseq
  %v3675 = vshrl.u32 %v3674, 7
  %v3676 = vadd.s32 %v3675, 8
  %3677 = vset.pattern.permute.xlu0 %v3676
  %3678 = vperm.xlu0 %3677, %v3667
  %v3679 = vpop.permute.xlu0 %3678
  %v3680 = vperm.slane %v3620, 4
  %v3681 = vlaneseq
  %v3682 = vshrl.u32 %v3681, 7
  %3684 = vset.pattern.permute.xlu0 %v3682
  %3685 = vperm.xlu0 %3684, %v3680
  %v3686 = vpop.permute.xlu0 %3685
  %v3687 = vlaneseq
  %v3688 = vshrl.u32 %v3687, 7
  %v3689 = vadd.s32 %v3688, 8
  %3690 = vset.pattern.permute.xlu0 %v3689
  %3691 = vperm.xlu0 %3690, %v3680
  %v3692 = vpop.permute.xlu0 %3691
  %v3693 = vperm.slane %v3620, 5
  %v3694 = vlaneseq
  %v3695 = vshrl.u32 %v3694, 7
  %3697 = vset.pattern.permute.xlu0 %v3695
  %3698 = vperm.xlu0 %3697, %v3693
  %v3699 = vpop.permute.xlu0 %3698
  %v3700 = vlaneseq
  %v3701 = vshrl.u32 %v3700, 7
  %v3702 = vadd.s32 %v3701, 8
  %3703 = vset.pattern.permute.xlu0 %v3702
  %3704 = vperm.xlu0 %3703, %v3693
  %v3705 = vpop.permute.xlu0 %3704
  %v3706 = vperm.slane %v3620, 6
  %v3707 = vlaneseq
  %v3708 = vshrl.u32 %v3707, 7
  %3710 = vset.pattern.permute.xlu0 %v3708
  %3711 = vperm.xlu0 %3710, %v3706
  %v3712 = vpop.permute.xlu0 %3711
  %v3713 = vlaneseq
  %v3714 = vshrl.u32 %v3713, 7
  %v3715 = vadd.s32 %v3714, 8
  %3716 = vset.pattern.permute.xlu0 %v3715
  %3717 = vperm.xlu0 %3716, %v3706
  %v3718 = vpop.permute.xlu0 %3717
  %v3719 = vperm.slane %v3620, 7
  %v3720 = vlaneseq
  %v3721 = vshrl.u32 %v3720, 7
  %3723 = vset.pattern.permute.xlu0 %v3721
  %3724 = vperm.xlu0 %3723, %v3719
  %v3725 = vpop.permute.xlu0 %3724
  %v3726 = vlaneseq
  %v3727 = vshrl.u32 %v3726, 7
  %v3728 = vadd.s32 %v3727, 8
  %3729 = vset.pattern.permute.xlu0 %v3728
  %3730 = vperm.xlu0 %3729, %v3719
  %v3731 = vpop.permute.xlu0 %3730
  %v3732 = vperm.slane %v3621, 0
  %v3733 = vlaneseq
  %v3734 = vshrl.u32 %v3733, 7
  %3736 = vset.pattern.permute.xlu0 %v3734
  %3737 = vperm.xlu0 %3736, %v3732
  %v3738 = vpop.permute.xlu0 %3737
  %v3739 = vlaneseq
  %v3740 = vshrl.u32 %v3739, 7
  %v3741 = vadd.s32 %v3740, 8
  %3742 = vset.pattern.permute.xlu0 %v3741
  %3743 = vperm.xlu0 %3742, %v3732
  %v3744 = vpop.permute.xlu0 %3743
  %v3745 = vperm.slane %v3621, 1
  %v3746 = vlaneseq
  %v3747 = vshrl.u32 %v3746, 7
  %3749 = vset.pattern.permute.xlu0 %v3747
  %3750 = vperm.xlu0 %3749, %v3745
  %v3751 = vpop.permute.xlu0 %3750
  %v3752 = vlaneseq
  %v3753 = vshrl.u32 %v3752, 7
  %v3754 = vadd.s32 %v3753, 8
  %3755 = vset.pattern.permute.xlu0 %v3754
  %3756 = vperm.xlu0 %3755, %v3745
  %v3757 = vpop.permute.xlu0 %3756
  %v3758 = vperm.slane %v3621, 2
  %v3759 = vlaneseq
  %v3760 = vshrl.u32 %v3759, 7
  %3762 = vset.pattern.permute.xlu0 %v3760
  %3763 = vperm.xlu0 %3762, %v3758
  %v3764 = vpop.permute.xlu0 %3763
  %v3765 = vlaneseq
  %v3766 = vshrl.u32 %v3765, 7
  %v3767 = vadd.s32 %v3766, 8
  %3768 = vset.pattern.permute.xlu0 %v3767
  %3769 = vperm.xlu0 %3768, %v3758
  %v3770 = vpop.permute.xlu0 %3769
  %v3771 = vperm.slane %v3621, 3
  %v3772 = vlaneseq
  %v3773 = vshrl.u32 %v3772, 7
  %3775 = vset.pattern.permute.xlu0 %v3773
  %3776 = vperm.xlu0 %3775, %v3771
  %v3777 = vpop.permute.xlu0 %3776
  %v3778 = vlaneseq
  %v3779 = vshrl.u32 %v3778, 7
  %v3780 = vadd.s32 %v3779, 8
  %3781 = vset.pattern.permute.xlu0 %v3780
  %3782 = vperm.xlu0 %3781, %v3771
  %v3783 = vpop.permute.xlu0 %3782
  %v3784 = vperm.slane %v3621, 4
  %v3785 = vlaneseq
  %v3786 = vshrl.u32 %v3785, 7
  %3788 = vset.pattern.permute.xlu0 %v3786
  %3789 = vperm.xlu0 %3788, %v3784
  %v3790 = vpop.permute.xlu0 %3789
  %v3791 = vlaneseq
  %v3792 = vshrl.u32 %v3791, 7
  %v3793 = vadd.s32 %v3792, 8
  %3794 = vset.pattern.permute.xlu0 %v3793
  %3795 = vperm.xlu0 %3794, %v3784
  %v3796 = vpop.permute.xlu0 %3795
  %v3797 = vperm.slane %v3621, 5
  %v3798 = vlaneseq
  %v3799 = vshrl.u32 %v3798, 7
  %3801 = vset.pattern.permute.xlu0 %v3799
  %3802 = vperm.xlu0 %3801, %v3797
  %v3803 = vpop.permute.xlu0 %3802
  %v3804 = vlaneseq
  %v3805 = vshrl.u32 %v3804, 7
  %v3806 = vadd.s32 %v3805, 8
  %3807 = vset.pattern.permute.xlu0 %v3806
  %3808 = vperm.xlu0 %3807, %v3797
  %v3809 = vpop.permute.xlu0 %3808
  %v3810 = vperm.slane %v3621, 6
  %v3811 = vlaneseq
  %v3812 = vshrl.u32 %v3811, 7
  %3814 = vset.pattern.permute.xlu0 %v3812
  %3815 = vperm.xlu0 %3814, %v3810
  %v3816 = vpop.permute.xlu0 %3815
  %v3817 = vlaneseq
  %v3818 = vshrl.u32 %v3817, 7
  %v3819 = vadd.s32 %v3818, 8
  %3820 = vset.pattern.permute.xlu0 %v3819
  %3821 = vperm.xlu0 %3820, %v3810
  %v3822 = vpop.permute.xlu0 %3821
  %v3823 = vperm.slane %v3621, 7
  %v3824 = vlaneseq
  %v3825 = vshrl.u32 %v3824, 7
  %3827 = vset.pattern.permute.xlu0 %v3825
  %3828 = vperm.xlu0 %3827, %v3823
  %v3829 = vpop.permute.xlu0 %3828
  %v3830 = vlaneseq
  %v3831 = vshrl.u32 %v3830, 7
  %v3832 = vadd.s32 %v3831, 8
  %3833 = vset.pattern.permute.xlu0 %v3832
  %3834 = vperm.xlu0 %3833, %v3823
  %v3835 = vpop.permute.xlu0 %3834
  %v3836 = vmul.f32 %v3634, %v2328
  %v3837 = vmul.f32 %v3640, %v2331
  %v3838 = vmul.f32 %v3647, %v2334
  %v3839 = vmul.f32 %v3653, %v2337
  %v3840 = vmul.f32 %v3660, %v2340
  %v3841 = vmul.f32 %v3666, %v2343
  %v3842 = vmul.f32 %v3673, %v2346
  %v3843 = vmul.f32 %v3679, %v2349
  %v3844 = vmul.f32 %v3686, %v2352
  %v3845 = vmul.f32 %v3692, %v2355
  %v3846 = vmul.f32 %v3699, %v2358
  %v3847 = vmul.f32 %v3705, %v2361
  %v3848 = vmul.f32 %v3712, %v2364
  %v3849 = vmul.f32 %v3718, %v2367
  %v3850 = vmul.f32 %v3725, %v2370
  %v3851 = vmul.f32 %v3731, %v2373
  %v3852 = vmul.f32 %v3738, %v2376
  %v3853 = vmul.f32 %v3744, %v2379
  %v3854 = vmul.f32 %v3751, %v2382
  %v3855 = vmul.f32 %v3757, %v2385
  %v3856 = vmul.f32 %v3764, %v2388
  %v3857 = vmul.f32 %v3770, %v2391
  %v3858 = vmul.f32 %v3777, %v2394
  %v3859 = vmul.f32 %v3783, %v2397
  %v3860 = vmul.f32 %v3790, %v2400
  %v3861 = vmul.f32 %v3796, %v2403
  %v3862 = vmul.f32 %v3803, %v2406
  %v3863 = vmul.f32 %v3809, %v2409
  %v3864 = vmul.f32 %v3816, %v2412
  %v3865 = vmul.f32 %v3822, %v2415
  %v3866 = vmul.f32 %v3829, %v2418
  %v3867 = vmul.f32 %v3835, %v2421
  %v3868 = vsel %vm587, %v3836, 0.0
  %v3869 = vsel %vm587, %v3837, 0.0
  %v3870 = vadd.f32 %v3868, %v3869
  %v3871 = vrot.slane %v3870, 4
  %v3872 = vadd.f32 %v3870, %v3871
  %v3873 = vrot.slane %v3872, 2
  %v3874 = vadd.f32 %v3872, %v3873
  %v3875 = vrot.slane %v3874, 1
  %v3876 = vadd.f32 %v3874, %v3875
  %v3877 = vsel %vm587, %v3838, 0.0
  %v3878 = vsel %vm587, %v3839, 0.0
  %v3879 = vadd.f32 %v3877, %v3878
  %v3880 = vrot.slane %v3879, 4
  %v3881 = vadd.f32 %v3879, %v3880
  %v3882 = vrot.slane %v3881, 2
  %v3883 = vadd.f32 %v3881, %v3882
  %v3884 = vrot.slane %v3883, 1
  %v3885 = vadd.f32 %v3883, %v3884
  %v3886 = vsel %vm587, %v3840, 0.0
  %v3887 = vsel %vm587, %v3841, 0.0
  %v3888 = vadd.f32 %v3886, %v3887
  %v3889 = vrot.slane %v3888, 4
  %v3890 = vadd.f32 %v3888, %v3889
  %v3891 = vrot.slane %v3890, 2
  %v3892 = vadd.f32 %v3890, %v3891
  %v3893 = vrot.slane %v3892, 1
  %v3894 = vadd.f32 %v3892, %v3893
  %v3895 = vsel %vm587, %v3842, 0.0
  %v3896 = vsel %vm587, %v3843, 0.0
  %v3897 = vadd.f32 %v3895, %v3896
  %v3898 = vrot.slane %v3897, 4
  %v3899 = vadd.f32 %v3897, %v3898
  %v3900 = vrot.slane %v3899, 2
  %v3901 = vadd.f32 %v3899, %v3900
  %v3902 = vrot.slane %v3901, 1
  %v3903 = vadd.f32 %v3901, %v3902
  %v3904 = vsel %vm587, %v3844, 0.0
  %v3905 = vsel %vm587, %v3845, 0.0
  %v3906 = vadd.f32 %v3904, %v3905
  %v3907 = vrot.slane %v3906, 4
  %v3908 = vadd.f32 %v3906, %v3907
  %v3909 = vrot.slane %v3908, 2
  %v3910 = vadd.f32 %v3908, %v3909
  %v3911 = vrot.slane %v3910, 1
  %v3912 = vadd.f32 %v3910, %v3911
  %v3913 = vsel %vm587, %v3846, 0.0
  %v3914 = vsel %vm587, %v3847, 0.0
  %v3915 = vadd.f32 %v3913, %v3914
  %v3916 = vrot.slane %v3915, 4
  %v3917 = vadd.f32 %v3915, %v3916
  %v3918 = vrot.slane %v3917, 2
  %v3919 = vadd.f32 %v3917, %v3918
  %v3920 = vrot.slane %v3919, 1
  %v3921 = vadd.f32 %v3919, %v3920
  %v3922 = vsel %vm587, %v3848, 0.0
  %v3923 = vsel %vm587, %v3849, 0.0
  %v3924 = vadd.f32 %v3922, %v3923
  %v3925 = vrot.slane %v3924, 4
  %v3926 = vadd.f32 %v3924, %v3925
  %v3927 = vrot.slane %v3926, 2
  %v3928 = vadd.f32 %v3926, %v3927
  %v3929 = vrot.slane %v3928, 1
  %v3930 = vadd.f32 %v3928, %v3929
  %v3931 = vsel %vm587, %v3850, 0.0
  %v3932 = vsel %vm587, %v3851, 0.0
  %v3933 = vadd.f32 %v3931, %v3932
  %v3934 = vrot.slane %v3933, 4
  %v3935 = vadd.f32 %v3933, %v3934
  %v3936 = vrot.slane %v3935, 2
  %v3937 = vadd.f32 %v3935, %v3936
  %v3938 = vrot.slane %v3937, 1
  %v3939 = vadd.f32 %v3937, %v3938
  %v3940 = vsel %vm587, %v3852, 0.0
  %v3941 = vsel %vm587, %v3853, 0.0
  %v3942 = vadd.f32 %v3940, %v3941
  %v3943 = vrot.slane %v3942, 4
  %v3944 = vadd.f32 %v3942, %v3943
  %v3945 = vrot.slane %v3944, 2
  %v3946 = vadd.f32 %v3944, %v3945
  %v3947 = vrot.slane %v3946, 1
  %v3948 = vadd.f32 %v3946, %v3947
  %v3949 = vsel %vm587, %v3854, 0.0
  %v3950 = vsel %vm587, %v3855, 0.0
  %v3951 = vadd.f32 %v3949, %v3950
  %v3952 = vrot.slane %v3951, 4
  %v3953 = vadd.f32 %v3951, %v3952
  %v3954 = vrot.slane %v3953, 2
  %v3955 = vadd.f32 %v3953, %v3954
  %v3956 = vrot.slane %v3955, 1
  %v3957 = vadd.f32 %v3955, %v3956
  %v3958 = vsel %vm587, %v3856, 0.0
  %v3959 = vsel %vm587, %v3857, 0.0
  %v3960 = vadd.f32 %v3958, %v3959
  %v3961 = vrot.slane %v3960, 4
  %v3962 = vadd.f32 %v3960, %v3961
  %v3963 = vrot.slane %v3962, 2
  %v3964 = vadd.f32 %v3962, %v3963
  %v3965 = vrot.slane %v3964, 1
  %v3966 = vadd.f32 %v3964, %v3965
  %v3967 = vsel %vm587, %v3858, 0.0
  %v3968 = vsel %vm587, %v3859, 0.0
  %v3969 = vadd.f32 %v3967, %v3968
  %v3970 = vrot.slane %v3969, 4
  %v3971 = vadd.f32 %v3969, %v3970
  %v3972 = vrot.slane %v3971, 2
  %v3973 = vadd.f32 %v3971, %v3972
  %v3974 = vrot.slane %v3973, 1
  %v3975 = vadd.f32 %v3973, %v3974
  %v3976 = vsel %vm587, %v3860, 0.0
  %v3977 = vsel %vm587, %v3861, 0.0
  %v3978 = vadd.f32 %v3976, %v3977
  %v3979 = vrot.slane %v3978, 4
  %v3980 = vadd.f32 %v3978, %v3979
  %v3981 = vrot.slane %v3980, 2
  %v3982 = vadd.f32 %v3980, %v3981
  %v3983 = vrot.slane %v3982, 1
  %v3984 = vadd.f32 %v3982, %v3983
  %v3985 = vsel %vm587, %v3862, 0.0
  %v3986 = vsel %vm587, %v3863, 0.0
  %v3987 = vadd.f32 %v3985, %v3986
  %v3988 = vrot.slane %v3987, 4
  %v3989 = vadd.f32 %v3987, %v3988
  %v3990 = vrot.slane %v3989, 2
  %v3991 = vadd.f32 %v3989, %v3990
  %v3992 = vrot.slane %v3991, 1
  %v3993 = vadd.f32 %v3991, %v3992
  %v3994 = vsel %vm587, %v3864, 0.0
  %v3995 = vsel %vm587, %v3865, 0.0
  %v3996 = vadd.f32 %v3994, %v3995
  %v3997 = vrot.slane %v3996, 4
  %v3998 = vadd.f32 %v3996, %v3997
  %v3999 = vrot.slane %v3998, 2
  %v4000 = vadd.f32 %v3998, %v3999
  %v4001 = vrot.slane %v4000, 1
  %v4002 = vadd.f32 %v4000, %v4001
  %v4003 = vsel %vm587, %v3866, 0.0
  %v4004 = vsel %vm587, %v3867, 0.0
  %v4005 = vadd.f32 %v4003, %v4004
  %v4006 = vrot.slane %v4005, 4
  %v4007 = vadd.f32 %v4005, %v4006
  %v4008 = vrot.slane %v4007, 2
  %v4009 = vadd.f32 %v4007, %v4008
  %v4010 = vrot.slane %v4009, 1
  %v4011 = vadd.f32 %v4009, %v4010
  %4012 = vrot.lane.b32.xlu0 %v2301, 88
  %v4013 = vpop.permute.xlu0 %4012
  %4014 = vrot.lane.b32.xlu0 %v2304, 88
  %v4015 = vpop.permute.xlu0 %4014
  %v4034 = vsel %vm634, %v3885, %v3876
  %v4035 = vsel %vm636, %v3894, %v4034
  %v4036 = vsel %vm638, %v3903, %v4035
  %v4037 = vsel %vm640, %v3912, %v4036
  %v4038 = vsel %vm642, %v3921, %v4037
  %v4039 = vsel %vm644, %v3930, %v4038
  %v4040 = vsel %vm646, %v3939, %v4039
  %v4041 = vsel %vm634, %v3957, %v3948
  %v4042 = vsel %vm636, %v3966, %v4041
  %v4043 = vsel %vm638, %v3975, %v4042
  %v4044 = vsel %vm640, %v3984, %v4043
  %v4045 = vsel %vm642, %v3993, %v4044
  %v4046 = vsel %vm644, %v4002, %v4045
  %v4047 = vsel %vm646, %v4011, %v4046
  %4048 = vrot.lane.b32.xlu0 %v4040, 120
  %v4049 = vpop.permute.xlu0 %4048
  %4050 = vrot.lane.b32.xlu0 %v4047, 120
  %v4051 = vpop.permute.xlu0 %4050
  %v4055 = vsel %vm692, %v3620, 0
  %v4058 = vsel %vm692, %v3621, 0
  %4060 = vmatpush.msra.mxu0 0.0
  %4061 = vmatpush.msra.mxu0 0.0
  %4062 = vmatpush.msra.mxu0 0.0
  %4063 = vmatpush.msra.mxu0 0.0
  %4064 = vmatpush.msra.mxu0 0.0
  %4065 = vmatpush.msra.mxu0 0.0
  %4066 = vmatpush.msra.mxu0 0.0
  %4067 = vmatpush.msra.mxu0 0.0
  %4068 = vmatpush.msra.mxu0 0.0
  %4069 = vmatpush.msra.mxu0 0.0
  %4070 = vmatpush.msra.mxu0 0.0
  %4071 = vmatpush.msra.mxu0 0.0
  %4072 = vmatpush.msra.mxu0 0.0
  %4073 = vmatpush.msra.mxu0 0.0
  %4074 = vmatpush.msra.mxu0 %v4015
  %4075 = vmatpush.msra.mxu0 %v4013
  %4076 = vmatmul.f32.gmra.mxu0 %v4055
  %v4077 = vpop.f32.mrf.mxu0
  %v4078 = vadd.f32 %v4049, %v4077
  %4079 = vmatmul.f32.gmra.mxu0 %v4058
  %v4080 = vpop.f32.mrf.mxu0
  %v4081 = vadd.f32 %v4051, %v4080
  %4082 = vdwg.mxu0
  %vm4083 = vcmp.gt.f32.partialorder %v3624, 0.0
  %vm4084 = vcmp.gt.f32.partialorder %v3627, 0.0
  %v4085 = vsel %vm4083, %v3624, 1.0
  %v4086 = vsel %vm4084, %v3627, 1.0
  %v4087 = vrcp.pop %v4085
  %v4088 = vmul.f32 %v4085, %v4087
  %v4089 = vsub.f32 1.0, %v4088
  %v4090 = vmul.f32 %v4087, %v4089
  %v4091 = vadd.f32 %v4087, %v4090
  %vm4092 = vweird.f32 %v4085
  %vm4093 = vweird.f32 %v4087
  %vm4094 = vmor %vm4092, %vm4093
  %v4095 = vsel %vm4094, %v4087, %v4091
  %v4096 = vand.u32 2147483647, %v4085
  %vm4097 = vcmp.eq.f32.partialorder %v4096, 8.507059e+37
  %v4098 = vand.u32 %v4085, 2147483648
  %v4099 = vor.u32 1.1754944e-38, %v4098
  %v4100 = vsel %vm4097, %v4099, %v4095
  %v4101 = vmul.f32 %v4078, %v4100
  %v4102 = vrcp.pop %v4086
  %v4103 = vmul.f32 %v4086, %v4102
  %v4104 = vsub.f32 1.0, %v4103
  %v4105 = vmul.f32 %v4102, %v4104
  %v4106 = vadd.f32 %v4102, %v4105
  %vm4107 = vweird.f32 %v4086
  %vm4108 = vweird.f32 %v4102
  %vm4109 = vmor %vm4107, %vm4108
  %v4110 = vsel %vm4109, %v4102, %v4106
  %v4111 = vand.u32 2147483647, %v4086
  %vm4112 = vcmp.eq.f32.partialorder %v4111, 8.507059e+37
  %v4113 = vand.u32 %v4086, 2147483648
  %v4114 = vor.u32 1.1754944e-38, %v4113
  %v4115 = vsel %vm4112, %v4114, %v4110
  %v4116 = vmul.f32 %v4081, %v4115
  %v4117 = vsel %vm4083, 1, 0
  %v4118 = vsel %vm4084, 1, 0
  %vm4119 = vcmp.eq.s32.totalorder %v4117, 1
  %vm4120 = vcmp.eq.s32.totalorder %v4118, 1
  %v4121 = vsel %vm4119, %v4101, 0.0
  %v4122 = vsel %vm4120, %v4116, 0.0
  %4125 = vrot.lane.b32.xlu0 %v4121, 8
  %v4126 = vpop.permute.xlu0 %4125
  %4127 = vrot.lane.b32.xlu0 %v4122, 8
  %v4128 = vpop.permute.xlu0 %4127
  %v4131 = vsel %vm125, %v3243, %v4126
  %v4132 = vsel %vm125, %v3244, %v4128
  %v4133 = vld [vmem:[%s12] sm:$0xff]
  %v4134 = vld [vmem:[%s12 + $0x8] sm:$0xff]
  %v4135 = vld [vmem:[%s12 + $0x10] sm:$0xff]
  %v4136 = vld [vmem:[%s12 + $0x18] sm:$0xff]
  %v4137 = vld [vmem:[%s12 + $0x20] sm:$0xff]
  %v4138 = vld [vmem:[%s12 + $0x28] sm:$0xff]
  %4139 = vrot.lane.b32.xlu0 %v2301, 80
  %v4140 = vpop.permute.xlu0 %4139
  %4141 = vrot.lane.b32.xlu0 %v2304, 80
  %v4142 = vpop.permute.xlu0 %4141
  %v4143 = vsel %vm692, %v4140, 0
  %v4145 = vsel %vm692, %v4142, 0
  %4147 = vmatpush.msra.mxu0 0.0
  %4148 = vmatpush.msra.mxu0 0.0
  %4149 = vmatpush.msra.mxu0 0.0
  %4150 = vmatpush.msra.mxu0 0.0
  %4151 = vmatpush.msra.mxu0 0.0
  %4152 = vmatpush.msra.mxu0 0.0
  %4153 = vmatpush.msra.mxu0 0.0
  %4154 = vmatpush.msra.mxu0 0.0
  %4155 = vmatpush.msra.mxu0 0.0
  %4156 = vmatpush.msra.mxu0 0.0
  %4157 = vmatpush.msra.mxu0 0.0
  %4158 = vmatpush.msra.mxu0 0.0
  %4159 = vmatpush.msra.mxu0 0.0
  %4160 = vmatpush.msra.mxu0 0.0
  %4161 = vmatpush.msra.mxu0 %v4136
  %4162 = vmatpush.msra.mxu0 %v4135
  %4163 = vmatmul.f32.gmra.mxu0 %v4143
  %v4164 = vpop.f32.mrf.mxu0
  %v4165 = vadd.f32 0.0, %v4164
  %4166 = vmatmul.f32.gmra.mxu0 %v4145
  %v4167 = vpop.f32.mrf.mxu0
  %v4168 = vadd.f32 0.0, %v4167
  %4169 = vdwg.mxu0
  %v4171 = vsel %vm692, %v4131, 0
  %v4174 = vsel %vm692, %v4132, 0
  %4176 = vmatpush.msra.mxu0 0.0
  %4177 = vmatpush.msra.mxu0 0.0
  %4178 = vmatpush.msra.mxu0 0.0
  %4179 = vmatpush.msra.mxu0 0.0
  %4180 = vmatpush.msra.mxu0 0.0
  %4181 = vmatpush.msra.mxu0 0.0
  %4182 = vmatpush.msra.mxu0 0.0
  %4183 = vmatpush.msra.mxu0 0.0
  %4184 = vmatpush.msra.mxu0 0.0
  %4185 = vmatpush.msra.mxu0 0.0
  %4186 = vmatpush.msra.mxu0 0.0
  %4187 = vmatpush.msra.mxu0 0.0
  %4188 = vmatpush.msra.mxu0 0.0
  %4189 = vmatpush.msra.mxu0 0.0
  %4190 = vmatpush.msra.mxu0 %v4134
  %4191 = vmatpush.msra.mxu0 %v4133
  %4192 = vmatmul.f32.gmra.mxu0 %v4171
  %v4193 = vpop.f32.mrf.mxu0
  %v4194 = vadd.f32 %v4165, %v4193
  %4195 = vmatmul.f32.gmra.mxu0 %v4174
  %v4196 = vpop.f32.mrf.mxu0
  %v4197 = vadd.f32 %v4168, %v4196
  %4198 = vdwg.mxu0
  %v4201 = vsub.f32 %v4131, %v4140
  %v4202 = vsub.f32 %v4132, %v4142
  %v4204 = vsel %vm692, %v4201, 0
  %v4207 = vsel %vm692, %v4202, 0
  %4209 = vmatpush.msra.mxu0 0.0
  %4210 = vmatpush.msra.mxu0 0.0
  %4211 = vmatpush.msra.mxu0 0.0
  %4212 = vmatpush.msra.mxu0 0.0
  %4213 = vmatpush.msra.mxu0 0.0
  %4214 = vmatpush.msra.mxu0 0.0
  %4215 = vmatpush.msra.mxu0 0.0
  %4216 = vmatpush.msra.mxu0 0.0
  %4217 = vmatpush.msra.mxu0 0.0
  %4218 = vmatpush.msra.mxu0 0.0
  %4219 = vmatpush.msra.mxu0 0.0
  %4220 = vmatpush.msra.mxu0 0.0
  %4221 = vmatpush.msra.mxu0 0.0
  %4222 = vmatpush.msra.mxu0 0.0
  %4223 = vmatpush.msra.mxu0 %v4138
  %4224 = vmatpush.msra.mxu0 %v4137
  %4225 = vmatmul.f32.gmra.mxu0 %v4204
  %v4226 = vpop.f32.mrf.mxu0
  %v4227 = vadd.f32 0.0, %v4226
  %4228 = vmatmul.f32.gmra.mxu0 %v4207
  %v4229 = vpop.f32.mrf.mxu0
  %v4230 = vadd.f32 0.0, %v4229
  %4231 = vdwg.mxu0
  %v4232 = vadd.f32 %v4194, %v4227
  %v4233 = vadd.f32 %v4197, %v4230
  %v4234 = vxor.u32 %v4232, 2147483648
  %v4235 = vxor.u32 %v4233, 2147483648
  %v4236 = vmul.f32 %v4234, 1.442695
  %v4237 = vpow.pop %v4236
  %v4238 = vmul.f32 %v4235, 1.442695
  %v4239 = vpow.pop %v4238
  %v4240 = vadd.f32 %v4237, 1.0
  %v4241 = vadd.f32 %v4239, 1.0
  %v4242 = vrcp.pop %v4240
  %v4243 = vmul.f32 %v4240, %v4242
  %v4244 = vsub.f32 1.0, %v4243
  %v4245 = vmul.f32 %v4242, %v4244
  %v4246 = vadd.f32 %v4242, %v4245
  %vm4247 = vweird.f32 %v4240
  %vm4248 = vweird.f32 %v4242
  %vm4249 = vmor %vm4247, %vm4248
  %v4250 = vsel %vm4249, %v4242, %v4246
  %v4251 = vand.u32 2147483647, %v4240
  %vm4252 = vcmp.eq.f32.partialorder %v4251, 8.507059e+37
  %v4253 = vand.u32 %v4240, 2147483648
  %v4254 = vor.u32 1.1754944e-38, %v4253
  %v4255 = vsel %vm4252, %v4254, %v4250
  %v4256 = vmul.f32 1.0, %v4255
  %v4257 = vrcp.pop %v4241
  %v4258 = vmul.f32 %v4241, %v4257
  %v4259 = vsub.f32 1.0, %v4258
  %v4260 = vmul.f32 %v4257, %v4259
  %v4261 = vadd.f32 %v4257, %v4260
  %vm4262 = vweird.f32 %v4241
  %vm4263 = vweird.f32 %v4257
  %vm4264 = vmor %vm4262, %vm4263
  %v4265 = vsel %vm4264, %v4257, %v4261
  %v4266 = vand.u32 2147483647, %v4241
  %vm4267 = vcmp.eq.f32.partialorder %v4266, 8.507059e+37
  %v4268 = vand.u32 %v4241, 2147483648
  %v4269 = vor.u32 1.1754944e-38, %v4268
  %v4270 = vsel %vm4267, %v4269, %v4265
  %v4271 = vmul.f32 1.0, %v4270
  %4273 = vset.pattern.permute.xlu0 0
  %4274 = vperm.xlu0 %4273, %v4256
  %v4275 = vpop.permute.xlu0 %4274
  %4278 = vset.pattern.permute.xlu0 0
  %4279 = vperm.xlu0 %4278, %v4271
  %v4280 = vpop.permute.xlu0 %4279
  %v4282 = vmul.f32 %v4275, %v2301
  %v4283 = vmul.f32 %v4280, %v2304
  %v4284 = vsub.f32 1.0, %v4256
  %v4285 = vsub.f32 1.0, %v4271
  %4287 = vset.pattern.permute.xlu0 0
  %4288 = vperm.xlu0 %4287, %v4284
  %v4289 = vpop.permute.xlu0 %4288
  %4292 = vset.pattern.permute.xlu0 0
  %4293 = vperm.xlu0 %4292, %v4285
  %v4294 = vpop.permute.xlu0 %4293
  %v4296 = vmul.f32 %v4289, %v4131
  %v4297 = vmul.f32 %v4294, %v4132
  %4300 = vrot.lane.b32.xlu0 %v4296, 48
  %v4301 = vpop.permute.xlu0 %4300
  %4302 = vrot.lane.b32.xlu0 %v4297, 48
  %v4303 = vpop.permute.xlu0 %4302
  %v4306 = vadd.f32 %v4282, %v4301
  %v4307 = vadd.f32 %v4283, %v4303
  %v4308 = vld [vmem:[%s3] sm:$0x3]
  %4311 = vrot.lane.b32.xlu0 %v4306, 80
  %v4312 = vpop.permute.xlu0 %4311
  %4313 = vrot.lane.b32.xlu0 %v4307, 80
  %v4314 = vpop.permute.xlu0 %4313
  %v4318 = vsel %vm692, %v4308, 0
  %4320 = vmatpush.msra.mxu0 0.0
  %4321 = vmatpush.msra.mxu0 0.0
  %4322 = vmatpush.msra.mxu0 0.0
  %4323 = vmatpush.msra.mxu0 0.0
  %4324 = vmatpush.msra.mxu0 0.0
  %4325 = vmatpush.msra.mxu0 0.0
  %4326 = vmatpush.msra.mxu0 0.0
  %4327 = vmatpush.msra.mxu0 0.0
  %4328 = vmatpush.msra.mxu0 0.0
  %4329 = vmatpush.msra.mxu0 0.0
  %4330 = vmatpush.msra.mxu0 0.0
  %4331 = vmatpush.msra.mxu0 0.0
  %4332 = vmatpush.msra.mxu0 0.0
  %4333 = vmatpush.msra.mxu0 0.0
  %4334 = vmatpush.msra.mxu0 %v4314
  %4335 = vmatpush.msra.mxu0 %v4312
  %4336 = vmatmul.f32.gmra.mxu0 %v4318
  %v4337 = vpop.f32.mrf.mxu0
  %v4338 = vadd.f32 0.0, %v4337
  %4339 = vdwg.mxu0
  %v4341 = vsel %vm692, %v82, 0
  %v4344 = vsel %vm692, %v83, 0
  %4346 = vmatpush.msra.mxu0 0.0
  %4347 = vmatpush.msra.mxu0 0.0
  %4348 = vmatpush.msra.mxu0 0.0
  %4349 = vmatpush.msra.mxu0 0.0
  %4350 = vmatpush.msra.mxu0 0.0
  %4351 = vmatpush.msra.mxu0 0.0
  %4352 = vmatpush.msra.mxu0 0.0
  %4353 = vmatpush.msra.mxu0 0.0
  %4354 = vmatpush.msra.mxu0 0.0
  %4355 = vmatpush.msra.mxu0 0.0
  %4356 = vmatpush.msra.mxu0 0.0
  %4357 = vmatpush.msra.mxu0 0.0
  %4358 = vmatpush.msra.mxu0 0.0
  %4359 = vmatpush.msra.mxu0 0.0
  %4360 = vmatpush.msra.mxu0 %v4314
  %4361 = vmatpush.msra.mxu0 %v4312
  %4362 = vmatmul.f32.gmra.mxu0 %v4341
  %v4363 = vpop.f32.mrf.mxu0
  %v4364 = vadd.f32 %v4312, %v4363
  %4365 = vmatmul.f32.gmra.mxu0 %v4344
  %v4366 = vpop.f32.mrf.mxu0
  %v4367 = vadd.f32 %v4314, %v4366
  %4368 = vdwg.mxu0
  %v4369 = vld [vmem:[%s13] sm:$0xff]
  %v4370 = vld [vmem:[%s13 + $0x8] sm:$0xff]
  %v4371 = vld [vmem:[%s14] sm:$0x1]
  %v4373 = vperm.slane %v4371, 0
  %v4376 = vsel %vm692, %v4364, 0
  %v4379 = vsel %vm692, %v4367, 0
  %4381 = vmatpush.msra.mxu0 0.0
  %4382 = vmatpush.msra.mxu0 0.0
  %4383 = vmatpush.msra.mxu0 0.0
  %4384 = vmatpush.msra.mxu0 0.0
  %4385 = vmatpush.msra.mxu0 0.0
  %4386 = vmatpush.msra.mxu0 0.0
  %4387 = vmatpush.msra.mxu0 0.0
  %4388 = vmatpush.msra.mxu0 0.0
  %4389 = vmatpush.msra.mxu0 0.0
  %4390 = vmatpush.msra.mxu0 0.0
  %4391 = vmatpush.msra.mxu0 0.0
  %4392 = vmatpush.msra.mxu0 0.0
  %4393 = vmatpush.msra.mxu0 0.0
  %4394 = vmatpush.msra.mxu0 0.0
  %4395 = vmatpush.msra.mxu0 %v4370
  %4396 = vmatpush.msra.mxu0 %v4369
  %4397 = vmatmul.f32.gmra.mxu0 %v4376
  %v4398 = vpop.f32.mrf.mxu0
  %v4399 = vadd.f32 %v4373, %v4398
  %4400 = vmatmul.f32.gmra.mxu0 %v4379
  %v4401 = vpop.f32.mrf.mxu0
  %v4402 = vadd.f32 %v4373, %v4401
  %4403 = vdwg.mxu0
  %v4404 = vmax.f32 %v4399, 0.0
  %v4405 = vmax.f32 %v4402, 0.0
  %v4406 = vld [vmem:[%s15] sm:$0xff]
  %v4407 = vld [vmem:[%s16] sm:$0x1]
  %v4409 = vperm.slane %v4407, 0
  %v4412 = vsel %vm125, %v4404, 0
  %v4415 = vsel %vm125, %v4405, 0
  %4417 = vmatpush.msra.mxu0 0.0
  %4418 = vmatpush.msra.mxu0 0.0
  %4419 = vmatpush.msra.mxu0 0.0
  %4420 = vmatpush.msra.mxu0 0.0
  %4421 = vmatpush.msra.mxu0 0.0
  %4422 = vmatpush.msra.mxu0 0.0
  %4423 = vmatpush.msra.mxu0 0.0
  %4424 = vmatpush.msra.mxu0 0.0
  %4425 = vmatpush.msra.mxu0 0.0
  %4426 = vmatpush.msra.mxu0 0.0
  %4427 = vmatpush.msra.mxu0 0.0
  %4428 = vmatpush.msra.mxu0 0.0
  %4429 = vmatpush.msra.mxu0 0.0
  %4430 = vmatpush.msra.mxu0 0.0
  %4431 = vmatpush.msra.mxu0 0.0
  %4432 = vmatpush.msra.mxu0 %v4406
  %4433 = vmatmul.f32.gmra.mxu0 %v4412
  %v4434 = vpop.f32.mrf.mxu0
  %v4435 = vadd.f32 %v4409, %v4434
  %4436 = vmatmul.f32.gmra.mxu0 %v4415
  %v4437 = vpop.f32.mrf.mxu0
  %v4438 = vadd.f32 %v4409, %v4437
  %4439 = vdwg.mxu0
  %4440 = vmatpush.msra.mxu0 0.0
  %4441 = vmatpush.msra.mxu0 0.0
  %4442 = vmatpush.msra.mxu0 0.0
  %4443 = vmatpush.msra.mxu0 0.0
  %4444 = vmatpush.msra.mxu0 0.0
  %4445 = vmatpush.msra.mxu0 0.0
  %4446 = vmatpush.msra.mxu0 0.0
  %4447 = vmatpush.msra.mxu0 0.0
  %4448 = vmatpush.msra.mxu0 0.0
  %4449 = vmatpush.msra.mxu0 0.0
  %4450 = vmatpush.msra.mxu0 0.0
  %4451 = vmatpush.msra.mxu0 0.0
  %4452 = vmatpush.msra.mxu0 0.0
  %4453 = vmatpush.msra.mxu0 0.0
  %4454 = vmatpush.msra.mxu0 %v4438
  %4455 = vmatpush.msra.mxu0 %v4435
  %4456 = vmatmul.f32.gmra.mxu0 %v4341
  %v4457 = vpop.f32.mrf.mxu0
  %v4458 = vadd.f32 %v4435, %v4457
  %4459 = vmatmul.f32.gmra.mxu0 %v4344
  %v4460 = vpop.f32.mrf.mxu0
  %v4461 = vadd.f32 %v4438, %v4460
  %4462 = vdwg.mxu0
  %v4463 = vld [vmem:[%s17] sm:$0xff]
  %v4464 = vld [vmem:[%s18] sm:$0x1]
  %v4466 = vperm.slane %v4464, 0
  %v4469 = vsel %vm125, %v4458, 0
  %v4472 = vsel %vm125, %v4461, 0
  %4474 = vmatpush.msra.mxu0 0.0
  %4475 = vmatpush.msra.mxu0 0.0
  %4476 = vmatpush.msra.mxu0 0.0
  %4477 = vmatpush.msra.mxu0 0.0
  %4478 = vmatpush.msra.mxu0 0.0
  %4479 = vmatpush.msra.mxu0 0.0
  %4480 = vmatpush.msra.mxu0 0.0
  %4481 = vmatpush.msra.mxu0 0.0
  %4482 = vmatpush.msra.mxu0 0.0
  %4483 = vmatpush.msra.mxu0 0.0
  %4484 = vmatpush.msra.mxu0 0.0
  %4485 = vmatpush.msra.mxu0 0.0
  %4486 = vmatpush.msra.mxu0 0.0
  %4487 = vmatpush.msra.mxu0 0.0
  %4488 = vmatpush.msra.mxu0 0.0
  %4489 = vmatpush.msra.mxu0 %v4463
  %4490 = vmatmul.f32.gmra.mxu0 %v4469
  %v4491 = vpop.f32.mrf.mxu0
  %v4492 = vadd.f32 %v4466, %v4491
  %4493 = vmatmul.f32.gmra.mxu0 %v4472
  %v4494 = vpop.f32.mrf.mxu0
  %v4495 = vadd.f32 %v4466, %v4494
  %4496 = vdwg.mxu0
  %v4497 = vmax.f32 %v4492, 0.0
  %v4498 = vmax.f32 %v4495, 0.0
  %v4499 = vld [vmem:[%s19] sm:$0xff]
  %v4500 = vld [vmem:[%s20] sm:$0x1]
  %v4502 = vperm.slane %v4500, 0
  %v4505 = vsel %vm125, %v4497, 0
  %v4508 = vsel %vm125, %v4498, 0
  %4510 = vmatpush.msra.mxu0 0.0
  %4511 = vmatpush.msra.mxu0 0.0
  %4512 = vmatpush.msra.mxu0 0.0
  %4513 = vmatpush.msra.mxu0 0.0
  %4514 = vmatpush.msra.mxu0 0.0
  %4515 = vmatpush.msra.mxu0 0.0
  %4516 = vmatpush.msra.mxu0 0.0
  %4517 = vmatpush.msra.mxu0 0.0
  %4518 = vmatpush.msra.mxu0 0.0
  %4519 = vmatpush.msra.mxu0 0.0
  %4520 = vmatpush.msra.mxu0 0.0
  %4521 = vmatpush.msra.mxu0 0.0
  %4522 = vmatpush.msra.mxu0 0.0
  %4523 = vmatpush.msra.mxu0 0.0
  %4524 = vmatpush.msra.mxu0 0.0
  %4525 = vmatpush.msra.mxu0 %v4499
  %4526 = vmatmul.f32.gmra.mxu0 %v4505
  %v4527 = vpop.f32.mrf.mxu0
  %v4528 = vadd.f32 %v4502, %v4527
  %4529 = vmatmul.f32.gmra.mxu0 %v4508
  %v4530 = vpop.f32.mrf.mxu0
  %v4531 = vadd.f32 %v4502, %v4530
  %4532 = vdwg.mxu0
  %v4533 = vld [vmem:[%s4] sm:$0x3]
  %v4535 = vsel %vm692, %v4533, 0
  %4537 = vmatpush.msra.mxu0 0.0
  %4538 = vmatpush.msra.mxu0 0.0
  %4539 = vmatpush.msra.mxu0 0.0
  %4540 = vmatpush.msra.mxu0 0.0
  %4541 = vmatpush.msra.mxu0 0.0
  %4542 = vmatpush.msra.mxu0 0.0
  %4543 = vmatpush.msra.mxu0 0.0
  %4544 = vmatpush.msra.mxu0 0.0
  %4545 = vmatpush.msra.mxu0 0.0
  %4546 = vmatpush.msra.mxu0 0.0
  %4547 = vmatpush.msra.mxu0 0.0
  %4548 = vmatpush.msra.mxu0 0.0
  %4549 = vmatpush.msra.mxu0 0.0
  %4550 = vmatpush.msra.mxu0 0.0
  %4551 = vmatpush.msra.mxu0 %v4531
  %4552 = vmatpush.msra.mxu0 %v4528
  %4553 = vmatmul.f32.gmra.mxu0 %v4535
  %v4554 = vpop.f32.mrf.mxu0
  %v4555 = vadd.f32 0.0, %v4554
  %4556 = vdwg.mxu0
  %v4557 = vld [vmem:[%s21] sm:$0xff]
  %v4558 = vld [vmem:[%s21 + $0x8] sm:$0xff]
  %v4559 = vld [vmem:[%s21 + $0x10] sm:$0xff]
  %v4561 = vsel %vm125, %v4555, 0
  %4563 = vmatpush.msra.mxu0 0.0
  %4564 = vmatpush.msra.mxu0 0.0
  %4565 = vmatpush.msra.mxu0 0.0
  %4566 = vmatpush.msra.mxu0 0.0
  %4567 = vmatpush.msra.mxu0 0.0
  %4568 = vmatpush.msra.mxu0 0.0
  %4569 = vmatpush.msra.mxu0 0.0
  %4570 = vmatpush.msra.mxu0 0.0
  %4571 = vmatpush.msra.mxu0 0.0
  %4572 = vmatpush.msra.mxu0 0.0
  %4573 = vmatpush.msra.mxu0 0.0
  %4574 = vmatpush.msra.mxu0 0.0
  %4575 = vmatpush.msra.mxu0 0.0
  %4576 = vmatpush.msra.mxu0 0.0
  %4577 = vmatpush.msra.mxu0 0.0
  %4578 = vmatpush.msra.mxu0 %v4559
  %4579 = vmatmul.f32.gmra.mxu0 %v4561
  %v4580 = vpop.f32.mrf.mxu0
  %v4581 = vadd.f32 0.0, %v4580
  %4582 = vdwg.mxu0
  %v4584 = vsel %vm692, %v4338, 0
  %4586 = vmatpush.msra.mxu0 0.0
  %4587 = vmatpush.msra.mxu0 0.0
  %4588 = vmatpush.msra.mxu0 0.0
  %4589 = vmatpush.msra.mxu0 0.0
  %4590 = vmatpush.msra.mxu0 0.0
  %4591 = vmatpush.msra.mxu0 0.0
  %4592 = vmatpush.msra.mxu0 0.0
  %4593 = vmatpush.msra.mxu0 0.0
  %4594 = vmatpush.msra.mxu0 0.0
  %4595 = vmatpush.msra.mxu0 0.0
  %4596 = vmatpush.msra.mxu0 0.0
  %4597 = vmatpush.msra.mxu0 0.0
  %4598 = vmatpush.msra.mxu0 0.0
  %4599 = vmatpush.msra.mxu0 0.0
  %4600 = vmatpush.msra.mxu0 %v4558
  %4601 = vmatpush.msra.mxu0 %v4557
  %4602 = vmatmul.f32.gmra.mxu0 %v4584
  %v4603 = vpop.f32.mrf.mxu0
  %v4604 = vadd.f32 %v4581, %v4603
  %4605 = vdwg.mxu0
  %v4606 = vld [vmem:[%s22] sm:$0x1]
  %v4608 = vperm.slane %v4606, 0
  %v4610 = vadd.f32 %v4604, %v4608
  %v4611 = vmax.f32 %v4610, 0.0
  %v4612 = vld [vmem:[%s23] sm:$0xff]
  %v4613 = vld [vmem:[#allocation2] sm:$0x1]
  %v4615 = vperm.slane %v4613, 0
  %v4618 = vsel %vm125, %v4611, 0
  %4620 = vmatpush.msra.mxu0 0.0
  %4621 = vmatpush.msra.mxu0 0.0
  %4622 = vmatpush.msra.mxu0 0.0
  %4623 = vmatpush.msra.mxu0 0.0
  %4624 = vmatpush.msra.mxu0 0.0
  %4625 = vmatpush.msra.mxu0 0.0
  %4626 = vmatpush.msra.mxu0 0.0
  %4627 = vmatpush.msra.mxu0 0.0
  %4628 = vmatpush.msra.mxu0 0.0
  %4629 = vmatpush.msra.mxu0 0.0
  %4630 = vmatpush.msra.mxu0 0.0
  %4631 = vmatpush.msra.mxu0 0.0
  %4632 = vmatpush.msra.mxu0 0.0
  %4633 = vmatpush.msra.mxu0 0.0
  %4634 = vmatpush.msra.mxu0 0.0
  %4635 = vmatpush.msra.mxu0 %v4612
  %4636 = vmatmul.f32.gmra.mxu0 %v4618
  %v4637 = vpop.f32.mrf.mxu0
  %v4638 = vadd.f32 %v4615, %v4637
  %4639 = vdwg.mxu0
  %vm4640 = vcmask 1024
  %4641 = vst.msk [vmem:[%s25] sm:$0x3] %vm4640, %v4638
  // Predicated region
  $region102: #{tpu_custom_call.1} parent=0 // pred_check
    _
  $region103: #{tpu_custom_call.1} parent=0 // pred_check_branch
    %4643 = sbr.rel (0) target = $region105
  $region104: #{tpu_custom_call.1} parent=0 // pred_region
    _
  $region105: #{tpu_custom_call.1} parent=0 // pred_fallthru
    _
  // Predicated region
  $region106: #{tpu_custom_call.1} parent=0 // pred_check
    _
  $region107: #{tpu_custom_call.1} parent=0 // pred_check_branch
    %4645 = sbr.rel (0) target = $region109
  $region108: #{tpu_custom_call.1} parent=0 // pred_region
    _
  $region109: #{tpu_custom_call.1} parent=0 // pred_fallthru
    _

</llo_original>
